<compile_context>
chip_gen: v7x
topology: tpu7x:2x2x1
jax: 0.10.0
libtpu: 0.0.40
codegen_flags: <defaults>
</compile_context>

<pallas_src>
import jax
import jax.numpy as jnp
from jax.experimental import pallas as pl
from jax.experimental.pallas import tpu as pltpu


# ------------------------------ Pallas kernel -------------------------------


def _reduction_a_kernel(x_ref, sel_ref, shift_ref, valid_ref,
                        w0_ref, b0_ref, w10_ref, b10_ref,
                        w11_ref, b11_ref, w12_ref, b12_ref, o_ref):
    f32 = jnp.float32
    x = x_ref[...]                                        # (N*Lp, 384)

    # Stride-2 row gathers of the input (shared by branch0 and the max-pool).
    g0 = jnp.dot(sel_ref[0], x, preferred_element_type=f32)     # (N*Lout, 384)
    g1 = jnp.dot(sel_ref[1], x, preferred_element_type=f32)
    g2 = jnp.dot(sel_ref[2], x, preferred_element_type=f32)

    # --- branch2: MaxPool1d(kernel=3, stride=2) ---
    y_pool = jnp.maximum(jnp.maximum(g0, g1), g2)               # (N*Lout, 384)

    # --- branch0: conv k=3 s=2 (BN scale pre-folded) + bias + ReLU ---
    y0 = (jnp.dot(g0, w0_ref[0], preferred_element_type=f32)
          + jnp.dot(g1, w0_ref[1], preferred_element_type=f32)
          + jnp.dot(g2, w0_ref[2], preferred_element_type=f32))
    y0 = jnp.maximum(y0 + b0_ref[...], 0.0)                     # (N*Lout, 384)

    # --- branch1[0]: 1x1 conv 384->192 + bias + ReLU; zero rows past each
    #     sequence's true length so the padded conv below sees proper zeros ---
    y10 = jnp.maximum(jnp.dot(x, w10_ref[...], preferred_element_type=f32)
                      + b10_ref[...], 0.0)
    y10 = y10 * valid_ref[...]                                  # (N*Lp, 192)

    # --- branch1[1]: conv k=3 s=1 pad=1, 192->224 (block-diagonal shift
    #     matrices supply the zero-padded left/right taps; batches never mix) --
    y10_m1 = jnp.dot(shift_ref[0], y10, preferred_element_type=f32)  # y[i-1]
    y10_p1 = jnp.dot(shift_ref[1], y10, preferred_element_type=f32)  # y[i+1]
    y11 = (jnp.dot(y10_m1, w11_ref[0], preferred_element_type=f32)
           + jnp.dot(y10, w11_ref[1], preferred_element_type=f32)
           + jnp.dot(y10_p1, w11_ref[2], preferred_element_type=f32))
    y11 = jnp.maximum(y11 + b11_ref[...], 0.0)                  # (N*Lp, 224)

    # --- branch1[2]: conv k=3 s=2, 224->256 ---
    h0 = jnp.dot(sel_ref[0], y11, preferred_element_type=f32)
    h1 = jnp.dot(sel_ref[1], y11, preferred_element_type=f32)
    h2 = jnp.dot(sel_ref[2], y11, preferred_element_type=f32)
    y12 = (jnp.dot(h0, w12_ref[0], preferred_element_type=f32)
           + jnp.dot(h1, w12_ref[1], preferred_element_type=f32)
           + jnp.dot(h2, w12_ref[2], preferred_element_type=f32))
    y12 = jnp.maximum(y12 + b12_ref[...], 0.0)                  # (N*Lout, 256)

    # --- concatenated output: lane-aligned slices of the 1024-wide block ---
    o_ref[:, 0:384] = y0.astype(o_ref.dtype)
    o_ref[:, 384:640] = y12.astype(o_ref.dtype)
    o_ref[:, 640:1024] = y_pool.astype(o_ref.dtype)


# --------------------------------- wrapper ----------------------------------


@jax.jit
def reduction_a_forward(x_ncl, params):
    N, C, L = x_ncl.shape
    assert C == 384
    Lout = (L - 3) // 2 + 1
    Lp = ((L + 7) // 8) * 8                 # pad each sequence to sublane mult.

    # NCL -> NLC, zero-pad L -> Lp, fold batch into the matmul M dimension.
    x = jnp.transpose(x_ncl, (0, 2, 1))
    x = jnp.pad(x, ((0, 0), (0, Lp - L), (0, 0))).reshape(N * Lp, 384)

    # Host-built (trace-time) block-diagonal selection / shift matrices so the
    # kernel body is pure MXU work.
    j = jnp.arange(Lout)[:, None]
    k = jnp.arange(Lp)[None, :]
    sel1 = jnp.stack([(k == 2 * j + t).astype(jnp.float32) for t in range(3)])
    i = jnp.arange(Lp)
    shift_dn1 = (i[:, None] == i[None, :] + 1).astype(jnp.float32)  # picks r-1
    shift_up1 = (i[None, :] == i[:, None] + 1).astype(jnp.float32)  # picks r+1
    eye_n = jnp.eye(N, dtype=jnp.float32)
    sel = jnp.stack([jnp.kron(eye_n, sel1[t]) for t in range(3)])   # (3,NLo,NLp)
    shifts = jnp.stack([jnp.kron(eye_n, shift_dn1),
                        jnp.kron(eye_n, shift_up1)])                # (2,NLp,NLp)
    valid = ((jnp.arange(N * Lp) % Lp) < L).astype(jnp.float32)[:, None]

    # Fold BN scale into conv weights; torch (Cout,Cin,K) -> (K,Cin,Cout).
    def fold(p):
        return jnp.transpose(p["w"], (2, 1, 0)) * p["scale"]

    w0 = fold(params["branch0"])            # (3, 384, 384)
    w10 = fold(params["branch1_0"])[0]      # (384, 192)
    w11 = fold(params["branch1_1"])         # (3, 192, 224)
    w12 = fold(params["branch1_2"])         # (3, 224, 256)

    args = (x, sel, shifts, valid,
            w0, params["branch0"]["bias"],
            w10, params["branch1_0"]["bias"],
            w11, params["branch1_1"]["bias"],
            w12, params["branch1_2"]["bias"])

    out = pl.pallas_call(
        _reduction_a_kernel,
        out_shape=jax.ShapeDtypeStruct((N * Lout, 1024), jnp.float32),
        grid=(1,),
        in_specs=[pl.BlockSpec(a.shape, lambda g, nd=a.ndim: (0,) * nd)
                  for a in args],
        out_specs=pl.BlockSpec((N * Lout, 1024), lambda g: (0, 0)),
        compiler_params=pltpu.CompilerParams(
            dimension_semantics=("arbitrary",)),
    )(*args)

    out = out.reshape(N, Lout, 1024)
    return jnp.transpose(out, (0, 2, 1))    # NLC -> NCL


# --------------------------- parameter building -----------------------------


def make_basic_conv1d_params(key, cin, cout, k):
    kw, kg, kb, km, kv = jax.random.split(key, 5)
    w = jax.random.normal(kw, (cout, cin, k), jnp.float32) / jnp.sqrt(cin * k)
    gamma = 1.0 + 0.1 * jax.random.normal(kg, (cout,), jnp.float32)
    beta = 0.1 * jax.random.normal(kb, (cout,), jnp.float32)
    running_mean = 0.1 * jax.random.normal(km, (cout,), jnp.float32)
    running_var = jnp.abs(jax.random.normal(kv, (cout,), jnp.float32)) + 0.5
    scale = gamma / jnp.sqrt(running_var + 1e-3)      # BN eps = 0.001
    bias = beta - running_mean * scale
    return {"w": w,
            "scale": scale.reshape(1, cout),
            "bias": bias.reshape(1, cout)}


def make_reduction_a_params(key):
    specs = {
        "branch0":   (384, 384, 3),   # conv k=3 s=2
        "branch1_0": (384, 192, 1),   # conv k=1 s=1
        "branch1_1": (192, 224, 3),   # conv k=3 s=1 pad=1
        "branch1_2": (224, 256, 3),   # conv k=3 s=2
    }
    keys = jax.random.split(key, len(specs))
    return {name: make_basic_conv1d_params(kk, *spec)
            for kk, (name, spec) in zip(keys, specs.items())}


# ------------------------- plain-JAX reference check ------------------------


def _ref_basic_conv(x_nlc, p, k, stride, pad):
    if pad:
        x_nlc = jnp.pad(x_nlc, ((0, 0), (pad, pad), (0, 0)))
    L = x_nlc.shape[1]
    Lo = (L - k) // stride + 1
    y = sum(x_nlc[:, t:t + stride * (Lo - 1) + 1:stride, :] @ p["w"][:, :, t].T
            for t in range(k))
    return jnp.maximum(y * p["scale"] + p["bias"], 0.0)


def _ref_maxpool3_s2(x_nlc):
    L = x_nlc.shape[1]
    Lo = (L - 3) // 2 + 1
    w0 = x_nlc[:, 0:2 * (Lo - 1) + 1:2]
    w1 = x_nlc[:, 1:2 * (Lo - 1) + 2:2]
    w2 = x_nlc[:, 2:2 * (Lo - 1) + 3:2]
    return jnp.maximum(jnp.maximum(w0, w1), w2)


def reduction_a_reference(x_ncl, params):
    x = jnp.transpose(x_ncl, (0, 2, 1))
    x0 = _ref_basic_conv(x, params["branch0"], 3, 2, 0)
    y = _ref_basic_conv(x, params["branch1_0"], 1, 1, 0)
    y = _ref_basic_conv(y, params["branch1_1"], 3, 1, 1)
    x1 = _ref_basic_conv(y, params["branch1_2"], 3, 2, 0)
    x2 = _ref_maxpool3_s2(x)
    out = jnp.concatenate([x0, x1, x2], axis=-1)
    return jnp.transpose(out, (0, 2, 1))


# ----------------------------------- main ------------------------------------


if __name__ == "__main__":
    key = jax.random.PRNGKey(0)
    kx, kp = jax.random.split(key)

    N, C, L = 2, 384, 17                     # Conv1d input (N, 384, L); Lout=8
    x = jax.random.normal(kx, (N, C, L), jnp.float32)
    params = make_reduction_a_params(kp)

    out = jax.block_until_ready(reduction_a_forward(x, params))
    Lout = (L - 3) // 2 + 1
    assert out.shape == (N, 1024, Lout), out.shape

    ref = reduction_a_reference(x, params)
    err = float(jnp.max(jnp.abs(out - ref)))
    assert jnp.allclose(out, ref, rtol=5e-3, atol=5e-3), err
    print("KERNEL_OK")
</pallas_src>

<mosaic_0001>
module attributes {stable_mosaic.version = 11 : i64} {
  func.func @_reduction_a_kernel(%arg0: i32, %arg1: memref<48x384xf32, #tpu.memory_space<vmem>>, %arg2: memref<3x16x48xf32, #tpu.memory_space<vmem>>, %arg3: memref<2x48x48xf32, #tpu.memory_space<vmem>>, %arg4: memref<48x1xf32, #tpu.memory_space<vmem>>, %arg5: memref<3x384x384xf32, #tpu.memory_space<vmem>>, %arg6: memref<1x384xf32, #tpu.memory_space<vmem>>, %arg7: memref<384x192xf32, #tpu.memory_space<vmem>>, %arg8: memref<1x192xf32, #tpu.memory_space<vmem>>, %arg9: memref<3x192x224xf32, #tpu.memory_space<vmem>>, %arg10: memref<1x224xf32, #tpu.memory_space<vmem>>, %arg11: memref<3x224x256xf32, #tpu.memory_space<vmem>>, %arg12: memref<1x256xf32, #tpu.memory_space<vmem>>, %arg13: memref<16x1024xf32, #tpu.memory_space<vmem>>) attributes {dimension_semantics = [#tpu.dimension_semantics<arbitrary>], iteration_bounds = array<i64: 1>, scalar_prefetch = 0 : i64, scratch_operands = 0 : i64, tpu.core_type = #tpu.core_type<tc>, window_params = [{pipeline_mode = #tpu.pipeline_mode<synchronous>, transform_indices = @transform_0, window_bounds = array<i64: 48, 384>}, {pipeline_mode = #tpu.pipeline_mode<synchronous>, transform_indices = @transform_1, window_bounds = array<i64: 3, 16, 48>}, {pipeline_mode = #tpu.pipeline_mode<synchronous>, transform_indices = @transform_2, window_bounds = array<i64: 2, 48, 48>}, {pipeline_mode = #tpu.pipeline_mode<synchronous>, transform_indices = @transform_3, window_bounds = array<i64: 48, 1>}, {pipeline_mode = #tpu.pipeline_mode<synchronous>, transform_indices = @transform_4, window_bounds = array<i64: 3, 384, 384>}, {pipeline_mode = #tpu.pipeline_mode<synchronous>, transform_indices = @transform_5, window_bounds = array<i64: 1, 384>}, {pipeline_mode = #tpu.pipeline_mode<synchronous>, transform_indices = @transform_6, window_bounds = array<i64: 384, 192>}, {pipeline_mode = #tpu.pipeline_mode<synchronous>, transform_indices = @transform_7, window_bounds = array<i64: 1, 192>}, {pipeline_mode = #tpu.pipeline_mode<synchronous>, transform_indices = @transform_8, window_bounds = array<i64: 3, 192, 224>}, {pipeline_mode = #tpu.pipeline_mode<synchronous>, transform_indices = @transform_9, window_bounds = array<i64: 1, 224>}, {pipeline_mode = #tpu.pipeline_mode<synchronous>, transform_indices = @transform_10, window_bounds = array<i64: 3, 224, 256>}, {pipeline_mode = #tpu.pipeline_mode<synchronous>, transform_indices = @transform_11, window_bounds = array<i64: 1, 256>}, {pipeline_mode = #tpu.pipeline_mode<synchronous>, transform_indices = @transform_12, window_bounds = array<i64: 16, 1024>}]} {
    %c0 = arith.constant 0 : index
    %c0_0 = arith.constant 0 : index
    %0 = vector.load %arg1[%c0, %c0_0] : memref<48x384xf32, #tpu.memory_space<vmem>>, vector<48x384xf32>
    %c0_1 = arith.constant 0 : index
    %c0_2 = arith.constant 0 : index
    %c0_3 = arith.constant 0 : index
    %1 = vector.load %arg2[%c0_1, %c0_2, %c0_3] : memref<3x16x48xf32, #tpu.memory_space<vmem>>, vector<1x16x48xf32>
    %2 = vector.shape_cast %1 : vector<1x16x48xf32> to vector<16x48xf32>
    %cst = arith.constant dense<0.000000e+00> : vector<16x384xf32>
    %3 = tpu.matmul %2, %0, %cst {dimension_numbers = #tpu.dot_dimension_numbers<[1], [0], [0], [1], [0, 0, 1, 1], [], []>} : vector<16x48xf32>, vector<48x384xf32>, vector<16x384xf32> -> vector<16x384xf32>
    %c1 = arith.constant 1 : index
    %c0_4 = arith.constant 0 : index
    %c0_5 = arith.constant 0 : index
    %4 = vector.load %arg2[%c1, %c0_4, %c0_5] : memref<3x16x48xf32, #tpu.memory_space<vmem>>, vector<1x16x48xf32>
    %5 = vector.shape_cast %4 : vector<1x16x48xf32> to vector<16x48xf32>
    %cst_6 = arith.constant dense<0.000000e+00> : vector<16x384xf32>
    %6 = tpu.matmul %5, %0, %cst_6 {dimension_numbers = #tpu.dot_dimension_numbers<[1], [0], [0], [1], [0, 0, 1, 1], [], []>} : vector<16x48xf32>, vector<48x384xf32>, vector<16x384xf32> -> vector<16x384xf32>
    %c2 = arith.constant 2 : index
    %c0_7 = arith.constant 0 : index
    %c0_8 = arith.constant 0 : index
    %7 = vector.load %arg2[%c2, %c0_7, %c0_8] : memref<3x16x48xf32, #tpu.memory_space<vmem>>, vector<1x16x48xf32>
    %8 = vector.shape_cast %7 : vector<1x16x48xf32> to vector<16x48xf32>
    %cst_9 = arith.constant dense<0.000000e+00> : vector<16x384xf32>
    %9 = tpu.matmul %8, %0, %cst_9 {dimension_numbers = #tpu.dot_dimension_numbers<[1], [0], [0], [1], [0, 0, 1, 1], [], []>} : vector<16x48xf32>, vector<48x384xf32>, vector<16x384xf32> -> vector<16x384xf32>
    %10 = arith.maximumf %3, %6 : vector<16x384xf32>
    %11 = arith.maximumf %10, %9 : vector<16x384xf32>
    %c0_10 = arith.constant 0 : index
    %c0_11 = arith.constant 0 : index
    %c0_12 = arith.constant 0 : index
    %12 = vector.load %arg5[%c0_10, %c0_11, %c0_12] : memref<3x384x384xf32, #tpu.memory_space<vmem>>, vector<1x384x384xf32>
    %13 = vector.shape_cast %12 : vector<1x384x384xf32> to vector<384x384xf32>
    %cst_13 = arith.constant dense<0.000000e+00> : vector<16x384xf32>
    %14 = tpu.matmul %3, %13, %cst_13 {dimension_numbers = #tpu.dot_dimension_numbers<[1], [0], [0], [1], [0, 0, 1, 1], [], []>} : vector<16x384xf32>, vector<384x384xf32>, vector<16x384xf32> -> vector<16x384xf32>
    %c1_14 = arith.constant 1 : index
    %c0_15 = arith.constant 0 : index
    %c0_16 = arith.constant 0 : index
    %15 = vector.load %arg5[%c1_14, %c0_15, %c0_16] : memref<3x384x384xf32, #tpu.memory_space<vmem>>, vector<1x384x384xf32>
    %16 = vector.shape_cast %15 : vector<1x384x384xf32> to vector<384x384xf32>
    %cst_17 = arith.constant dense<0.000000e+00> : vector<16x384xf32>
    %17 = tpu.matmul %6, %16, %cst_17 {dimension_numbers = #tpu.dot_dimension_numbers<[1], [0], [0], [1], [0, 0, 1, 1], [], []>} : vector<16x384xf32>, vector<384x384xf32>, vector<16x384xf32> -> vector<16x384xf32>
    %18 = arith.addf %14, %17 : vector<16x384xf32>
    %c2_18 = arith.constant 2 : index
    %c0_19 = arith.constant 0 : index
    %c0_20 = arith.constant 0 : index
    %19 = vector.load %arg5[%c2_18, %c0_19, %c0_20] : memref<3x384x384xf32, #tpu.memory_space<vmem>>, vector<1x384x384xf32>
    %20 = vector.shape_cast %19 : vector<1x384x384xf32> to vector<384x384xf32>
    %cst_21 = arith.constant dense<0.000000e+00> : vector<16x384xf32>
    %21 = tpu.matmul %9, %20, %cst_21 {dimension_numbers = #tpu.dot_dimension_numbers<[1], [0], [0], [1], [0, 0, 1, 1], [], []>} : vector<16x384xf32>, vector<384x384xf32>, vector<16x384xf32> -> vector<16x384xf32>
    %22 = arith.addf %18, %21 : vector<16x384xf32>
    %c0_22 = arith.constant 0 : index
    %c0_23 = arith.constant 0 : index
    %23 = vector.load %arg6[%c0_22, %c0_23] : memref<1x384xf32, #tpu.memory_space<vmem>>, vector<1x384xf32>
    %24 = vector.broadcast %23 : vector<1x384xf32> to vector<16x384xf32>
    %25 = arith.addf %22, %24 : vector<16x384xf32>
    %cst_24 = arith.constant 0.000000e+00 : f32
    %26 = vector.broadcast %cst_24 : f32 to vector<16x384xf32>
    %27 = arith.maximumf %25, %26 : vector<16x384xf32>
    %c0_25 = arith.constant 0 : index
    %c0_26 = arith.constant 0 : index
    %28 = vector.load %arg7[%c0_25, %c0_26] : memref<384x192xf32, #tpu.memory_space<vmem>>, vector<384x192xf32>
    %cst_27 = arith.constant dense<0.000000e+00> : vector<48x192xf32>
    %29 = tpu.matmul %0, %28, %cst_27 {dimension_numbers = #tpu.dot_dimension_numbers<[1], [0], [0], [1], [0, 0, 1, 1], [], []>} : vector<48x384xf32>, vector<384x192xf32>, vector<48x192xf32> -> vector<48x192xf32>
    %c0_28 = arith.constant 0 : index
    %c0_29 = arith.constant 0 : index
    %30 = vector.load %arg8[%c0_28, %c0_29] : memref<1x192xf32, #tpu.memory_space<vmem>>, vector<1x192xf32>
    %31 = vector.broadcast %30 : vector<1x192xf32> to vector<48x192xf32>
    %32 = arith.addf %29, %31 : vector<48x192xf32>
    %cst_30 = arith.constant 0.000000e+00 : f32
    %33 = vector.broadcast %cst_30 : f32 to vector<48x192xf32>
    %34 = arith.maximumf %32, %33 : vector<48x192xf32>
    %c0_31 = arith.constant 0 : index
    %c0_32 = arith.constant 0 : index
    %35 = vector.load %arg4[%c0_31, %c0_32] : memref<48x1xf32, #tpu.memory_space<vmem>>, vector<48x1xf32>
    %36 = vector.broadcast %35 : vector<48x1xf32> to vector<48x192xf32>
    %37 = arith.mulf %34, %36 : vector<48x192xf32>
    %c0_33 = arith.constant 0 : index
    %c0_34 = arith.constant 0 : index
    %c0_35 = arith.constant 0 : index
    %38 = vector.load %arg3[%c0_33, %c0_34, %c0_35] : memref<2x48x48xf32, #tpu.memory_space<vmem>>, vector<1x48x48xf32>
    %39 = vector.shape_cast %38 : vector<1x48x48xf32> to vector<48x48xf32>
    %cst_36 = arith.constant dense<0.000000e+00> : vector<48x192xf32>
    %40 = tpu.matmul %39, %37, %cst_36 {dimension_numbers = #tpu.dot_dimension_numbers<[1], [0], [0], [1], [0, 0, 1, 1], [], []>} : vector<48x48xf32>, vector<48x192xf32>, vector<48x192xf32> -> vector<48x192xf32>
    %c1_37 = arith.constant 1 : index
    %c0_38 = arith.constant 0 : index
    %c0_39 = arith.constant 0 : index
    %41 = vector.load %arg3[%c1_37, %c0_38, %c0_39] : memref<2x48x48xf32, #tpu.memory_space<vmem>>, vector<1x48x48xf32>
    %42 = vector.shape_cast %41 : vector<1x48x48xf32> to vector<48x48xf32>
    %cst_40 = arith.constant dense<0.000000e+00> : vector<48x192xf32>
    %43 = tpu.matmul %42, %37, %cst_40 {dimension_numbers = #tpu.dot_dimension_numbers<[1], [0], [0], [1], [0, 0, 1, 1], [], []>} : vector<48x48xf32>, vector<48x192xf32>, vector<48x192xf32> -> vector<48x192xf32>
    %c0_41 = arith.constant 0 : index
    %c0_42 = arith.constant 0 : index
    %c0_43 = arith.constant 0 : index
    %44 = vector.load %arg9[%c0_41, %c0_42, %c0_43] : memref<3x192x224xf32, #tpu.memory_space<vmem>>, vector<1x192x224xf32>
    %45 = vector.shape_cast %44 : vector<1x192x224xf32> to vector<192x224xf32>
    %cst_44 = arith.constant dense<0.000000e+00> : vector<48x224xf32>
    %46 = tpu.matmul %40, %45, %cst_44 {dimension_numbers = #tpu.dot_dimension_numbers<[1], [0], [0], [1], [0, 0, 1, 1], [], []>} : vector<48x192xf32>, vector<192x224xf32>, vector<48x224xf32> -> vector<48x224xf32>
    %c1_45 = arith.constant 1 : index
    %c0_46 = arith.constant 0 : index
    %c0_47 = arith.constant 0 : index
    %47 = vector.load %arg9[%c1_45, %c0_46, %c0_47] : memref<3x192x224xf32, #tpu.memory_space<vmem>>, vector<1x192x224xf32>
    %48 = vector.shape_cast %47 : vector<1x192x224xf32> to vector<192x224xf32>
    %cst_48 = arith.constant dense<0.000000e+00> : vector<48x224xf32>
    %49 = tpu.matmul %37, %48, %cst_48 {dimension_numbers = #tpu.dot_dimension_numbers<[1], [0], [0], [1], [0, 0, 1, 1], [], []>} : vector<48x192xf32>, vector<192x224xf32>, vector<48x224xf32> -> vector<48x224xf32>
    %50 = arith.addf %46, %49 : vector<48x224xf32>
    %c2_49 = arith.constant 2 : index
    %c0_50 = arith.constant 0 : index
    %c0_51 = arith.constant 0 : index
    %51 = vector.load %arg9[%c2_49, %c0_50, %c0_51] : memref<3x192x224xf32, #tpu.memory_space<vmem>>, vector<1x192x224xf32>
    %52 = vector.shape_cast %51 : vector<1x192x224xf32> to vector<192x224xf32>
    %cst_52 = arith.constant dense<0.000000e+00> : vector<48x224xf32>
    %53 = tpu.matmul %43, %52, %cst_52 {dimension_numbers = #tpu.dot_dimension_numbers<[1], [0], [0], [1], [0, 0, 1, 1], [], []>} : vector<48x192xf32>, vector<192x224xf32>, vector<48x224xf32> -> vector<48x224xf32>
    %54 = arith.addf %50, %53 : vector<48x224xf32>
    %c0_53 = arith.constant 0 : index
    %c0_54 = arith.constant 0 : index
    %55 = vector.load %arg10[%c0_53, %c0_54] : memref<1x224xf32, #tpu.memory_space<vmem>>, vector<1x224xf32>
    %56 = vector.broadcast %55 : vector<1x224xf32> to vector<48x224xf32>
    %57 = arith.addf %54, %56 : vector<48x224xf32>
    %cst_55 = arith.constant 0.000000e+00 : f32
    %58 = vector.broadcast %cst_55 : f32 to vector<48x224xf32>
    %59 = arith.maximumf %57, %58 : vector<48x224xf32>
    %c0_56 = arith.constant 0 : index
    %c0_57 = arith.constant 0 : index
    %c0_58 = arith.constant 0 : index
    %60 = vector.load %arg2[%c0_56, %c0_57, %c0_58] : memref<3x16x48xf32, #tpu.memory_space<vmem>>, vector<1x16x48xf32>
    %61 = vector.shape_cast %60 : vector<1x16x48xf32> to vector<16x48xf32>
    %cst_59 = arith.constant dense<0.000000e+00> : vector<16x224xf32>
    %62 = tpu.matmul %61, %59, %cst_59 {dimension_numbers = #tpu.dot_dimension_numbers<[1], [0], [0], [1], [0, 0, 1, 1], [], []>} : vector<16x48xf32>, vector<48x224xf32>, vector<16x224xf32> -> vector<16x224xf32>
    %c1_60 = arith.constant 1 : index
    %c0_61 = arith.constant 0 : index
    %c0_62 = arith.constant 0 : index
    %63 = vector.load %arg2[%c1_60, %c0_61, %c0_62] : memref<3x16x48xf32, #tpu.memory_space<vmem>>, vector<1x16x48xf32>
    %64 = vector.shape_cast %63 : vector<1x16x48xf32> to vector<16x48xf32>
    %cst_63 = arith.constant dense<0.000000e+00> : vector<16x224xf32>
    %65 = tpu.matmul %64, %59, %cst_63 {dimension_numbers = #tpu.dot_dimension_numbers<[1], [0], [0], [1], [0, 0, 1, 1], [], []>} : vector<16x48xf32>, vector<48x224xf32>, vector<16x224xf32> -> vector<16x224xf32>
    %c2_64 = arith.constant 2 : index
    %c0_65 = arith.constant 0 : index
    %c0_66 = arith.constant 0 : index
    %66 = vector.load %arg2[%c2_64, %c0_65, %c0_66] : memref<3x16x48xf32, #tpu.memory_space<vmem>>, vector<1x16x48xf32>
    %67 = vector.shape_cast %66 : vector<1x16x48xf32> to vector<16x48xf32>
    %cst_67 = arith.constant dense<0.000000e+00> : vector<16x224xf32>
    %68 = tpu.matmul %67, %59, %cst_67 {dimension_numbers = #tpu.dot_dimension_numbers<[1], [0], [0], [1], [0, 0, 1, 1], [], []>} : vector<16x48xf32>, vector<48x224xf32>, vector<16x224xf32> -> vector<16x224xf32>
    %c0_68 = arith.constant 0 : index
    %c0_69 = arith.constant 0 : index
    %c0_70 = arith.constant 0 : index
    %69 = vector.load %arg11[%c0_68, %c0_69, %c0_70] : memref<3x224x256xf32, #tpu.memory_space<vmem>>, vector<1x224x256xf32>
    %70 = vector.shape_cast %69 : vector<1x224x256xf32> to vector<224x256xf32>
    %cst_71 = arith.constant dense<0.000000e+00> : vector<16x256xf32>
    %71 = tpu.matmul %62, %70, %cst_71 {dimension_numbers = #tpu.dot_dimension_numbers<[1], [0], [0], [1], [0, 0, 1, 1], [], []>} : vector<16x224xf32>, vector<224x256xf32>, vector<16x256xf32> -> vector<16x256xf32>
    %c1_72 = arith.constant 1 : index
    %c0_73 = arith.constant 0 : index
    %c0_74 = arith.constant 0 : index
    %72 = vector.load %arg11[%c1_72, %c0_73, %c0_74] : memref<3x224x256xf32, #tpu.memory_space<vmem>>, vector<1x224x256xf32>
    %73 = vector.shape_cast %72 : vector<1x224x256xf32> to vector<224x256xf32>
    %cst_75 = arith.constant dense<0.000000e+00> : vector<16x256xf32>
    %74 = tpu.matmul %65, %73, %cst_75 {dimension_numbers = #tpu.dot_dimension_numbers<[1], [0], [0], [1], [0, 0, 1, 1], [], []>} : vector<16x224xf32>, vector<224x256xf32>, vector<16x256xf32> -> vector<16x256xf32>
    %75 = arith.addf %71, %74 : vector<16x256xf32>
    %c2_76 = arith.constant 2 : index
    %c0_77 = arith.constant 0 : index
    %c0_78 = arith.constant 0 : index
    %76 = vector.load %arg11[%c2_76, %c0_77, %c0_78] : memref<3x224x256xf32, #tpu.memory_space<vmem>>, vector<1x224x256xf32>
    %77 = vector.shape_cast %76 : vector<1x224x256xf32> to vector<224x256xf32>
    %cst_79 = arith.constant dense<0.000000e+00> : vector<16x256xf32>
    %78 = tpu.matmul %68, %77, %cst_79 {dimension_numbers = #tpu.dot_dimension_numbers<[1], [0], [0], [1], [0, 0, 1, 1], [], []>} : vector<16x224xf32>, vector<224x256xf32>, vector<16x256xf32> -> vector<16x256xf32>
    %79 = arith.addf %75, %78 : vector<16x256xf32>
    %c0_80 = arith.constant 0 : index
    %c0_81 = arith.constant 0 : index
    %80 = vector.load %arg12[%c0_80, %c0_81] : memref<1x256xf32, #tpu.memory_space<vmem>>, vector<1x256xf32>
    %81 = vector.broadcast %80 : vector<1x256xf32> to vector<16x256xf32>
    %82 = arith.addf %79, %81 : vector<16x256xf32>
    %cst_82 = arith.constant 0.000000e+00 : f32
    %83 = vector.broadcast %cst_82 : f32 to vector<16x256xf32>
    %84 = arith.maximumf %82, %83 : vector<16x256xf32>
    %c0_83 = arith.constant 0 : index
    %c0_84 = arith.constant 0 : index
    %85 = vector.load %arg13[%c0_83, %c0_84] : memref<16x1024xf32, #tpu.memory_space<vmem>>, vector<16x384xf32>
    tpu.vector_store %arg13[%c0_83, %c0_84], %27 {strides = array<i32>} : memref<16x1024xf32, #tpu.memory_space<vmem>>, vector<16x384xf32>,
    %c0_85 = arith.constant 0 : index
    %c384 = arith.constant 384 : index
    %86 = vector.load %arg13[%c0_85, %c384] : memref<16x1024xf32, #tpu.memory_space<vmem>>, vector<16x256xf32>
    tpu.vector_store %arg13[%c0_85, %c384], %84 {strides = array<i32>} : memref<16x1024xf32, #tpu.memory_space<vmem>>, vector<16x256xf32>,
    %c0_86 = arith.constant 0 : index
    %c640 = arith.constant 640 : index
    %87 = vector.load %arg13[%c0_86, %c640] : memref<16x1024xf32, #tpu.memory_space<vmem>>, vector<16x384xf32>
    tpu.vector_store %arg13[%c0_86, %c640], %11 {strides = array<i32>} : memref<16x1024xf32, #tpu.memory_space<vmem>>, vector<16x384xf32>,
    return
  }
  func.func @transform_0(%arg0: i32) -> (i32, i32) {
    %c0_i32 = arith.constant 0 : i32
    %c0_i32_0 = arith.constant 0 : i32
    %c0_i32_1 = arith.constant 0 : i32
    return %c0_i32, %c0_i32_0 : i32, i32
  }
  func.func @transform_1(%arg0: i32) -> (i32, i32, i32) {
    %c0_i32 = arith.constant 0 : i32
    %c0_i32_0 = arith.constant 0 : i32
    %c0_i32_1 = arith.constant 0 : i32
    %c0_i32_2 = arith.constant 0 : i32
    return %c0_i32, %c0_i32_0, %c0_i32_1 : i32, i32, i32
  }
  func.func @transform_2(%arg0: i32) -> (i32, i32, i32) {
    %c0_i32 = arith.constant 0 : i32
    %c0_i32_0 = arith.constant 0 : i32
    %c0_i32_1 = arith.constant 0 : i32
    %c0_i32_2 = arith.constant 0 : i32
    return %c0_i32, %c0_i32_0, %c0_i32_1 : i32, i32, i32
  }
  func.func @transform_3(%arg0: i32) -> (i32, i32) {
    %c0_i32 = arith.constant 0 : i32
    %c0_i32_0 = arith.constant 0 : i32
    %c0_i32_1 = arith.constant 0 : i32
    return %c0_i32, %c0_i32_0 : i32, i32
  }
  func.func @transform_4(%arg0: i32) -> (i32, i32, i32) {
    %c0_i32 = arith.constant 0 : i32
    %c0_i32_0 = arith.constant 0 : i32
    %c0_i32_1 = arith.constant 0 : i32
    %c0_i32_2 = arith.constant 0 : i32
    return %c0_i32, %c0_i32_0, %c0_i32_1 : i32, i32, i32
  }
  func.func @transform_5(%arg0: i32) -> (i32, i32) {
    %c0_i32 = arith.constant 0 : i32
    %c0_i32_0 = arith.constant 0 : i32
    %c0_i32_1 = arith.constant 0 : i32
    return %c0_i32, %c0_i32_0 : i32, i32
  }
  func.func @transform_6(%arg0: i32) -> (i32, i32) {
    %c0_i32 = arith.constant 0 : i32
    %c0_i32_0 = arith.constant 0 : i32
    %c0_i32_1 = arith.constant 0 : i32
    return %c0_i32, %c0_i32_0 : i32, i32
  }
  func.func @transform_7(%arg0: i32) -> (i32, i32) {
    %c0_i32 = arith.constant 0 : i32
    %c0_i32_0 = arith.constant 0 : i32
    %c0_i32_1 = arith.constant 0 : i32
    return %c0_i32, %c0_i32_0 : i32, i32
  }
  func.func @transform_8(%arg0: i32) -> (i32, i32, i32) {
    %c0_i32 = arith.constant 0 : i32
    %c0_i32_0 = arith.constant 0 : i32
    %c0_i32_1 = arith.constant 0 : i32
    %c0_i32_2 = arith.constant 0 : i32
    return %c0_i32, %c0_i32_0, %c0_i32_1 : i32, i32, i32
  }
  func.func @transform_9(%arg0: i32) -> (i32, i32) {
    %c0_i32 = arith.constant 0 : i32
    %c0_i32_0 = arith.constant 0 : i32
    %c0_i32_1 = arith.constant 0 : i32
    return %c0_i32, %c0_i32_0 : i32, i32
  }
  func.func @transform_10(%arg0: i32) -> (i32, i32, i32) {
    %c0_i32 = arith.constant 0 : i32
    %c0_i32_0 = arith.constant 0 : i32
    %c0_i32_1 = arith.constant 0 : i32
    %c0_i32_2 = arith.constant 0 : i32
    return %c0_i32, %c0_i32_0, %c0_i32_1 : i32, i32, i32
  }
  func.func @transform_11(%arg0: i32) -> (i32, i32) {
    %c0_i32 = arith.constant 0 : i32
    %c0_i32_0 = arith.constant 0 : i32
    %c0_i32_1 = arith.constant 0 : i32
    return %c0_i32, %c0_i32_0 : i32, i32
  }
  func.func @transform_12(%arg0: i32) -> (i32, i32) {
    %c0_i32 = arith.constant 0 : i32
    %c0_i32_0 = arith.constant 0 : i32
    %c0_i32_1 = arith.constant 0 : i32
    return %c0_i32, %c0_i32_0 : i32, i32
  }
}

</mosaic_0001>

<llo_original>
// kernel: reduction_a_forward.1
$region0: #{reduction_a_forward.1}
  #allocation0 [shape = 'u32[]', space=smem, size = 0x4, offset = 0x4, fixed_abs, tag = 'smem constant byte address 0x4 - core index']
  #allocation1 [shape = 'u32[144,128]{1,0:T(1,128)}', space=vmem, size = 0x12000, scoped, tag = 'internal scratch']
  %s0 = inlined_call_operand.vmem [shape: f32[48,384], index: 0, kind: input, shape index: {}]
  %s1 = inlined_call_operand.vmem [shape: f32[3,16,48], index: 1, kind: input, shape index: {}]
  %s2 = inlined_call_operand.vmem [shape: f32[2,48,48], index: 2, kind: input, shape index: {}]
  %s3 = inlined_call_operand.vmem [shape: f32[48,1], index: 3, kind: input, shape index: {}]
  %s4 = inlined_call_operand.vmem [shape: f32[3,384,384], index: 4, kind: input, shape index: {}]
  %s5 = inlined_call_operand.vmem [shape: f32[1,384], index: 5, kind: input, shape index: {}]
  %s6 = inlined_call_operand.vmem [shape: f32[384,192], index: 6, kind: input, shape index: {}]
  %s7 = inlined_call_operand.vmem [shape: f32[1,192], index: 7, kind: input, shape index: {}]
  %s8 = inlined_call_operand.vmem [shape: f32[3,192,224], index: 8, kind: input, shape index: {}]
  %s9 = inlined_call_operand.vmem [shape: f32[1,224], index: 9, kind: input, shape index: {}]
  %s10 = inlined_call_operand.vmem [shape: f32[3,224,256], index: 10, kind: input, shape index: {}]
  %s11 = inlined_call_operand.vmem [shape: f32[1,256], index: 11, kind: input, shape index: {}]
  %s12 = inlined_call_operand.hbm [shape: f32[16,1024], index: 12, kind: output, shape index: {}]
  %s13 = sld [smem:[#allocation0]]
  $region58: #{reduction_a_forward.1} parent=0
    _
  %s15 = ssub.s32 1, %s13
  %s16 = scalar_select 0, %s15, %s13
  $region1: #{reduction_a_forward.1} parent=0
    #allocation2 [shape = 'u8[65536]{0}', space=vmem, size = 0x10000, scoped, tag = 'output window, operand 0, single buffered']
    #allocation3 [shape = 's32[1]{0}', space=sflag, size = 0x4, scoped, tag = 'scoped memory for reduction_a_forward.1']
    %17 = vsyncpa [#allocation3], 0
    // Predicated region
    $region2: #{reduction_a_forward.1} parent=1 // pred_check
      _
    $region3: #{reduction_a_forward.1} parent=1 // pred_check_branch
      %19 = sbr.rel (0) target = $region5
    $region4: #{reduction_a_forward.1} parent=1 // pred_region
      _
    $region5: #{reduction_a_forward.1} parent=1 // pred_fallthru
      _
    // Predicated region
    $region6: #{reduction_a_forward.1} parent=1 // pred_check
      _
    $region7: #{reduction_a_forward.1} parent=1 // pred_check_branch
      %21 = sbr.rel (0) target = $region9
    $region8: #{reduction_a_forward.1} parent=1 // pred_region
      _
    $region9: #{reduction_a_forward.1} parent=1 // pred_fallthru
      _
    // Predicated region
    $region10: #{reduction_a_forward.1} parent=1 // pred_check
      _
    $region11: #{reduction_a_forward.1} parent=1 // pred_check_branch
      %23 = sbr.rel (0) target = $region13
    $region12: #{reduction_a_forward.1} parent=1 // pred_region
      _
    $region13: #{reduction_a_forward.1} parent=1 // pred_fallthru
      _
    // Predicated region
    $region14: #{reduction_a_forward.1} parent=1 // pred_check
      _
    $region15: #{reduction_a_forward.1} parent=1 // pred_check_branch
      %25 = sbr.rel (0) target = $region17
    $region16: #{reduction_a_forward.1} parent=1 // pred_region
      _
    $region17: #{reduction_a_forward.1} parent=1 // pred_fallthru
      _
    // Predicated region
    $region18: #{reduction_a_forward.1} parent=1 // pred_check
      _
    $region19: #{reduction_a_forward.1} parent=1 // pred_check_branch
      %27 = sbr.rel (0) target = $region21
    $region20: #{reduction_a_forward.1} parent=1 // pred_region
      _
    $region21: #{reduction_a_forward.1} parent=1 // pred_fallthru
      _
    // Predicated region
    $region22: #{reduction_a_forward.1} parent=1 // pred_check
      _
    $region23: #{reduction_a_forward.1} parent=1 // pred_check_branch
      %29 = sbr.rel (0) target = $region25
    $region24: #{reduction_a_forward.1} parent=1 // pred_region
      _
    $region25: #{reduction_a_forward.1} parent=1 // pred_fallthru
      _
    // Predicated region
    $region26: #{reduction_a_forward.1} parent=1 // pred_check
      _
    $region27: #{reduction_a_forward.1} parent=1 // pred_check_branch
      %31 = sbr.rel (0) target = $region29
    $region28: #{reduction_a_forward.1} parent=1 // pred_region
      _
    $region29: #{reduction_a_forward.1} parent=1 // pred_fallthru
      _
    // Predicated region
    $region30: #{reduction_a_forward.1} parent=1 // pred_check
      _
    $region31: #{reduction_a_forward.1} parent=1 // pred_check_branch
      %33 = sbr.rel (0) target = $region33
    $region32: #{reduction_a_forward.1} parent=1 // pred_region
      _
    $region33: #{reduction_a_forward.1} parent=1 // pred_fallthru
      _
    // Predicated region
    $region34: #{reduction_a_forward.1} parent=1 // pred_check
      _
    $region35: #{reduction_a_forward.1} parent=1 // pred_check_branch
      %35 = sbr.rel (0) target = $region37
    $region36: #{reduction_a_forward.1} parent=1 // pred_region
      _
    $region37: #{reduction_a_forward.1} parent=1 // pred_fallthru
      _
    // Predicated region
    $region38: #{reduction_a_forward.1} parent=1 // pred_check
      _
    $region39: #{reduction_a_forward.1} parent=1 // pred_check_branch
      %37 = sbr.rel (0) target = $region41
    $region40: #{reduction_a_forward.1} parent=1 // pred_region
      _
    $region41: #{reduction_a_forward.1} parent=1 // pred_fallthru
      _
    // Predicated region
    $region42: #{reduction_a_forward.1} parent=1 // pred_check
      _
    $region43: #{reduction_a_forward.1} parent=1 // pred_check_branch
      %39 = sbr.rel (0) target = $region45
    $region44: #{reduction_a_forward.1} parent=1 // pred_region
      _
    $region45: #{reduction_a_forward.1} parent=1 // pred_fallthru
      _
    // Predicated region
    $region46: #{reduction_a_forward.1} parent=1 // pred_check
      _
    $region47: #{reduction_a_forward.1} parent=1 // pred_check_branch
      %41 = sbr.rel (0) target = $region49
    $region48: #{reduction_a_forward.1} parent=1 // pred_region
      _
    $region49: #{reduction_a_forward.1} parent=1 // pred_fallthru
      _
    %v42 = vld [vmem:[%s0] sm:$0xff]
    %v43 = vld [vmem:[%s0 + $0x8] sm:$0xff]
    %v44 = vld [vmem:[%s0 + $0x10] sm:$0xff]
    %v45 = vld [vmem:[%s0 + $0x18] sm:$0xff]
    %v46 = vld [vmem:[%s0 + $0x20] sm:$0xff]
    %v47 = vld [vmem:[%s0 + $0x28] sm:$0xff]
    %v48 = vld [vmem:[%s0 + $0x30] sm:$0xff]
    %v49 = vld [vmem:[%s0 + $0x38] sm:$0xff]
    %v50 = vld [vmem:[%s0 + $0x40] sm:$0xff]
    %v51 = vld [vmem:[%s0 + $0x48] sm:$0xff]
    %v52 = vld [vmem:[%s0 + $0x50] sm:$0xff]
    %v53 = vld [vmem:[%s0 + $0x58] sm:$0xff]
    %v54 = vld [vmem:[%s0 + $0x60] sm:$0xff]
    %v55 = vld [vmem:[%s0 + $0x68] sm:$0xff]
    %v56 = vld [vmem:[%s0 + $0x70] sm:$0xff]
    %v57 = vld [vmem:[%s0 + $0x78] sm:$0xff]
    %v58 = vld [vmem:[%s0 + $0x80] sm:$0xff]
    %v59 = vld [vmem:[%s0 + $0x88] sm:$0xff]
    %v60 = vld [vmem:[%s1] sm:$0xff]
    %v61 = vld [vmem:[%s1 + $0x8] sm:$0xff]
    %vm62 = vcmask 392192
    %v64 = vsel %vm62, %v60, 0
    %v67 = vsel %vm62, %v61, 0
    %69 = vmatprep.subr.mxu0 %v43
    %70 = vmatpush1.msra.mxu0 %v42
    %71 = vmatprep.subr.mxu0 %v46
    %72 = vmatpush1.msra.mxu0 %v45
    %73 = vmatprep.subr.mxu0 %v49
    %74 = vmatpush1.msra.mxu0 %v48
    %75 = vmatprep.subr.mxu0 %v52
    %76 = vmatpush1.msra.mxu0 %v51
    %77 = vmatprep.subr.mxu0 %v55
    %78 = vmatpush1.msra.mxu0 %v54
    %79 = vmatprep.subr.mxu0 %v58
    %80 = vmatpush1.msra.mxu0 %v57
    %81 = vmatprep.subr.mxu0 0.0
    %82 = vmatpush1.msra.mxu0 0.0
    %83 = vmatprep.subr.mxu0 0.0
    %84 = vmatpush1.msra.mxu0 0.0
    %85 = vmatprep.subr.mxu0 0.0
    %86 = vmatpush1.msra.mxu0 0.0
    %87 = vmatprep.subr.mxu0 0.0
    %88 = vmatpush1.msra.mxu0 0.0
    %89 = vmatprep.subr.mxu0 0.0
    %90 = vmatpush1.msra.mxu0 0.0
    %91 = vmatprep.subr.mxu0 0.0
    %92 = vmatpush1.msra.mxu0 0.0
    %93 = vmatprep.subr.mxu0 0.0
    %94 = vmatpush1.msra.mxu0 0.0
    %95 = vmatprep.subr.mxu0 0.0
    %96 = vmatpush1.msra.mxu0 0.0
    %97 = vmatprep.subr.mxu0 0.0
    %98 = vmatpush1.msra.mxu0 0.0
    %99 = vmatprep.subr.mxu0 0.0
    %100 = vmatpush1.msra.mxu0 0.0
    %101 = vmatprep.subr.mxu0 0.0
    %102 = vmatpush1.msra.mxu0 0.0
    %103 = vmatprep.subr.mxu0 0.0
    %104 = vmatpush1.msra.mxu0 0.0
    %105 = vmatprep.subr.mxu0 0.0
    %106 = vmatpush1.msra.mxu0 0.0
    %107 = vmatprep.subr.mxu0 0.0
    %108 = vmatpush1.msra.mxu0 0.0
    %109 = vmatprep.subr.mxu0 0.0
    %110 = vmatpush1.msra.mxu0 0.0
    %111 = vmatprep.subr.mxu0 0.0
    %112 = vmatpush1.msra.mxu0 0.0
    %113 = vmatprep.subr.mxu0 0.0
    %114 = vmatpush1.msra.mxu0 0.0
    %115 = vmatprep.subr.mxu0 0.0
    %116 = vmatpush1.msra.mxu0 0.0
    %117 = vmatprep.subr.mxu0 0.0
    %118 = vmatpush1.msra.mxu0 0.0
    %119 = vmatprep.subr.mxu0 0.0
    %120 = vmatpush1.msra.mxu0 0.0
    %121 = vmatprep.subr.mxu0 0.0
    %122 = vmatpush1.msra.mxu0 0.0
    %123 = vmatprep.subr.mxu0 0.0
    %124 = vmatpush1.msra.mxu0 0.0
    %125 = vmatprep.subr.mxu0 0.0
    %126 = vmatpush1.msra.mxu0 0.0
    %127 = vmatprep.subr.mxu0 0.0
    %128 = vmatpush1.msra.mxu0 0.0
    %129 = vmatprep.subr.mxu0 0.0
    %130 = vmatpush1.msra.mxu0 0.0
    %131 = vmatprep.subr.mxu0 0.0
    %132 = vmatpush1.msra.mxu0 0.0
    %133 = vmatprep.mubr.f32.mxu0 0.0
    %134 = vmatmul.mubr.f32.gmra.mrb[0].mxu0 %v64
    %v135 = vpop.f32.mrb[0].mxu0
    %v136 = vadd.f32 0.0, %v135
    %v137 = vpop.f32.mrb[0].mxu0
    %v138 = vadd.f32 0.0, %v137
    %139 = vmatprep.mubr.f32.mxu0 0.0
    %140 = vmatmul.mubr.f32.gmra.mrb[0].mxu0 %v67
    %v141 = vpop.f32.mrb[0].mxu0
    %v142 = vadd.f32 0.0, %v141
    %v143 = vpop.f32.mrb[0].mxu0
    %v144 = vadd.f32 0.0, %v143
    %145 = vdwg.mxu0
    %146 = vmatprep.subr.mxu0 0.0
    %147 = vmatpush1.msra.mxu0 %v44
    %148 = vmatprep.subr.mxu0 0.0
    %149 = vmatpush1.msra.mxu0 %v47
    %150 = vmatprep.subr.mxu0 0.0
    %151 = vmatpush1.msra.mxu0 %v50
    %152 = vmatprep.subr.mxu0 0.0
    %153 = vmatpush1.msra.mxu0 %v53
    %154 = vmatprep.subr.mxu0 0.0
    %155 = vmatpush1.msra.mxu0 %v56
    %156 = vmatprep.subr.mxu0 0.0
    %157 = vmatpush1.msra.mxu0 %v59
    %158 = vmatprep.subr.mxu0 0.0
    %159 = vmatpush1.msra.mxu0 0.0
    %160 = vmatprep.subr.mxu0 0.0
    %161 = vmatpush1.msra.mxu0 0.0
    %162 = vmatprep.subr.mxu0 0.0
    %163 = vmatpush1.msra.mxu0 0.0
    %164 = vmatprep.subr.mxu0 0.0
    %165 = vmatpush1.msra.mxu0 0.0
    %166 = vmatprep.subr.mxu0 0.0
    %167 = vmatpush1.msra.mxu0 0.0
    %168 = vmatprep.subr.mxu0 0.0
    %169 = vmatpush1.msra.mxu0 0.0
    %170 = vmatprep.subr.mxu0 0.0
    %171 = vmatpush1.msra.mxu0 0.0
    %172 = vmatprep.subr.mxu0 0.0
    %173 = vmatpush1.msra.mxu0 0.0
    %174 = vmatprep.subr.mxu0 0.0
    %175 = vmatpush1.msra.mxu0 0.0
    %176 = vmatprep.subr.mxu0 0.0
    %177 = vmatpush1.msra.mxu0 0.0
    %178 = vmatprep.subr.mxu0 0.0
    %179 = vmatpush1.msra.mxu0 0.0
    %180 = vmatprep.subr.mxu0 0.0
    %181 = vmatpush1.msra.mxu0 0.0
    %182 = vmatprep.subr.mxu0 0.0
    %183 = vmatpush1.msra.mxu0 0.0
    %184 = vmatprep.subr.mxu0 0.0
    %185 = vmatpush1.msra.mxu0 0.0
    %186 = vmatprep.subr.mxu0 0.0
    %187 = vmatpush1.msra.mxu0 0.0
    %188 = vmatprep.subr.mxu0 0.0
    %189 = vmatpush1.msra.mxu0 0.0
    %190 = vmatprep.subr.mxu0 0.0
    %191 = vmatpush1.msra.mxu0 0.0
    %192 = vmatprep.subr.mxu0 0.0
    %193 = vmatpush1.msra.mxu0 0.0
    %194 = vmatprep.subr.mxu0 0.0
    %195 = vmatpush1.msra.mxu0 0.0
    %196 = vmatprep.subr.mxu0 0.0
    %197 = vmatpush1.msra.mxu0 0.0
    %198 = vmatprep.subr.mxu0 0.0
    %199 = vmatpush1.msra.mxu0 0.0
    %200 = vmatprep.subr.mxu0 0.0
    %201 = vmatpush1.msra.mxu0 0.0
    %202 = vmatprep.subr.mxu0 0.0
    %203 = vmatpush1.msra.mxu0 0.0
    %204 = vmatprep.subr.mxu0 0.0
    %205 = vmatpush1.msra.mxu0 0.0
    %206 = vmatprep.subr.mxu0 0.0
    %207 = vmatpush1.msra.mxu0 0.0
    %208 = vmatprep.subr.mxu0 0.0
    %209 = vmatpush1.msra.mxu0 0.0
    %210 = vmatprep.mubr.f32.mxu0 0.0
    %211 = vmatmul.mubr.f32.gmra.mrb[0].mxu0 %v64
    %v212 = vpop.f32.mrb[0].mxu0
    %v213 = vadd.f32 0.0, %v212
    %v214 = vpop.f32.mrb[0].mxu0
    %215 = vmatprep.mubr.f32.mxu0 0.0
    %216 = vmatmul.mubr.f32.gmra.mrb[0].mxu0 %v67
    %v217 = vpop.f32.mrb[0].mxu0
    %v218 = vadd.f32 0.0, %v217
    %v219 = vpop.f32.mrb[0].mxu0
    %220 = vdwg.mxu0
    %s221 = scalar_lea.vmem %s1, 16
    %v222 = vld [vmem:[%s221] sm:$0xff]
    %v223 = vld [vmem:[%s221 + $0x8] sm:$0xff]
    %v225 = vsel %vm62, %v222, 0
    %v228 = vsel %vm62, %v223, 0
    %230 = vmatprep.subr.mxu0 %v43
    %231 = vmatpush1.msra.mxu0 %v42
    %232 = vmatprep.subr.mxu0 %v46
    %233 = vmatpush1.msra.mxu0 %v45
    %234 = vmatprep.subr.mxu0 %v49
    %235 = vmatpush1.msra.mxu0 %v48
    %236 = vmatprep.subr.mxu0 %v52
    %237 = vmatpush1.msra.mxu0 %v51
    %238 = vmatprep.subr.mxu0 %v55
    %239 = vmatpush1.msra.mxu0 %v54
    %240 = vmatprep.subr.mxu0 %v58
    %241 = vmatpush1.msra.mxu0 %v57
    %242 = vmatprep.subr.mxu0 0.0
    %243 = vmatpush1.msra.mxu0 0.0
    %244 = vmatprep.subr.mxu0 0.0
    %245 = vmatpush1.msra.mxu0 0.0
    %246 = vmatprep.subr.mxu0 0.0
    %247 = vmatpush1.msra.mxu0 0.0
    %248 = vmatprep.subr.mxu0 0.0
    %249 = vmatpush1.msra.mxu0 0.0
    %250 = vmatprep.subr.mxu0 0.0
    %251 = vmatpush1.msra.mxu0 0.0
    %252 = vmatprep.subr.mxu0 0.0
    %253 = vmatpush1.msra.mxu0 0.0
    %254 = vmatprep.subr.mxu0 0.0
    %255 = vmatpush1.msra.mxu0 0.0
    %256 = vmatprep.subr.mxu0 0.0
    %257 = vmatpush1.msra.mxu0 0.0
    %258 = vmatprep.subr.mxu0 0.0
    %259 = vmatpush1.msra.mxu0 0.0
    %260 = vmatprep.subr.mxu0 0.0
    %261 = vmatpush1.msra.mxu0 0.0
    %262 = vmatprep.subr.mxu0 0.0
    %263 = vmatpush1.msra.mxu0 0.0
    %264 = vmatprep.subr.mxu0 0.0
    %265 = vmatpush1.msra.mxu0 0.0
    %266 = vmatprep.subr.mxu0 0.0
    %267 = vmatpush1.msra.mxu0 0.0
    %268 = vmatprep.subr.mxu0 0.0
    %269 = vmatpush1.msra.mxu0 0.0
    %270 = vmatprep.subr.mxu0 0.0
    %271 = vmatpush1.msra.mxu0 0.0
    %272 = vmatprep.subr.mxu0 0.0
    %273 = vmatpush1.msra.mxu0 0.0
    %274 = vmatprep.subr.mxu0 0.0
    %275 = vmatpush1.msra.mxu0 0.0
    %276 = vmatprep.subr.mxu0 0.0
    %277 = vmatpush1.msra.mxu0 0.0
    %278 = vmatprep.subr.mxu0 0.0
    %279 = vmatpush1.msra.mxu0 0.0
    %280 = vmatprep.subr.mxu0 0.0
    %281 = vmatpush1.msra.mxu0 0.0
    %282 = vmatprep.subr.mxu0 0.0
    %283 = vmatpush1.msra.mxu0 0.0
    %284 = vmatprep.subr.mxu0 0.0
    %285 = vmatpush1.msra.mxu0 0.0
    %286 = vmatprep.subr.mxu0 0.0
    %287 = vmatpush1.msra.mxu0 0.0
    %288 = vmatprep.subr.mxu0 0.0
    %289 = vmatpush1.msra.mxu0 0.0
    %290 = vmatprep.subr.mxu0 0.0
    %291 = vmatpush1.msra.mxu0 0.0
    %292 = vmatprep.subr.mxu0 0.0
    %293 = vmatpush1.msra.mxu0 0.0
    %294 = vmatprep.mubr.f32.mxu0 0.0
    %295 = vmatmul.mubr.f32.gmra.mrb[0].mxu0 %v225
    %v296 = vpop.f32.mrb[0].mxu0
    %v297 = vadd.f32 0.0, %v296
    %v298 = vpop.f32.mrb[0].mxu0
    %v299 = vadd.f32 0.0, %v298
    %300 = vmatprep.mubr.f32.mxu0 0.0
    %301 = vmatmul.mubr.f32.gmra.mrb[0].mxu0 %v228
    %v302 = vpop.f32.mrb[0].mxu0
    %v303 = vadd.f32 0.0, %v302
    %v304 = vpop.f32.mrb[0].mxu0
    %v305 = vadd.f32 0.0, %v304
    %306 = vdwg.mxu0
    %307 = vmatprep.subr.mxu0 0.0
    %308 = vmatpush1.msra.mxu0 %v44
    %309 = vmatprep.subr.mxu0 0.0
    %310 = vmatpush1.msra.mxu0 %v47
    %311 = vmatprep.subr.mxu0 0.0
    %312 = vmatpush1.msra.mxu0 %v50
    %313 = vmatprep.subr.mxu0 0.0
    %314 = vmatpush1.msra.mxu0 %v53
    %315 = vmatprep.subr.mxu0 0.0
    %316 = vmatpush1.msra.mxu0 %v56
    %317 = vmatprep.subr.mxu0 0.0
    %318 = vmatpush1.msra.mxu0 %v59
    %319 = vmatprep.subr.mxu0 0.0
    %320 = vmatpush1.msra.mxu0 0.0
    %321 = vmatprep.subr.mxu0 0.0
    %322 = vmatpush1.msra.mxu0 0.0
    %323 = vmatprep.subr.mxu0 0.0
    %324 = vmatpush1.msra.mxu0 0.0
    %325 = vmatprep.subr.mxu0 0.0
    %326 = vmatpush1.msra.mxu0 0.0
    %327 = vmatprep.subr.mxu0 0.0
    %328 = vmatpush1.msra.mxu0 0.0
    %329 = vmatprep.subr.mxu0 0.0
    %330 = vmatpush1.msra.mxu0 0.0
    %331 = vmatprep.subr.mxu0 0.0
    %332 = vmatpush1.msra.mxu0 0.0
    %333 = vmatprep.subr.mxu0 0.0
    %334 = vmatpush1.msra.mxu0 0.0
    %335 = vmatprep.subr.mxu0 0.0
    %336 = vmatpush1.msra.mxu0 0.0
    %337 = vmatprep.subr.mxu0 0.0
    %338 = vmatpush1.msra.mxu0 0.0
    %339 = vmatprep.subr.mxu0 0.0
    %340 = vmatpush1.msra.mxu0 0.0
    %341 = vmatprep.subr.mxu0 0.0
    %342 = vmatpush1.msra.mxu0 0.0
    %343 = vmatprep.subr.mxu0 0.0
    %344 = vmatpush1.msra.mxu0 0.0
    %345 = vmatprep.subr.mxu0 0.0
    %346 = vmatpush1.msra.mxu0 0.0
    %347 = vmatprep.subr.mxu0 0.0
    %348 = vmatpush1.msra.mxu0 0.0
    %349 = vmatprep.subr.mxu0 0.0
    %350 = vmatpush1.msra.mxu0 0.0
    %351 = vmatprep.subr.mxu0 0.0
    %352 = vmatpush1.msra.mxu0 0.0
    %353 = vmatprep.subr.mxu0 0.0
    %354 = vmatpush1.msra.mxu0 0.0
    %355 = vmatprep.subr.mxu0 0.0
    %356 = vmatpush1.msra.mxu0 0.0
    %357 = vmatprep.subr.mxu0 0.0
    %358 = vmatpush1.msra.mxu0 0.0
    %359 = vmatprep.subr.mxu0 0.0
    %360 = vmatpush1.msra.mxu0 0.0
    %361 = vmatprep.subr.mxu0 0.0
    %362 = vmatpush1.msra.mxu0 0.0
    %363 = vmatprep.subr.mxu0 0.0
    %364 = vmatpush1.msra.mxu0 0.0
    %365 = vmatprep.subr.mxu0 0.0
    %366 = vmatpush1.msra.mxu0 0.0
    %367 = vmatprep.subr.mxu0 0.0
    %368 = vmatpush1.msra.mxu0 0.0
    %369 = vmatprep.subr.mxu0 0.0
    %370 = vmatpush1.msra.mxu0 0.0
    %371 = vmatprep.mubr.f32.mxu0 0.0
    %372 = vmatmul.mubr.f32.gmra.mrb[0].mxu0 %v225
    %v373 = vpop.f32.mrb[0].mxu0
    %v374 = vadd.f32 0.0, %v373
    %v375 = vpop.f32.mrb[0].mxu0
    %376 = vmatprep.mubr.f32.mxu0 0.0
    %377 = vmatmul.mubr.f32.gmra.mrb[0].mxu0 %v228
    %v378 = vpop.f32.mrb[0].mxu0
    %v379 = vadd.f32 0.0, %v378
    %v380 = vpop.f32.mrb[0].mxu0
    %381 = vdwg.mxu0
    %s382 = scalar_lea.vmem %s1, 32
    %v383 = vld [vmem:[%s382] sm:$0xff]
    %v384 = vld [vmem:[%s382 + $0x8] sm:$0xff]
    %v386 = vsel %vm62, %v383, 0
    %v389 = vsel %vm62, %v384, 0
    %391 = vmatprep.subr.mxu0 %v43
    %392 = vmatpush1.msra.mxu0 %v42
    %393 = vmatprep.subr.mxu0 %v46
    %394 = vmatpush1.msra.mxu0 %v45
    %395 = vmatprep.subr.mxu0 %v49
    %396 = vmatpush1.msra.mxu0 %v48
    %397 = vmatprep.subr.mxu0 %v52
    %398 = vmatpush1.msra.mxu0 %v51
    %399 = vmatprep.subr.mxu0 %v55
    %400 = vmatpush1.msra.mxu0 %v54
    %401 = vmatprep.subr.mxu0 %v58
    %402 = vmatpush1.msra.mxu0 %v57
    %403 = vmatprep.subr.mxu0 0.0
    %404 = vmatpush1.msra.mxu0 0.0
    %405 = vmatprep.subr.mxu0 0.0
    %406 = vmatpush1.msra.mxu0 0.0
    %407 = vmatprep.subr.mxu0 0.0
    %408 = vmatpush1.msra.mxu0 0.0
    %409 = vmatprep.subr.mxu0 0.0
    %410 = vmatpush1.msra.mxu0 0.0
    %411 = vmatprep.subr.mxu0 0.0
    %412 = vmatpush1.msra.mxu0 0.0
    %413 = vmatprep.subr.mxu0 0.0
    %414 = vmatpush1.msra.mxu0 0.0
    %415 = vmatprep.subr.mxu0 0.0
    %416 = vmatpush1.msra.mxu0 0.0
    %417 = vmatprep.subr.mxu0 0.0
    %418 = vmatpush1.msra.mxu0 0.0
    %419 = vmatprep.subr.mxu0 0.0
    %420 = vmatpush1.msra.mxu0 0.0
    %421 = vmatprep.subr.mxu0 0.0
    %422 = vmatpush1.msra.mxu0 0.0
    %423 = vmatprep.subr.mxu0 0.0
    %424 = vmatpush1.msra.mxu0 0.0
    %425 = vmatprep.subr.mxu0 0.0
    %426 = vmatpush1.msra.mxu0 0.0
    %427 = vmatprep.subr.mxu0 0.0
    %428 = vmatpush1.msra.mxu0 0.0
    %429 = vmatprep.subr.mxu0 0.0
    %430 = vmatpush1.msra.mxu0 0.0
    %431 = vmatprep.subr.mxu0 0.0
    %432 = vmatpush1.msra.mxu0 0.0
    %433 = vmatprep.subr.mxu0 0.0
    %434 = vmatpush1.msra.mxu0 0.0
    %435 = vmatprep.subr.mxu0 0.0
    %436 = vmatpush1.msra.mxu0 0.0
    %437 = vmatprep.subr.mxu0 0.0
    %438 = vmatpush1.msra.mxu0 0.0
    %439 = vmatprep.subr.mxu0 0.0
    %440 = vmatpush1.msra.mxu0 0.0
    %441 = vmatprep.subr.mxu0 0.0
    %442 = vmatpush1.msra.mxu0 0.0
    %443 = vmatprep.subr.mxu0 0.0
    %444 = vmatpush1.msra.mxu0 0.0
    %445 = vmatprep.subr.mxu0 0.0
    %446 = vmatpush1.msra.mxu0 0.0
    %447 = vmatprep.subr.mxu0 0.0
    %448 = vmatpush1.msra.mxu0 0.0
    %449 = vmatprep.subr.mxu0 0.0
    %450 = vmatpush1.msra.mxu0 0.0
    %451 = vmatprep.subr.mxu0 0.0
    %452 = vmatpush1.msra.mxu0 0.0
    %453 = vmatprep.subr.mxu0 0.0
    %454 = vmatpush1.msra.mxu0 0.0
    %455 = vmatprep.mubr.f32.mxu0 0.0
    %456 = vmatmul.mubr.f32.gmra.mrb[0].mxu0 %v386
    %v457 = vpop.f32.mrb[0].mxu0
    %v458 = vadd.f32 0.0, %v457
    %v459 = vpop.f32.mrb[0].mxu0
    %v460 = vadd.f32 0.0, %v459
    %461 = vmatprep.mubr.f32.mxu0 0.0
    %462 = vmatmul.mubr.f32.gmra.mrb[0].mxu0 %v389
    %v463 = vpop.f32.mrb[0].mxu0
    %v464 = vadd.f32 0.0, %v463
    %v465 = vpop.f32.mrb[0].mxu0
    %v466 = vadd.f32 0.0, %v465
    %467 = vdwg.mxu0
    %468 = vmatprep.subr.mxu0 0.0
    %469 = vmatpush1.msra.mxu0 %v44
    %470 = vmatprep.subr.mxu0 0.0
    %471 = vmatpush1.msra.mxu0 %v47
    %472 = vmatprep.subr.mxu0 0.0
    %473 = vmatpush1.msra.mxu0 %v50
    %474 = vmatprep.subr.mxu0 0.0
    %475 = vmatpush1.msra.mxu0 %v53
    %476 = vmatprep.subr.mxu0 0.0
    %477 = vmatpush1.msra.mxu0 %v56
    %478 = vmatprep.subr.mxu0 0.0
    %479 = vmatpush1.msra.mxu0 %v59
    %480 = vmatprep.subr.mxu0 0.0
    %481 = vmatpush1.msra.mxu0 0.0
    %482 = vmatprep.subr.mxu0 0.0
    %483 = vmatpush1.msra.mxu0 0.0
    %484 = vmatprep.subr.mxu0 0.0
    %485 = vmatpush1.msra.mxu0 0.0
    %486 = vmatprep.subr.mxu0 0.0
    %487 = vmatpush1.msra.mxu0 0.0
    %488 = vmatprep.subr.mxu0 0.0
    %489 = vmatpush1.msra.mxu0 0.0
    %490 = vmatprep.subr.mxu0 0.0
    %491 = vmatpush1.msra.mxu0 0.0
    %492 = vmatprep.subr.mxu0 0.0
    %493 = vmatpush1.msra.mxu0 0.0
    %494 = vmatprep.subr.mxu0 0.0
    %495 = vmatpush1.msra.mxu0 0.0
    %496 = vmatprep.subr.mxu0 0.0
    %497 = vmatpush1.msra.mxu0 0.0
    %498 = vmatprep.subr.mxu0 0.0
    %499 = vmatpush1.msra.mxu0 0.0
    %500 = vmatprep.subr.mxu0 0.0
    %501 = vmatpush1.msra.mxu0 0.0
    %502 = vmatprep.subr.mxu0 0.0
    %503 = vmatpush1.msra.mxu0 0.0
    %504 = vmatprep.subr.mxu0 0.0
    %505 = vmatpush1.msra.mxu0 0.0
    %506 = vmatprep.subr.mxu0 0.0
    %507 = vmatpush1.msra.mxu0 0.0
    %508 = vmatprep.subr.mxu0 0.0
    %509 = vmatpush1.msra.mxu0 0.0
    %510 = vmatprep.subr.mxu0 0.0
    %511 = vmatpush1.msra.mxu0 0.0
    %512 = vmatprep.subr.mxu0 0.0
    %513 = vmatpush1.msra.mxu0 0.0
    %514 = vmatprep.subr.mxu0 0.0
    %515 = vmatpush1.msra.mxu0 0.0
    %516 = vmatprep.subr.mxu0 0.0
    %517 = vmatpush1.msra.mxu0 0.0
    %518 = vmatprep.subr.mxu0 0.0
    %519 = vmatpush1.msra.mxu0 0.0
    %520 = vmatprep.subr.mxu0 0.0
    %521 = vmatpush1.msra.mxu0 0.0
    %522 = vmatprep.subr.mxu0 0.0
    %523 = vmatpush1.msra.mxu0 0.0
    %524 = vmatprep.subr.mxu0 0.0
    %525 = vmatpush1.msra.mxu0 0.0
    %526 = vmatprep.subr.mxu0 0.0
    %527 = vmatpush1.msra.mxu0 0.0
    %528 = vmatprep.subr.mxu0 0.0
    %529 = vmatpush1.msra.mxu0 0.0
    %530 = vmatprep.subr.mxu0 0.0
    %531 = vmatpush1.msra.mxu0 0.0
    %532 = vmatprep.mubr.f32.mxu0 0.0
    %533 = vmatmul.mubr.f32.gmra.mrb[0].mxu0 %v386
    %v534 = vpop.f32.mrb[0].mxu0
    %v535 = vadd.f32 0.0, %v534
    %v536 = vpop.f32.mrb[0].mxu0
    %537 = vmatprep.mubr.f32.mxu0 0.0
    %538 = vmatmul.mubr.f32.gmra.mrb[0].mxu0 %v389
    %v539 = vpop.f32.mrb[0].mxu0
    %v540 = vadd.f32 0.0, %v539
    %v541 = vpop.f32.mrb[0].mxu0
    %542 = vdwg.mxu0
    %v543 = vmax.f32 %v136, %v297
    %v544 = vmax.f32 %v138, %v299
    %v545 = vmax.f32 %v213, %v374
    %v546 = vmax.f32 %v142, %v303
    %v547 = vmax.f32 %v144, %v305
    %v548 = vmax.f32 %v218, %v379
    %v549 = vmax.f32 %v543, %v458
    %v550 = vmax.f32 %v544, %v460
    %v551 = vmax.f32 %v545, %v535
    %v552 = vmax.f32 %v546, %v464
    %v553 = vmax.f32 %v547, %v466
    %v554 = vmax.f32 %v548, %v540
    %v555 = vld [vmem:[%s4] sm:$0xff]
    %v556 = vld [vmem:[%s4 + $0x8] sm:$0xff]
    %v557 = vld [vmem:[%s4 + $0x10] sm:$0xff]
    %v558 = vld [vmem:[%s4 + $0x18] sm:$0xff]
    %v559 = vld [vmem:[%s4 + $0x20] sm:$0xff]
    %v560 = vld [vmem:[%s4 + $0x28] sm:$0xff]
    %v561 = vld [vmem:[%s4 + $0x30] sm:$0xff]
    %v562 = vld [vmem:[%s4 + $0x38] sm:$0xff]
    %v563 = vld [vmem:[%s4 + $0x40] sm:$0xff]
    %v564 = vld [vmem:[%s4 + $0x48] sm:$0xff]
    %v565 = vld [vmem:[%s4 + $0x50] sm:$0xff]
    %v566 = vld [vmem:[%s4 + $0x58] sm:$0xff]
    %v567 = vld [vmem:[%s4 + $0x60] sm:$0xff]
    %v568 = vld [vmem:[%s4 + $0x68] sm:$0xff]
    %v569 = vld [vmem:[%s4 + $0x70] sm:$0xff]
    %v570 = vld [vmem:[%s4 + $0x78] sm:$0xff]
    %v571 = vld [vmem:[%s4 + $0x80] sm:$0xff]
    %v572 = vld [vmem:[%s4 + $0x88] sm:$0xff]
    %v573 = vld [vmem:[%s4 + $0x90] sm:$0xff]
    %v574 = vld [vmem:[%s4 + $0x98] sm:$0xff]
    %v575 = vld [vmem:[%s4 + $0xa0] sm:$0xff]
    %v576 = vld [vmem:[%s4 + $0xa8] sm:$0xff]
    %v577 = vld [vmem:[%s4 + $0xb0] sm:$0xff]
    %v578 = vld [vmem:[%s4 + $0xb8] sm:$0xff]
    %v579 = vld [vmem:[%s4 + $0xc0] sm:$0xff]
    %v580 = vld [vmem:[%s4 + $0xc8] sm:$0xff]
    %v581 = vld [vmem:[%s4 + $0xd0] sm:$0xff]
    %v582 = vld [vmem:[%s4 + $0xd8] sm:$0xff]
    %v583 = vld [vmem:[%s4 + $0xe0] sm:$0xff]
    %v584 = vld [vmem:[%s4 + $0xe8] sm:$0xff]
    %v585 = vld [vmem:[%s4 + $0xf0] sm:$0xff]
    %v586 = vld [vmem:[%s4 + $0xf8] sm:$0xff]
    %v587 = vld [vmem:[%s4 + $0x100] sm:$0xff]
    %v588 = vld [vmem:[%s4 + $0x108] sm:$0xff]
    %v589 = vld [vmem:[%s4 + $0x110] sm:$0xff]
    %v590 = vld [vmem:[%s4 + $0x118] sm:$0xff]
    %v591 = vld [vmem:[%s4 + $0x120] sm:$0xff]
    %v592 = vld [vmem:[%s4 + $0x128] sm:$0xff]
    %v593 = vld [vmem:[%s4 + $0x130] sm:$0xff]
    %v594 = vld [vmem:[%s4 + $0x138] sm:$0xff]
    %v595 = vld [vmem:[%s4 + $0x140] sm:$0xff]
    %v596 = vld [vmem:[%s4 + $0x148] sm:$0xff]
    %v597 = vld [vmem:[%s4 + $0x150] sm:$0xff]
    %v598 = vld [vmem:[%s4 + $0x158] sm:$0xff]
    %v599 = vld [vmem:[%s4 + $0x160] sm:$0xff]
    %v600 = vld [vmem:[%s4 + $0x168] sm:$0xff]
    %v601 = vld [vmem:[%s4 + $0x170] sm:$0xff]
    %v602 = vld [vmem:[%s4 + $0x178] sm:$0xff]
    %v603 = vld [vmem:[%s4 + $0x180] sm:$0xff]
    %v604 = vld [vmem:[%s4 + $0x188] sm:$0xff]
    %v605 = vld [vmem:[%s4 + $0x190] sm:$0xff]
    %v606 = vld [vmem:[%s4 + $0x198] sm:$0xff]
    %v607 = vld [vmem:[%s4 + $0x1a0] sm:$0xff]
    %v608 = vld [vmem:[%s4 + $0x1a8] sm:$0xff]
    %v609 = vld [vmem:[%s4 + $0x1b0] sm:$0xff]
    %v610 = vld [vmem:[%s4 + $0x1b8] sm:$0xff]
    %v611 = vld [vmem:[%s4 + $0x1c0] sm:$0xff]
    %v612 = vld [vmem:[%s4 + $0x1c8] sm:$0xff]
    %v613 = vld [vmem:[%s4 + $0x1d0] sm:$0xff]
    %v614 = vld [vmem:[%s4 + $0x1d8] sm:$0xff]
    %v615 = vld [vmem:[%s4 + $0x1e0] sm:$0xff]
    %v616 = vld [vmem:[%s4 + $0x1e8] sm:$0xff]
    %v617 = vld [vmem:[%s4 + $0x1f0] sm:$0xff]
    %v618 = vld [vmem:[%s4 + $0x1f8] sm:$0xff]
    %v619 = vld [vmem:[%s4 + $0x200] sm:$0xff]
    %v620 = vld [vmem:[%s4 + $0x208] sm:$0xff]
    %v621 = vld [vmem:[%s4 + $0x210] sm:$0xff]
    %v622 = vld [vmem:[%s4 + $0x218] sm:$0xff]
    %v623 = vld [vmem:[%s4 + $0x220] sm:$0xff]
    %v624 = vld [vmem:[%s4 + $0x228] sm:$0xff]
    %v625 = vld [vmem:[%s4 + $0x230] sm:$0xff]
    %v626 = vld [vmem:[%s4 + $0x238] sm:$0xff]
    %v627 = vld [vmem:[%s4 + $0x240] sm:$0xff]
    %v628 = vld [vmem:[%s4 + $0x248] sm:$0xff]
    %v629 = vld [vmem:[%s4 + $0x250] sm:$0xff]
    %v630 = vld [vmem:[%s4 + $0x258] sm:$0xff]
    %v631 = vld [vmem:[%s4 + $0x260] sm:$0xff]
    %v632 = vld [vmem:[%s4 + $0x268] sm:$0xff]
    %v633 = vld [vmem:[%s4 + $0x270] sm:$0xff]
    %v634 = vld [vmem:[%s4 + $0x278] sm:$0xff]
    %v635 = vld [vmem:[%s4 + $0x280] sm:$0xff]
    %v636 = vld [vmem:[%s4 + $0x288] sm:$0xff]
    %v637 = vld [vmem:[%s4 + $0x290] sm:$0xff]
    %v638 = vld [vmem:[%s4 + $0x298] sm:$0xff]
    %v639 = vld [vmem:[%s4 + $0x2a0] sm:$0xff]
    %v640 = vld [vmem:[%s4 + $0x2a8] sm:$0xff]
    %v641 = vld [vmem:[%s4 + $0x2b0] sm:$0xff]
    %v642 = vld [vmem:[%s4 + $0x2b8] sm:$0xff]
    %v643 = vld [vmem:[%s4 + $0x2c0] sm:$0xff]
    %v644 = vld [vmem:[%s4 + $0x2c8] sm:$0xff]
    %v645 = vld [vmem:[%s4 + $0x2d0] sm:$0xff]
    %v646 = vld [vmem:[%s4 + $0x2d8] sm:$0xff]
    %v647 = vld [vmem:[%s4 + $0x2e0] sm:$0xff]
    %v648 = vld [vmem:[%s4 + $0x2e8] sm:$0xff]
    %v649 = vld [vmem:[%s4 + $0x2f0] sm:$0xff]
    %v650 = vld [vmem:[%s4 + $0x2f8] sm:$0xff]
    %v651 = vld [vmem:[%s4 + $0x300] sm:$0xff]
    %v652 = vld [vmem:[%s4 + $0x308] sm:$0xff]
    %v653 = vld [vmem:[%s4 + $0x310] sm:$0xff]
    %v654 = vld [vmem:[%s4 + $0x318] sm:$0xff]
    %v655 = vld [vmem:[%s4 + $0x320] sm:$0xff]
    %v656 = vld [vmem:[%s4 + $0x328] sm:$0xff]
    %v657 = vld [vmem:[%s4 + $0x330] sm:$0xff]
    %v658 = vld [vmem:[%s4 + $0x338] sm:$0xff]
    %v659 = vld [vmem:[%s4 + $0x340] sm:$0xff]
    %v660 = vld [vmem:[%s4 + $0x348] sm:$0xff]
    %v661 = vld [vmem:[%s4 + $0x350] sm:$0xff]
    %v662 = vld [vmem:[%s4 + $0x358] sm:$0xff]
    %v663 = vld [vmem:[%s4 + $0x360] sm:$0xff]
    %v664 = vld [vmem:[%s4 + $0x368] sm:$0xff]
    %v665 = vld [vmem:[%s4 + $0x370] sm:$0xff]
    %v666 = vld [vmem:[%s4 + $0x378] sm:$0xff]
    %v667 = vld [vmem:[%s4 + $0x380] sm:$0xff]
    %v668 = vld [vmem:[%s4 + $0x388] sm:$0xff]
    %v669 = vld [vmem:[%s4 + $0x390] sm:$0xff]
    %v670 = vld [vmem:[%s4 + $0x398] sm:$0xff]
    %v671 = vld [vmem:[%s4 + $0x3a0] sm:$0xff]
    %v672 = vld [vmem:[%s4 + $0x3a8] sm:$0xff]
    %v673 = vld [vmem:[%s4 + $0x3b0] sm:$0xff]
    %v674 = vld [vmem:[%s4 + $0x3b8] sm:$0xff]
    %v675 = vld [vmem:[%s4 + $0x3c0] sm:$0xff]
    %v676 = vld [vmem:[%s4 + $0x3c8] sm:$0xff]
    %v677 = vld [vmem:[%s4 + $0x3d0] sm:$0xff]
    %v678 = vld [vmem:[%s4 + $0x3d8] sm:$0xff]
    %v679 = vld [vmem:[%s4 + $0x3e0] sm:$0xff]
    %v680 = vld [vmem:[%s4 + $0x3e8] sm:$0xff]
    %v681 = vld [vmem:[%s4 + $0x3f0] sm:$0xff]
    %v682 = vld [vmem:[%s4 + $0x3f8] sm:$0xff]
    %v683 = vld [vmem:[%s4 + $0x400] sm:$0xff]
    %v684 = vld [vmem:[%s4 + $0x408] sm:$0xff]
    %v685 = vld [vmem:[%s4 + $0x410] sm:$0xff]
    %v686 = vld [vmem:[%s4 + $0x418] sm:$0xff]
    %v687 = vld [vmem:[%s4 + $0x420] sm:$0xff]
    %v688 = vld [vmem:[%s4 + $0x428] sm:$0xff]
    %v689 = vld [vmem:[%s4 + $0x430] sm:$0xff]
    %v690 = vld [vmem:[%s4 + $0x438] sm:$0xff]
    %v691 = vld [vmem:[%s4 + $0x440] sm:$0xff]
    %v692 = vld [vmem:[%s4 + $0x448] sm:$0xff]
    %v693 = vld [vmem:[%s4 + $0x450] sm:$0xff]
    %v694 = vld [vmem:[%s4 + $0x458] sm:$0xff]
    %v695 = vld [vmem:[%s4 + $0x460] sm:$0xff]
    %v696 = vld [vmem:[%s4 + $0x468] sm:$0xff]
    %v697 = vld [vmem:[%s4 + $0x470] sm:$0xff]
    %v698 = vld [vmem:[%s4 + $0x478] sm:$0xff]
    %s699 = scalar_lea.vmem %s4, 1152
    %v700 = vld [vmem:[%s699] sm:$0xff]
    %v701 = vld [vmem:[%s699 + $0x8] sm:$0xff]
    %v702 = vld [vmem:[%s699 + $0x10] sm:$0xff]
    %v703 = vld [vmem:[%s699 + $0x18] sm:$0xff]
    %v704 = vld [vmem:[%s699 + $0x20] sm:$0xff]
    %v705 = vld [vmem:[%s699 + $0x28] sm:$0xff]
    %v706 = vld [vmem:[%s699 + $0x30] sm:$0xff]
    %v707 = vld [vmem:[%s699 + $0x38] sm:$0xff]
    %v708 = vld [vmem:[%s699 + $0x40] sm:$0xff]
    %v709 = vld [vmem:[%s699 + $0x48] sm:$0xff]
    %v710 = vld [vmem:[%s699 + $0x50] sm:$0xff]
    %v711 = vld [vmem:[%s699 + $0x58] sm:$0xff]
    %v712 = vld [vmem:[%s699 + $0x60] sm:$0xff]
    %v713 = vld [vmem:[%s699 + $0x68] sm:$0xff]
    %v714 = vld [vmem:[%s699 + $0x70] sm:$0xff]
    %v715 = vld [vmem:[%s699 + $0x78] sm:$0xff]
    %v716 = vld [vmem:[%s699 + $0x80] sm:$0xff]
    %v717 = vld [vmem:[%s699 + $0x88] sm:$0xff]
    %v718 = vld [vmem:[%s699 + $0x90] sm:$0xff]
    %v719 = vld [vmem:[%s699 + $0x98] sm:$0xff]
    %v720 = vld [vmem:[%s699 + $0xa0] sm:$0xff]
    %v721 = vld [vmem:[%s699 + $0xa8] sm:$0xff]
    %v722 = vld [vmem:[%s699 + $0xb0] sm:$0xff]
    %v723 = vld [vmem:[%s699 + $0xb8] sm:$0xff]
    %v724 = vld [vmem:[%s699 + $0xc0] sm:$0xff]
    %v725 = vld [vmem:[%s699 + $0xc8] sm:$0xff]
    %v726 = vld [vmem:[%s699 + $0xd0] sm:$0xff]
    %v727 = vld [vmem:[%s699 + $0xd8] sm:$0xff]
    %v728 = vld [vmem:[%s699 + $0xe0] sm:$0xff]
    %v729 = vld [vmem:[%s699 + $0xe8] sm:$0xff]
    %v730 = vld [vmem:[%s699 + $0xf0] sm:$0xff]
    %v731 = vld [vmem:[%s699 + $0xf8] sm:$0xff]
    %v732 = vld [vmem:[%s699 + $0x100] sm:$0xff]
    %v733 = vld [vmem:[%s699 + $0x108] sm:$0xff]
    %v734 = vld [vmem:[%s699 + $0x110] sm:$0xff]
    %v735 = vld [vmem:[%s699 + $0x118] sm:$0xff]
    %v736 = vld [vmem:[%s699 + $0x120] sm:$0xff]
    %v737 = vld [vmem:[%s699 + $0x128] sm:$0xff]
    %v738 = vld [vmem:[%s699 + $0x130] sm:$0xff]
    %v739 = vld [vmem:[%s699 + $0x138] sm:$0xff]
    %v740 = vld [vmem:[%s699 + $0x140] sm:$0xff]
    %v741 = vld [vmem:[%s699 + $0x148] sm:$0xff]
    %v742 = vld [vmem:[%s699 + $0x150] sm:$0xff]
    %v743 = vld [vmem:[%s699 + $0x158] sm:$0xff]
    %v744 = vld [vmem:[%s699 + $0x160] sm:$0xff]
    %v745 = vld [vmem:[%s699 + $0x168] sm:$0xff]
    %v746 = vld [vmem:[%s699 + $0x170] sm:$0xff]
    %v747 = vld [vmem:[%s699 + $0x178] sm:$0xff]
    %v748 = vld [vmem:[%s699 + $0x180] sm:$0xff]
    %v749 = vld [vmem:[%s699 + $0x188] sm:$0xff]
    %v750 = vld [vmem:[%s699 + $0x190] sm:$0xff]
    %v751 = vld [vmem:[%s699 + $0x198] sm:$0xff]
    %v752 = vld [vmem:[%s699 + $0x1a0] sm:$0xff]
    %v753 = vld [vmem:[%s699 + $0x1a8] sm:$0xff]
    %v754 = vld [vmem:[%s699 + $0x1b0] sm:$0xff]
    %v755 = vld [vmem:[%s699 + $0x1b8] sm:$0xff]
    %v756 = vld [vmem:[%s699 + $0x1c0] sm:$0xff]
    %v757 = vld [vmem:[%s699 + $0x1c8] sm:$0xff]
    %v758 = vld [vmem:[%s699 + $0x1d0] sm:$0xff]
    %v759 = vld [vmem:[%s699 + $0x1d8] sm:$0xff]
    %v760 = vld [vmem:[%s699 + $0x1e0] sm:$0xff]
    %v761 = vld [vmem:[%s699 + $0x1e8] sm:$0xff]
    %v762 = vld [vmem:[%s699 + $0x1f0] sm:$0xff]
    %v763 = vld [vmem:[%s699 + $0x1f8] sm:$0xff]
    %v764 = vld [vmem:[%s699 + $0x200] sm:$0xff]
    %v765 = vld [vmem:[%s699 + $0x208] sm:$0xff]
    %v766 = vld [vmem:[%s699 + $0x210] sm:$0xff]
    %v767 = vld [vmem:[%s699 + $0x218] sm:$0xff]
    %v768 = vld [vmem:[%s699 + $0x220] sm:$0xff]
    %v769 = vld [vmem:[%s699 + $0x228] sm:$0xff]
    %v770 = vld [vmem:[%s699 + $0x230] sm:$0xff]
    %v771 = vld [vmem:[%s699 + $0x238] sm:$0xff]
    %v772 = vld [vmem:[%s699 + $0x240] sm:$0xff]
    %v773 = vld [vmem:[%s699 + $0x248] sm:$0xff]
    %v774 = vld [vmem:[%s699 + $0x250] sm:$0xff]
    %v775 = vld [vmem:[%s699 + $0x258] sm:$0xff]
    %v776 = vld [vmem:[%s699 + $0x260] sm:$0xff]
    %v777 = vld [vmem:[%s699 + $0x268] sm:$0xff]
    %v778 = vld [vmem:[%s699 + $0x270] sm:$0xff]
    %v779 = vld [vmem:[%s699 + $0x278] sm:$0xff]
    %v780 = vld [vmem:[%s699 + $0x280] sm:$0xff]
    %v781 = vld [vmem:[%s699 + $0x288] sm:$0xff]
    %v782 = vld [vmem:[%s699 + $0x290] sm:$0xff]
    %v783 = vld [vmem:[%s699 + $0x298] sm:$0xff]
    %v784 = vld [vmem:[%s699 + $0x2a0] sm:$0xff]
    %v785 = vld [vmem:[%s699 + $0x2a8] sm:$0xff]
    %v786 = vld [vmem:[%s699 + $0x2b0] sm:$0xff]
    %v787 = vld [vmem:[%s699 + $0x2b8] sm:$0xff]
    %v788 = vld [vmem:[%s699 + $0x2c0] sm:$0xff]
    %v789 = vld [vmem:[%s699 + $0x2c8] sm:$0xff]
    %v790 = vld [vmem:[%s699 + $0x2d0] sm:$0xff]
    %v791 = vld [vmem:[%s699 + $0x2d8] sm:$0xff]
    %v792 = vld [vmem:[%s699 + $0x2e0] sm:$0xff]
    %v793 = vld [vmem:[%s699 + $0x2e8] sm:$0xff]
    %v794 = vld [vmem:[%s699 + $0x2f0] sm:$0xff]
    %v795 = vld [vmem:[%s699 + $0x2f8] sm:$0xff]
    %v796 = vld [vmem:[%s699 + $0x300] sm:$0xff]
    %v797 = vld [vmem:[%s699 + $0x308] sm:$0xff]
    %v798 = vld [vmem:[%s699 + $0x310] sm:$0xff]
    %v799 = vld [vmem:[%s699 + $0x318] sm:$0xff]
    %v800 = vld [vmem:[%s699 + $0x320] sm:$0xff]
    %v801 = vld [vmem:[%s699 + $0x328] sm:$0xff]
    %v802 = vld [vmem:[%s699 + $0x330] sm:$0xff]
    %v803 = vld [vmem:[%s699 + $0x338] sm:$0xff]
    %v804 = vld [vmem:[%s699 + $0x340] sm:$0xff]
    %v805 = vld [vmem:[%s699 + $0x348] sm:$0xff]
    %v806 = vld [vmem:[%s699 + $0x350] sm:$0xff]
    %v807 = vld [vmem:[%s699 + $0x358] sm:$0xff]
    %v808 = vld [vmem:[%s699 + $0x360] sm:$0xff]
    %v809 = vld [vmem:[%s699 + $0x368] sm:$0xff]
    %v810 = vld [vmem:[%s699 + $0x370] sm:$0xff]
    %v811 = vld [vmem:[%s699 + $0x378] sm:$0xff]
    %v812 = vld [vmem:[%s699 + $0x380] sm:$0xff]
    %v813 = vld [vmem:[%s699 + $0x388] sm:$0xff]
    %v814 = vld [vmem:[%s699 + $0x390] sm:$0xff]
    %v815 = vld [vmem:[%s699 + $0x398] sm:$0xff]
    %v816 = vld [vmem:[%s699 + $0x3a0] sm:$0xff]
    %v817 = vld [vmem:[%s699 + $0x3a8] sm:$0xff]
    %v818 = vld [vmem:[%s699 + $0x3b0] sm:$0xff]
    %v819 = vld [vmem:[%s699 + $0x3b8] sm:$0xff]
    %v820 = vld [vmem:[%s699 + $0x3c0] sm:$0xff]
    %v821 = vld [vmem:[%s699 + $0x3c8] sm:$0xff]
    %v822 = vld [vmem:[%s699 + $0x3d0] sm:$0xff]
    %v823 = vld [vmem:[%s699 + $0x3d8] sm:$0xff]
    %v824 = vld [vmem:[%s699 + $0x3e0] sm:$0xff]
    %v825 = vld [vmem:[%s699 + $0x3e8] sm:$0xff]
    %v826 = vld [vmem:[%s699 + $0x3f0] sm:$0xff]
    %v827 = vld [vmem:[%s699 + $0x3f8] sm:$0xff]
    %v828 = vld [vmem:[%s699 + $0x400] sm:$0xff]
    %v829 = vld [vmem:[%s699 + $0x408] sm:$0xff]
    %v830 = vld [vmem:[%s699 + $0x410] sm:$0xff]
    %v831 = vld [vmem:[%s699 + $0x418] sm:$0xff]
    %v832 = vld [vmem:[%s699 + $0x420] sm:$0xff]
    %v833 = vld [vmem:[%s699 + $0x428] sm:$0xff]
    %v834 = vld [vmem:[%s699 + $0x430] sm:$0xff]
    %v835 = vld [vmem:[%s699 + $0x438] sm:$0xff]
    %v836 = vld [vmem:[%s699 + $0x440] sm:$0xff]
    %v837 = vld [vmem:[%s699 + $0x448] sm:$0xff]
    %v838 = vld [vmem:[%s699 + $0x450] sm:$0xff]
    %v839 = vld [vmem:[%s699 + $0x458] sm:$0xff]
    %v840 = vld [vmem:[%s699 + $0x460] sm:$0xff]
    %v841 = vld [vmem:[%s699 + $0x468] sm:$0xff]
    %v842 = vld [vmem:[%s699 + $0x470] sm:$0xff]
    %v843 = vld [vmem:[%s699 + $0x478] sm:$0xff]
    %844 = vmatprep.subr.mxu0 %v701
    %845 = vmatpush1.msra.mxu0 %v700
    %846 = vmatprep.subr.mxu0 %v704
    %847 = vmatpush1.msra.mxu0 %v703
    %848 = vmatprep.subr.mxu0 %v707
    %849 = vmatpush1.msra.mxu0 %v706
    %850 = vmatprep.subr.mxu0 %v710
    %851 = vmatpush1.msra.mxu0 %v709
    %852 = vmatprep.subr.mxu0 %v713
    %853 = vmatpush1.msra.mxu0 %v712
    %854 = vmatprep.subr.mxu0 %v716
    %855 = vmatpush1.msra.mxu0 %v715
    %856 = vmatprep.subr.mxu0 %v719
    %857 = vmatpush1.msra.mxu0 %v718
    %858 = vmatprep.subr.mxu0 %v722
    %859 = vmatpush1.msra.mxu0 %v721
    %860 = vmatprep.subr.mxu0 %v725
    %861 = vmatpush1.msra.mxu0 %v724
    %862 = vmatprep.subr.mxu0 %v728
    %863 = vmatpush1.msra.mxu0 %v727
    %864 = vmatprep.subr.mxu0 %v731
    %865 = vmatpush1.msra.mxu0 %v730
    %866 = vmatprep.subr.mxu0 %v734
    %867 = vmatpush1.msra.mxu0 %v733
    %868 = vmatprep.subr.mxu0 %v737
    %869 = vmatpush1.msra.mxu0 %v736
    %870 = vmatprep.subr.mxu0 %v740
    %871 = vmatpush1.msra.mxu0 %v739
    %872 = vmatprep.subr.mxu0 %v743
    %873 = vmatpush1.msra.mxu0 %v742
    %874 = vmatprep.subr.mxu0 %v746
    %875 = vmatpush1.msra.mxu0 %v745
    %876 = vmatprep.subr.mxu0 %v749
    %877 = vmatpush1.msra.mxu0 %v748
    %878 = vmatprep.subr.mxu0 %v752
    %879 = vmatpush1.msra.mxu0 %v751
    %880 = vmatprep.subr.mxu0 %v755
    %881 = vmatpush1.msra.mxu0 %v754
    %882 = vmatprep.subr.mxu0 %v758
    %883 = vmatpush1.msra.mxu0 %v757
    %884 = vmatprep.subr.mxu0 %v761
    %885 = vmatpush1.msra.mxu0 %v760
    %886 = vmatprep.subr.mxu0 %v764
    %887 = vmatpush1.msra.mxu0 %v763
    %888 = vmatprep.subr.mxu0 %v767
    %889 = vmatpush1.msra.mxu0 %v766
    %890 = vmatprep.subr.mxu0 %v770
    %891 = vmatpush1.msra.mxu0 %v769
    %892 = vmatprep.subr.mxu0 %v773
    %893 = vmatpush1.msra.mxu0 %v772
    %894 = vmatprep.subr.mxu0 %v776
    %895 = vmatpush1.msra.mxu0 %v775
    %896 = vmatprep.subr.mxu0 %v779
    %897 = vmatpush1.msra.mxu0 %v778
    %898 = vmatprep.subr.mxu0 %v782
    %899 = vmatpush1.msra.mxu0 %v781
    %900 = vmatprep.subr.mxu0 %v785
    %901 = vmatpush1.msra.mxu0 %v784
    %902 = vmatprep.subr.mxu0 %v788
    %903 = vmatpush1.msra.mxu0 %v787
    %904 = vmatprep.subr.mxu0 %v791
    %905 = vmatpush1.msra.mxu0 %v790
    %906 = vmatprep.subr.mxu0 %v794
    %907 = vmatpush1.msra.mxu0 %v793
    %908 = vmatprep.mubr.f32.mxu0 %v299
    %909 = vmatmul.mubr.f32.gmra.mrb[0].mxu0 %v297
    %v910 = vpop.f32.mrb[0].mxu0
    %v911 = vadd.f32 0.0, %v910
    %v912 = vpop.f32.mrb[0].mxu0
    %v913 = vadd.f32 0.0, %v912
    %914 = vmatprep.mubr.f32.mxu0 %v305
    %915 = vmatmul.mubr.f32.gmra.mrb[0].mxu0 %v303
    %v916 = vpop.f32.mrb[0].mxu0
    %v917 = vadd.f32 0.0, %v916
    %v918 = vpop.f32.mrb[0].mxu0
    %v919 = vadd.f32 0.0, %v918
    %920 = vdwg.mxu0
    %921 = vmatprep.subr.mxu0 %v797
    %922 = vmatpush1.msra.mxu0 %v796
    %923 = vmatprep.subr.mxu0 %v800
    %924 = vmatpush1.msra.mxu0 %v799
    %925 = vmatprep.subr.mxu0 %v803
    %926 = vmatpush1.msra.mxu0 %v802
    %927 = vmatprep.subr.mxu0 %v806
    %928 = vmatpush1.msra.mxu0 %v805
    %929 = vmatprep.subr.mxu0 %v809
    %930 = vmatpush1.msra.mxu0 %v808
    %931 = vmatprep.subr.mxu0 %v812
    %932 = vmatpush1.msra.mxu0 %v811
    %933 = vmatprep.subr.mxu0 %v815
    %934 = vmatpush1.msra.mxu0 %v814
    %935 = vmatprep.subr.mxu0 %v818
    %936 = vmatpush1.msra.mxu0 %v817
    %937 = vmatprep.subr.mxu0 %v821
    %938 = vmatpush1.msra.mxu0 %v820
    %939 = vmatprep.subr.mxu0 %v824
    %940 = vmatpush1.msra.mxu0 %v823
    %941 = vmatprep.subr.mxu0 %v827
    %942 = vmatpush1.msra.mxu0 %v826
    %943 = vmatprep.subr.mxu0 %v830
    %944 = vmatpush1.msra.mxu0 %v829
    %945 = vmatprep.subr.mxu0 %v833
    %946 = vmatpush1.msra.mxu0 %v832
    %947 = vmatprep.subr.mxu0 %v836
    %948 = vmatpush1.msra.mxu0 %v835
    %949 = vmatprep.subr.mxu0 %v839
    %950 = vmatpush1.msra.mxu0 %v838
    %951 = vmatprep.subr.mxu0 %v842
    %952 = vmatpush1.msra.mxu0 %v841
    %953 = vmatprep.subr.mxu0 0.0
    %954 = vmatpush1.msra.mxu0 0.0
    %955 = vmatprep.subr.mxu0 0.0
    %956 = vmatpush1.msra.mxu0 0.0
    %957 = vmatprep.subr.mxu0 0.0
    %958 = vmatpush1.msra.mxu0 0.0
    %959 = vmatprep.subr.mxu0 0.0
    %960 = vmatpush1.msra.mxu0 0.0
    %961 = vmatprep.subr.mxu0 0.0
    %962 = vmatpush1.msra.mxu0 0.0
    %963 = vmatprep.subr.mxu0 0.0
    %964 = vmatpush1.msra.mxu0 0.0
    %965 = vmatprep.subr.mxu0 0.0
    %966 = vmatpush1.msra.mxu0 0.0
    %967 = vmatprep.subr.mxu0 0.0
    %968 = vmatpush1.msra.mxu0 0.0
    %969 = vmatprep.subr.mxu0 0.0
    %970 = vmatpush1.msra.mxu0 0.0
    %971 = vmatprep.subr.mxu0 0.0
    %972 = vmatpush1.msra.mxu0 0.0
    %973 = vmatprep.subr.mxu0 0.0
    %974 = vmatpush1.msra.mxu0 0.0
    %975 = vmatprep.subr.mxu0 0.0
    %976 = vmatpush1.msra.mxu0 0.0
    %977 = vmatprep.subr.mxu0 0.0
    %978 = vmatpush1.msra.mxu0 0.0
    %979 = vmatprep.subr.mxu0 0.0
    %980 = vmatpush1.msra.mxu0 0.0
    %981 = vmatprep.subr.mxu0 0.0
    %982 = vmatpush1.msra.mxu0 0.0
    %983 = vmatprep.subr.mxu0 0.0
    %984 = vmatpush1.msra.mxu0 0.0
    %985 = vmatprep.mubr.f32.mxu0 0.0
    %986 = vmatmul.mubr.f32.gmra.mrb[0].mxu0 %v374
    %v987 = vpop.f32.mrb[0].mxu0
    %v988 = vadd.f32 %v911, %v987
    %v989 = vpop.f32.mrb[0].mxu0
    %v990 = vadd.f32 %v913, %v989
    %991 = vmatprep.mubr.f32.mxu0 0.0
    %992 = vmatmul.mubr.f32.gmra.mrb[0].mxu0 %v379
    %v993 = vpop.f32.mrb[0].mxu0
    %v994 = vadd.f32 %v917, %v993
    %v995 = vpop.f32.mrb[0].mxu0
    %v996 = vadd.f32 %v919, %v995
    %997 = vdwg.mxu0
    %998 = vmatprep.subr.mxu0 0.0
    %999 = vmatpush1.msra.mxu0 %v702
    %1000 = vmatprep.subr.mxu0 0.0
    %1001 = vmatpush1.msra.mxu0 %v705
    %1002 = vmatprep.subr.mxu0 0.0
    %1003 = vmatpush1.msra.mxu0 %v708
    %1004 = vmatprep.subr.mxu0 0.0
    %1005 = vmatpush1.msra.mxu0 %v711
    %1006 = vmatprep.subr.mxu0 0.0
    %1007 = vmatpush1.msra.mxu0 %v714
    %1008 = vmatprep.subr.mxu0 0.0
    %1009 = vmatpush1.msra.mxu0 %v717
    %1010 = vmatprep.subr.mxu0 0.0
    %1011 = vmatpush1.msra.mxu0 %v720
    %1012 = vmatprep.subr.mxu0 0.0
    %1013 = vmatpush1.msra.mxu0 %v723
    %1014 = vmatprep.subr.mxu0 0.0
    %1015 = vmatpush1.msra.mxu0 %v726
    %1016 = vmatprep.subr.mxu0 0.0
    %1017 = vmatpush1.msra.mxu0 %v729
    %1018 = vmatprep.subr.mxu0 0.0
    %1019 = vmatpush1.msra.mxu0 %v732
    %1020 = vmatprep.subr.mxu0 0.0
    %1021 = vmatpush1.msra.mxu0 %v735
    %1022 = vmatprep.subr.mxu0 0.0
    %1023 = vmatpush1.msra.mxu0 %v738
    %1024 = vmatprep.subr.mxu0 0.0
    %1025 = vmatpush1.msra.mxu0 %v741
    %1026 = vmatprep.subr.mxu0 0.0
    %1027 = vmatpush1.msra.mxu0 %v744
    %1028 = vmatprep.subr.mxu0 0.0
    %1029 = vmatpush1.msra.mxu0 %v747
    %1030 = vmatprep.subr.mxu0 0.0
    %1031 = vmatpush1.msra.mxu0 %v750
    %1032 = vmatprep.subr.mxu0 0.0
    %1033 = vmatpush1.msra.mxu0 %v753
    %1034 = vmatprep.subr.mxu0 0.0
    %1035 = vmatpush1.msra.mxu0 %v756
    %1036 = vmatprep.subr.mxu0 0.0
    %1037 = vmatpush1.msra.mxu0 %v759
    %1038 = vmatprep.subr.mxu0 0.0
    %1039 = vmatpush1.msra.mxu0 %v762
    %1040 = vmatprep.subr.mxu0 0.0
    %1041 = vmatpush1.msra.mxu0 %v765
    %1042 = vmatprep.subr.mxu0 0.0
    %1043 = vmatpush1.msra.mxu0 %v768
    %1044 = vmatprep.subr.mxu0 0.0
    %1045 = vmatpush1.msra.mxu0 %v771
    %1046 = vmatprep.subr.mxu0 0.0
    %1047 = vmatpush1.msra.mxu0 %v774
    %1048 = vmatprep.subr.mxu0 0.0
    %1049 = vmatpush1.msra.mxu0 %v777
    %1050 = vmatprep.subr.mxu0 0.0
    %1051 = vmatpush1.msra.mxu0 %v780
    %1052 = vmatprep.subr.mxu0 0.0
    %1053 = vmatpush1.msra.mxu0 %v783
    %1054 = vmatprep.subr.mxu0 0.0
    %1055 = vmatpush1.msra.mxu0 %v786
    %1056 = vmatprep.subr.mxu0 0.0
    %1057 = vmatpush1.msra.mxu0 %v789
    %1058 = vmatprep.subr.mxu0 0.0
    %1059 = vmatpush1.msra.mxu0 %v792
    %1060 = vmatprep.subr.mxu0 0.0
    %1061 = vmatpush1.msra.mxu0 %v795
    %1062 = vmatprep.mubr.f32.mxu0 %v299
    %1063 = vmatmul.mubr.f32.gmra.mrb[0].mxu0 %v297
    %v1064 = vpop.f32.mrb[0].mxu0
    %v1065 = vadd.f32 0.0, %v1064
    %v1066 = vpop.f32.mrb[0].mxu0
    %1067 = vmatprep.mubr.f32.mxu0 %v305
    %1068 = vmatmul.mubr.f32.gmra.mrb[0].mxu0 %v303
    %v1069 = vpop.f32.mrb[0].mxu0
    %v1070 = vadd.f32 0.0, %v1069
    %v1071 = vpop.f32.mrb[0].mxu0
    %1072 = vdwg.mxu0
    %1073 = vmatprep.subr.mxu0 0.0
    %1074 = vmatpush1.msra.mxu0 %v798
    %1075 = vmatprep.subr.mxu0 0.0
    %1076 = vmatpush1.msra.mxu0 %v801
    %1077 = vmatprep.subr.mxu0 0.0
    %1078 = vmatpush1.msra.mxu0 %v804
    %1079 = vmatprep.subr.mxu0 0.0
    %1080 = vmatpush1.msra.mxu0 %v807
    %1081 = vmatprep.subr.mxu0 0.0
    %1082 = vmatpush1.msra.mxu0 %v810
    %1083 = vmatprep.subr.mxu0 0.0
    %1084 = vmatpush1.msra.mxu0 %v813
    %1085 = vmatprep.subr.mxu0 0.0
    %1086 = vmatpush1.msra.mxu0 %v816
    %1087 = vmatprep.subr.mxu0 0.0
    %1088 = vmatpush1.msra.mxu0 %v819
    %1089 = vmatprep.subr.mxu0 0.0
    %1090 = vmatpush1.msra.mxu0 %v822
    %1091 = vmatprep.subr.mxu0 0.0
    %1092 = vmatpush1.msra.mxu0 %v825
    %1093 = vmatprep.subr.mxu0 0.0
    %1094 = vmatpush1.msra.mxu0 %v828
    %1095 = vmatprep.subr.mxu0 0.0
    %1096 = vmatpush1.msra.mxu0 %v831
    %1097 = vmatprep.subr.mxu0 0.0
    %1098 = vmatpush1.msra.mxu0 %v834
    %1099 = vmatprep.subr.mxu0 0.0
    %1100 = vmatpush1.msra.mxu0 %v837
    %1101 = vmatprep.subr.mxu0 0.0
    %1102 = vmatpush1.msra.mxu0 %v840
    %1103 = vmatprep.subr.mxu0 0.0
    %1104 = vmatpush1.msra.mxu0 %v843
    %1105 = vmatprep.subr.mxu0 0.0
    %1106 = vmatpush1.msra.mxu0 0.0
    %1107 = vmatprep.subr.mxu0 0.0
    %1108 = vmatpush1.msra.mxu0 0.0
    %1109 = vmatprep.subr.mxu0 0.0
    %1110 = vmatpush1.msra.mxu0 0.0
    %1111 = vmatprep.subr.mxu0 0.0
    %1112 = vmatpush1.msra.mxu0 0.0
    %1113 = vmatprep.subr.mxu0 0.0
    %1114 = vmatpush1.msra.mxu0 0.0
    %1115 = vmatprep.subr.mxu0 0.0
    %1116 = vmatpush1.msra.mxu0 0.0
    %1117 = vmatprep.subr.mxu0 0.0
    %1118 = vmatpush1.msra.mxu0 0.0
    %1119 = vmatprep.subr.mxu0 0.0
    %1120 = vmatpush1.msra.mxu0 0.0
    %1121 = vmatprep.subr.mxu0 0.0
    %1122 = vmatpush1.msra.mxu0 0.0
    %1123 = vmatprep.subr.mxu0 0.0
    %1124 = vmatpush1.msra.mxu0 0.0
    %1125 = vmatprep.subr.mxu0 0.0
    %1126 = vmatpush1.msra.mxu0 0.0
    %1127 = vmatprep.subr.mxu0 0.0
    %1128 = vmatpush1.msra.mxu0 0.0
    %1129 = vmatprep.subr.mxu0 0.0
    %1130 = vmatpush1.msra.mxu0 0.0
    %1131 = vmatprep.subr.mxu0 0.0
    %1132 = vmatpush1.msra.mxu0 0.0
    %1133 = vmatprep.subr.mxu0 0.0
    %1134 = vmatpush1.msra.mxu0 0.0
    %1135 = vmatprep.subr.mxu0 0.0
    %1136 = vmatpush1.msra.mxu0 0.0
    %1137 = vmatprep.mubr.f32.mxu0 0.0
    %1138 = vmatmul.mubr.f32.gmra.mrb[0].mxu0 %v374
    %v1139 = vpop.f32.mrb[0].mxu0
    %v1140 = vadd.f32 %v1065, %v1139
    %v1141 = vpop.f32.mrb[0].mxu0
    %1142 = vmatprep.mubr.f32.mxu0 0.0
    %1143 = vmatmul.mubr.f32.gmra.mrb[0].mxu0 %v379
    %v1144 = vpop.f32.mrb[0].mxu0
    %v1145 = vadd.f32 %v1070, %v1144
    %v1146 = vpop.f32.mrb[0].mxu0
    %1147 = vdwg.mxu0
    %1148 = vmatprep.subr.mxu0 %v556
    %1149 = vmatpush1.msra.mxu0 %v555
    %1150 = vmatprep.subr.mxu0 %v559
    %1151 = vmatpush1.msra.mxu0 %v558
    %1152 = vmatprep.subr.mxu0 %v562
    %1153 = vmatpush1.msra.mxu0 %v561
    %1154 = vmatprep.subr.mxu0 %v565
    %1155 = vmatpush1.msra.mxu0 %v564
    %1156 = vmatprep.subr.mxu0 %v568
    %1157 = vmatpush1.msra.mxu0 %v567
    %1158 = vmatprep.subr.mxu0 %v571
    %1159 = vmatpush1.msra.mxu0 %v570
    %1160 = vmatprep.subr.mxu0 %v574
    %1161 = vmatpush1.msra.mxu0 %v573
    %1162 = vmatprep.subr.mxu0 %v577
    %1163 = vmatpush1.msra.mxu0 %v576
    %1164 = vmatprep.subr.mxu0 %v580
    %1165 = vmatpush1.msra.mxu0 %v579
    %1166 = vmatprep.subr.mxu0 %v583
    %1167 = vmatpush1.msra.mxu0 %v582
    %1168 = vmatprep.subr.mxu0 %v586
    %1169 = vmatpush1.msra.mxu0 %v585
    %1170 = vmatprep.subr.mxu0 %v589
    %1171 = vmatpush1.msra.mxu0 %v588
    %1172 = vmatprep.subr.mxu0 %v592
    %1173 = vmatpush1.msra.mxu0 %v591
    %1174 = vmatprep.subr.mxu0 %v595
    %1175 = vmatpush1.msra.mxu0 %v594
    %1176 = vmatprep.subr.mxu0 %v598
    %1177 = vmatpush1.msra.mxu0 %v597
    %1178 = vmatprep.subr.mxu0 %v601
    %1179 = vmatpush1.msra.mxu0 %v600
    %1180 = vmatprep.subr.mxu0 %v604
    %1181 = vmatpush1.msra.mxu0 %v603
    %1182 = vmatprep.subr.mxu0 %v607
    %1183 = vmatpush1.msra.mxu0 %v606
    %1184 = vmatprep.subr.mxu0 %v610
    %1185 = vmatpush1.msra.mxu0 %v609
    %1186 = vmatprep.subr.mxu0 %v613
    %1187 = vmatpush1.msra.mxu0 %v612
    %1188 = vmatprep.subr.mxu0 %v616
    %1189 = vmatpush1.msra.mxu0 %v615
    %1190 = vmatprep.subr.mxu0 %v619
    %1191 = vmatpush1.msra.mxu0 %v618
    %1192 = vmatprep.subr.mxu0 %v622
    %1193 = vmatpush1.msra.mxu0 %v621
    %1194 = vmatprep.subr.mxu0 %v625
    %1195 = vmatpush1.msra.mxu0 %v624
    %1196 = vmatprep.subr.mxu0 %v628
    %1197 = vmatpush1.msra.mxu0 %v627
    %1198 = vmatprep.subr.mxu0 %v631
    %1199 = vmatpush1.msra.mxu0 %v630
    %1200 = vmatprep.subr.mxu0 %v634
    %1201 = vmatpush1.msra.mxu0 %v633
    %1202 = vmatprep.subr.mxu0 %v637
    %1203 = vmatpush1.msra.mxu0 %v636
    %1204 = vmatprep.subr.mxu0 %v640
    %1205 = vmatpush1.msra.mxu0 %v639
    %1206 = vmatprep.subr.mxu0 %v643
    %1207 = vmatpush1.msra.mxu0 %v642
    %1208 = vmatprep.subr.mxu0 %v646
    %1209 = vmatpush1.msra.mxu0 %v645
    %1210 = vmatprep.subr.mxu0 %v649
    %1211 = vmatpush1.msra.mxu0 %v648
    %1212 = vmatprep.mubr.f32.mxu0 %v138
    %1213 = vmatmul.mubr.f32.gmra.mrb[0].mxu0 %v136
    %v1214 = vpop.f32.mrb[0].mxu0
    %v1215 = vadd.f32 %v988, %v1214
    %v1216 = vpop.f32.mrb[0].mxu0
    %v1217 = vadd.f32 %v990, %v1216
    %1218 = vmatprep.mubr.f32.mxu0 %v144
    %1219 = vmatmul.mubr.f32.gmra.mrb[0].mxu0 %v142
    %v1220 = vpop.f32.mrb[0].mxu0
    %v1221 = vadd.f32 %v994, %v1220
    %v1222 = vpop.f32.mrb[0].mxu0
    %v1223 = vadd.f32 %v996, %v1222
    %1224 = vdwg.mxu0
    %1225 = vmatprep.subr.mxu0 %v652
    %1226 = vmatpush1.msra.mxu0 %v651
    %1227 = vmatprep.subr.mxu0 %v655
    %1228 = vmatpush1.msra.mxu0 %v654
    %1229 = vmatprep.subr.mxu0 %v658
    %1230 = vmatpush1.msra.mxu0 %v657
    %1231 = vmatprep.subr.mxu0 %v661
    %1232 = vmatpush1.msra.mxu0 %v660
    %1233 = vmatprep.subr.mxu0 %v664
    %1234 = vmatpush1.msra.mxu0 %v663
    %1235 = vmatprep.subr.mxu0 %v667
    %1236 = vmatpush1.msra.mxu0 %v666
    %1237 = vmatprep.subr.mxu0 %v670
    %1238 = vmatpush1.msra.mxu0 %v669
    %1239 = vmatprep.subr.mxu0 %v673
    %1240 = vmatpush1.msra.mxu0 %v672
    %1241 = vmatprep.subr.mxu0 %v676
    %1242 = vmatpush1.msra.mxu0 %v675
    %1243 = vmatprep.subr.mxu0 %v679
    %1244 = vmatpush1.msra.mxu0 %v678
    %1245 = vmatprep.subr.mxu0 %v682
    %1246 = vmatpush1.msra.mxu0 %v681
    %1247 = vmatprep.subr.mxu0 %v685
    %1248 = vmatpush1.msra.mxu0 %v684
    %1249 = vmatprep.subr.mxu0 %v688
    %1250 = vmatpush1.msra.mxu0 %v687
    %1251 = vmatprep.subr.mxu0 %v691
    %1252 = vmatpush1.msra.mxu0 %v690
    %1253 = vmatprep.subr.mxu0 %v694
    %1254 = vmatpush1.msra.mxu0 %v693
    %1255 = vmatprep.subr.mxu0 %v697
    %1256 = vmatpush1.msra.mxu0 %v696
    %1257 = vmatprep.subr.mxu0 0.0
    %1258 = vmatpush1.msra.mxu0 0.0
    %1259 = vmatprep.subr.mxu0 0.0
    %1260 = vmatpush1.msra.mxu0 0.0
    %1261 = vmatprep.subr.mxu0 0.0
    %1262 = vmatpush1.msra.mxu0 0.0
    %1263 = vmatprep.subr.mxu0 0.0
    %1264 = vmatpush1.msra.mxu0 0.0
    %1265 = vmatprep.subr.mxu0 0.0
    %1266 = vmatpush1.msra.mxu0 0.0
    %1267 = vmatprep.subr.mxu0 0.0
    %1268 = vmatpush1.msra.mxu0 0.0
    %1269 = vmatprep.subr.mxu0 0.0
    %1270 = vmatpush1.msra.mxu0 0.0
    %1271 = vmatprep.subr.mxu0 0.0
    %1272 = vmatpush1.msra.mxu0 0.0
    %1273 = vmatprep.subr.mxu0 0.0
    %1274 = vmatpush1.msra.mxu0 0.0
    %1275 = vmatprep.subr.mxu0 0.0
    %1276 = vmatpush1.msra.mxu0 0.0
    %1277 = vmatprep.subr.mxu0 0.0
    %1278 = vmatpush1.msra.mxu0 0.0
    %1279 = vmatprep.subr.mxu0 0.0
    %1280 = vmatpush1.msra.mxu0 0.0
    %1281 = vmatprep.subr.mxu0 0.0
    %1282 = vmatpush1.msra.mxu0 0.0
    %1283 = vmatprep.subr.mxu0 0.0
    %1284 = vmatpush1.msra.mxu0 0.0
    %1285 = vmatprep.subr.mxu0 0.0
    %1286 = vmatpush1.msra.mxu0 0.0
    %1287 = vmatprep.subr.mxu0 0.0
    %1288 = vmatpush1.msra.mxu0 0.0
    %1289 = vmatprep.mubr.f32.mxu0 0.0
    %1290 = vmatmul.mubr.f32.gmra.mrb[0].mxu0 %v213
    %v1291 = vpop.f32.mrb[0].mxu0
    %v1292 = vadd.f32 %v1215, %v1291
    %v1293 = vpop.f32.mrb[0].mxu0
    %v1294 = vadd.f32 %v1217, %v1293
    %1295 = vmatprep.mubr.f32.mxu0 0.0
    %1296 = vmatmul.mubr.f32.gmra.mrb[0].mxu0 %v218
    %v1297 = vpop.f32.mrb[0].mxu0
    %v1298 = vadd.f32 %v1221, %v1297
    %v1299 = vpop.f32.mrb[0].mxu0
    %v1300 = vadd.f32 %v1223, %v1299
    %1301 = vdwg.mxu0
    %1302 = vmatprep.subr.mxu0 0.0
    %1303 = vmatpush1.msra.mxu0 %v557
    %1304 = vmatprep.subr.mxu0 0.0
    %1305 = vmatpush1.msra.mxu0 %v560
    %1306 = vmatprep.subr.mxu0 0.0
    %1307 = vmatpush1.msra.mxu0 %v563
    %1308 = vmatprep.subr.mxu0 0.0
    %1309 = vmatpush1.msra.mxu0 %v566
    %1310 = vmatprep.subr.mxu0 0.0
    %1311 = vmatpush1.msra.mxu0 %v569
    %1312 = vmatprep.subr.mxu0 0.0
    %1313 = vmatpush1.msra.mxu0 %v572
    %1314 = vmatprep.subr.mxu0 0.0
    %1315 = vmatpush1.msra.mxu0 %v575
    %1316 = vmatprep.subr.mxu0 0.0
    %1317 = vmatpush1.msra.mxu0 %v578
    %1318 = vmatprep.subr.mxu0 0.0
    %1319 = vmatpush1.msra.mxu0 %v581
    %1320 = vmatprep.subr.mxu0 0.0
    %1321 = vmatpush1.msra.mxu0 %v584
    %1322 = vmatprep.subr.mxu0 0.0
    %1323 = vmatpush1.msra.mxu0 %v587
    %1324 = vmatprep.subr.mxu0 0.0
    %1325 = vmatpush1.msra.mxu0 %v590
    %1326 = vmatprep.subr.mxu0 0.0
    %1327 = vmatpush1.msra.mxu0 %v593
    %1328 = vmatprep.subr.mxu0 0.0
    %1329 = vmatpush1.msra.mxu0 %v596
    %1330 = vmatprep.subr.mxu0 0.0
    %1331 = vmatpush1.msra.mxu0 %v599
    %1332 = vmatprep.subr.mxu0 0.0
    %1333 = vmatpush1.msra.mxu0 %v602
    %1334 = vmatprep.subr.mxu0 0.0
    %1335 = vmatpush1.msra.mxu0 %v605
    %1336 = vmatprep.subr.mxu0 0.0
    %1337 = vmatpush1.msra.mxu0 %v608
    %1338 = vmatprep.subr.mxu0 0.0
    %1339 = vmatpush1.msra.mxu0 %v611
    %1340 = vmatprep.subr.mxu0 0.0
    %1341 = vmatpush1.msra.mxu0 %v614
    %1342 = vmatprep.subr.mxu0 0.0
    %1343 = vmatpush1.msra.mxu0 %v617
    %1344 = vmatprep.subr.mxu0 0.0
    %1345 = vmatpush1.msra.mxu0 %v620
    %1346 = vmatprep.subr.mxu0 0.0
    %1347 = vmatpush1.msra.mxu0 %v623
    %1348 = vmatprep.subr.mxu0 0.0
    %1349 = vmatpush1.msra.mxu0 %v626
    %1350 = vmatprep.subr.mxu0 0.0
    %1351 = vmatpush1.msra.mxu0 %v629
    %1352 = vmatprep.subr.mxu0 0.0
    %1353 = vmatpush1.msra.mxu0 %v632
    %1354 = vmatprep.subr.mxu0 0.0
    %1355 = vmatpush1.msra.mxu0 %v635
    %1356 = vmatprep.subr.mxu0 0.0
    %1357 = vmatpush1.msra.mxu0 %v638
    %1358 = vmatprep.subr.mxu0 0.0
    %1359 = vmatpush1.msra.mxu0 %v641
    %1360 = vmatprep.subr.mxu0 0.0
    %1361 = vmatpush1.msra.mxu0 %v644
    %1362 = vmatprep.subr.mxu0 0.0
    %1363 = vmatpush1.msra.mxu0 %v647
    %1364 = vmatprep.subr.mxu0 0.0
    %1365 = vmatpush1.msra.mxu0 %v650
    %1366 = vmatprep.mubr.f32.mxu0 %v138
    %1367 = vmatmul.mubr.f32.gmra.mrb[0].mxu0 %v136
    %v1368 = vpop.f32.mrb[0].mxu0
    %v1369 = vadd.f32 %v1140, %v1368
    %v1370 = vpop.f32.mrb[0].mxu0
    %1371 = vmatprep.mubr.f32.mxu0 %v144
    %1372 = vmatmul.mubr.f32.gmra.mrb[0].mxu0 %v142
    %v1373 = vpop.f32.mrb[0].mxu0
    %v1374 = vadd.f32 %v1145, %v1373
    %v1375 = vpop.f32.mrb[0].mxu0
    %1376 = vdwg.mxu0
    %1377 = vmatprep.subr.mxu0 0.0
    %1378 = vmatpush1.msra.mxu0 %v653
    %1379 = vmatprep.subr.mxu0 0.0
    %1380 = vmatpush1.msra.mxu0 %v656
    %1381 = vmatprep.subr.mxu0 0.0
    %1382 = vmatpush1.msra.mxu0 %v659
    %1383 = vmatprep.subr.mxu0 0.0
    %1384 = vmatpush1.msra.mxu0 %v662
    %1385 = vmatprep.subr.mxu0 0.0
    %1386 = vmatpush1.msra.mxu0 %v665
    %1387 = vmatprep.subr.mxu0 0.0
    %1388 = vmatpush1.msra.mxu0 %v668
    %1389 = vmatprep.subr.mxu0 0.0
    %1390 = vmatpush1.msra.mxu0 %v671
    %1391 = vmatprep.subr.mxu0 0.0
    %1392 = vmatpush1.msra.mxu0 %v674
    %1393 = vmatprep.subr.mxu0 0.0
    %1394 = vmatpush1.msra.mxu0 %v677
    %1395 = vmatprep.subr.mxu0 0.0
    %1396 = vmatpush1.msra.mxu0 %v680
    %1397 = vmatprep.subr.mxu0 0.0
    %1398 = vmatpush1.msra.mxu0 %v683
    %1399 = vmatprep.subr.mxu0 0.0
    %1400 = vmatpush1.msra.mxu0 %v686
    %1401 = vmatprep.subr.mxu0 0.0
    %1402 = vmatpush1.msra.mxu0 %v689
    %1403 = vmatprep.subr.mxu0 0.0
    %1404 = vmatpush1.msra.mxu0 %v692
    %1405 = vmatprep.subr.mxu0 0.0
    %1406 = vmatpush1.msra.mxu0 %v695
    %1407 = vmatprep.subr.mxu0 0.0
    %1408 = vmatpush1.msra.mxu0 %v698
    %1409 = vmatprep.subr.mxu0 0.0
    %1410 = vmatpush1.msra.mxu0 0.0
    %1411 = vmatprep.subr.mxu0 0.0
    %1412 = vmatpush1.msra.mxu0 0.0
    %1413 = vmatprep.subr.mxu0 0.0
    %1414 = vmatpush1.msra.mxu0 0.0
    %1415 = vmatprep.subr.mxu0 0.0
    %1416 = vmatpush1.msra.mxu0 0.0
    %1417 = vmatprep.subr.mxu0 0.0
    %1418 = vmatpush1.msra.mxu0 0.0
    %1419 = vmatprep.subr.mxu0 0.0
    %1420 = vmatpush1.msra.mxu0 0.0
    %1421 = vmatprep.subr.mxu0 0.0
    %1422 = vmatpush1.msra.mxu0 0.0
    %1423 = vmatprep.subr.mxu0 0.0
    %1424 = vmatpush1.msra.mxu0 0.0
    %1425 = vmatprep.subr.mxu0 0.0
    %1426 = vmatpush1.msra.mxu0 0.0
    %1427 = vmatprep.subr.mxu0 0.0
    %1428 = vmatpush1.msra.mxu0 0.0
    %1429 = vmatprep.subr.mxu0 0.0
    %1430 = vmatpush1.msra.mxu0 0.0
    %1431 = vmatprep.subr.mxu0 0.0
    %1432 = vmatpush1.msra.mxu0 0.0
    %1433 = vmatprep.subr.mxu0 0.0
    %1434 = vmatpush1.msra.mxu0 0.0
    %1435 = vmatprep.subr.mxu0 0.0
    %1436 = vmatpush1.msra.mxu0 0.0
    %1437 = vmatprep.subr.mxu0 0.0
    %1438 = vmatpush1.msra.mxu0 0.0
    %1439 = vmatprep.subr.mxu0 0.0
    %1440 = vmatpush1.msra.mxu0 0.0
    %1441 = vmatprep.mubr.f32.mxu0 0.0
    %1442 = vmatmul.mubr.f32.gmra.mrb[0].mxu0 %v213
    %v1443 = vpop.f32.mrb[0].mxu0
    %v1444 = vadd.f32 %v1369, %v1443
    %v1445 = vpop.f32.mrb[0].mxu0
    %1446 = vmatprep.mubr.f32.mxu0 0.0
    %1447 = vmatmul.mubr.f32.gmra.mrb[0].mxu0 %v218
    %v1448 = vpop.f32.mrb[0].mxu0
    %v1449 = vadd.f32 %v1374, %v1448
    %v1450 = vpop.f32.mrb[0].mxu0
    %1451 = vdwg.mxu0
    %s1452 = scalar_lea.vmem %s4, 2304
    %v1453 = vld [vmem:[%s1452] sm:$0xff]
    %v1454 = vld [vmem:[%s1452 + $0x8] sm:$0xff]
    %v1455 = vld [vmem:[%s1452 + $0x10] sm:$0xff]
    %v1456 = vld [vmem:[%s1452 + $0x18] sm:$0xff]
    %v1457 = vld [vmem:[%s1452 + $0x20] sm:$0xff]
    %v1458 = vld [vmem:[%s1452 + $0x28] sm:$0xff]
    %v1459 = vld [vmem:[%s1452 + $0x30] sm:$0xff]
    %v1460 = vld [vmem:[%s1452 + $0x38] sm:$0xff]
    %v1461 = vld [vmem:[%s1452 + $0x40] sm:$0xff]
    %v1462 = vld [vmem:[%s1452 + $0x48] sm:$0xff]
    %v1463 = vld [vmem:[%s1452 + $0x50] sm:$0xff]
    %v1464 = vld [vmem:[%s1452 + $0x58] sm:$0xff]
    %v1465 = vld [vmem:[%s1452 + $0x60] sm:$0xff]
    %v1466 = vld [vmem:[%s1452 + $0x68] sm:$0xff]
    %v1467 = vld [vmem:[%s1452 + $0x70] sm:$0xff]
    %v1468 = vld [vmem:[%s1452 + $0x78] sm:$0xff]
    %v1469 = vld [vmem:[%s1452 + $0x80] sm:$0xff]
    %v1470 = vld [vmem:[%s1452 + $0x88] sm:$0xff]
    %v1471 = vld [vmem:[%s1452 + $0x90] sm:$0xff]
    %v1472 = vld [vmem:[%s1452 + $0x98] sm:$0xff]
    %v1473 = vld [vmem:[%s1452 + $0xa0] sm:$0xff]
    %v1474 = vld [vmem:[%s1452 + $0xa8] sm:$0xff]
    %v1475 = vld [vmem:[%s1452 + $0xb0] sm:$0xff]
    %v1476 = vld [vmem:[%s1452 + $0xb8] sm:$0xff]
    %v1477 = vld [vmem:[%s1452 + $0xc0] sm:$0xff]
    %v1478 = vld [vmem:[%s1452 + $0xc8] sm:$0xff]
    %v1479 = vld [vmem:[%s1452 + $0xd0] sm:$0xff]
    %v1480 = vld [vmem:[%s1452 + $0xd8] sm:$0xff]
    %v1481 = vld [vmem:[%s1452 + $0xe0] sm:$0xff]
    %v1482 = vld [vmem:[%s1452 + $0xe8] sm:$0xff]
    %v1483 = vld [vmem:[%s1452 + $0xf0] sm:$0xff]
    %v1484 = vld [vmem:[%s1452 + $0xf8] sm:$0xff]
    %v1485 = vld [vmem:[%s1452 + $0x100] sm:$0xff]
    %v1486 = vld [vmem:[%s1452 + $0x108] sm:$0xff]
    %v1487 = vld [vmem:[%s1452 + $0x110] sm:$0xff]
    %v1488 = vld [vmem:[%s1452 + $0x118] sm:$0xff]
    %v1489 = vld [vmem:[%s1452 + $0x120] sm:$0xff]
    %v1490 = vld [vmem:[%s1452 + $0x128] sm:$0xff]
    %v1491 = vld [vmem:[%s1452 + $0x130] sm:$0xff]
    %v1492 = vld [vmem:[%s1452 + $0x138] sm:$0xff]
    %v1493 = vld [vmem:[%s1452 + $0x140] sm:$0xff]
    %v1494 = vld [vmem:[%s1452 + $0x148] sm:$0xff]
    %v1495 = vld [vmem:[%s1452 + $0x150] sm:$0xff]
    %v1496 = vld [vmem:[%s1452 + $0x158] sm:$0xff]
    %v1497 = vld [vmem:[%s1452 + $0x160] sm:$0xff]
    %v1498 = vld [vmem:[%s1452 + $0x168] sm:$0xff]
    %v1499 = vld [vmem:[%s1452 + $0x170] sm:$0xff]
    %v1500 = vld [vmem:[%s1452 + $0x178] sm:$0xff]
    %v1501 = vld [vmem:[%s1452 + $0x180] sm:$0xff]
    %v1502 = vld [vmem:[%s1452 + $0x188] sm:$0xff]
    %v1503 = vld [vmem:[%s1452 + $0x190] sm:$0xff]
    %v1504 = vld [vmem:[%s1452 + $0x198] sm:$0xff]
    %v1505 = vld [vmem:[%s1452 + $0x1a0] sm:$0xff]
    %v1506 = vld [vmem:[%s1452 + $0x1a8] sm:$0xff]
    %v1507 = vld [vmem:[%s1452 + $0x1b0] sm:$0xff]
    %v1508 = vld [vmem:[%s1452 + $0x1b8] sm:$0xff]
    %v1509 = vld [vmem:[%s1452 + $0x1c0] sm:$0xff]
    %v1510 = vld [vmem:[%s1452 + $0x1c8] sm:$0xff]
    %v1511 = vld [vmem:[%s1452 + $0x1d0] sm:$0xff]
    %v1512 = vld [vmem:[%s1452 + $0x1d8] sm:$0xff]
    %v1513 = vld [vmem:[%s1452 + $0x1e0] sm:$0xff]
    %v1514 = vld [vmem:[%s1452 + $0x1e8] sm:$0xff]
    %v1515 = vld [vmem:[%s1452 + $0x1f0] sm:$0xff]
    %v1516 = vld [vmem:[%s1452 + $0x1f8] sm:$0xff]
    %v1517 = vld [vmem:[%s1452 + $0x200] sm:$0xff]
    %v1518 = vld [vmem:[%s1452 + $0x208] sm:$0xff]
    %v1519 = vld [vmem:[%s1452 + $0x210] sm:$0xff]
    %v1520 = vld [vmem:[%s1452 + $0x218] sm:$0xff]
    %v1521 = vld [vmem:[%s1452 + $0x220] sm:$0xff]
    %v1522 = vld [vmem:[%s1452 + $0x228] sm:$0xff]
    %v1523 = vld [vmem:[%s1452 + $0x230] sm:$0xff]
    %v1524 = vld [vmem:[%s1452 + $0x238] sm:$0xff]
    %v1525 = vld [vmem:[%s1452 + $0x240] sm:$0xff]
    %v1526 = vld [vmem:[%s1452 + $0x248] sm:$0xff]
    %v1527 = vld [vmem:[%s1452 + $0x250] sm:$0xff]
    %v1528 = vld [vmem:[%s1452 + $0x258] sm:$0xff]
    %v1529 = vld [vmem:[%s1452 + $0x260] sm:$0xff]
    %v1530 = vld [vmem:[%s1452 + $0x268] sm:$0xff]
    %v1531 = vld [vmem:[%s1452 + $0x270] sm:$0xff]
    %v1532 = vld [vmem:[%s1452 + $0x278] sm:$0xff]
    %v1533 = vld [vmem:[%s1452 + $0x280] sm:$0xff]
    %v1534 = vld [vmem:[%s1452 + $0x288] sm:$0xff]
    %v1535 = vld [vmem:[%s1452 + $0x290] sm:$0xff]
    %v1536 = vld [vmem:[%s1452 + $0x298] sm:$0xff]
    %v1537 = vld [vmem:[%s1452 + $0x2a0] sm:$0xff]
    %v1538 = vld [vmem:[%s1452 + $0x2a8] sm:$0xff]
    %v1539 = vld [vmem:[%s1452 + $0x2b0] sm:$0xff]
    %v1540 = vld [vmem:[%s1452 + $0x2b8] sm:$0xff]
    %v1541 = vld [vmem:[%s1452 + $0x2c0] sm:$0xff]
    %v1542 = vld [vmem:[%s1452 + $0x2c8] sm:$0xff]
    %v1543 = vld [vmem:[%s1452 + $0x2d0] sm:$0xff]
    %v1544 = vld [vmem:[%s1452 + $0x2d8] sm:$0xff]
    %v1545 = vld [vmem:[%s1452 + $0x2e0] sm:$0xff]
    %v1546 = vld [vmem:[%s1452 + $0x2e8] sm:$0xff]
    %v1547 = vld [vmem:[%s1452 + $0x2f0] sm:$0xff]
    %v1548 = vld [vmem:[%s1452 + $0x2f8] sm:$0xff]
    %v1549 = vld [vmem:[%s1452 + $0x300] sm:$0xff]
    %v1550 = vld [vmem:[%s1452 + $0x308] sm:$0xff]
    %v1551 = vld [vmem:[%s1452 + $0x310] sm:$0xff]
    %v1552 = vld [vmem:[%s1452 + $0x318] sm:$0xff]
    %v1553 = vld [vmem:[%s1452 + $0x320] sm:$0xff]
    %v1554 = vld [vmem:[%s1452 + $0x328] sm:$0xff]
    %v1555 = vld [vmem:[%s1452 + $0x330] sm:$0xff]
    %v1556 = vld [vmem:[%s1452 + $0x338] sm:$0xff]
    %v1557 = vld [vmem:[%s1452 + $0x340] sm:$0xff]
    %v1558 = vld [vmem:[%s1452 + $0x348] sm:$0xff]
    %v1559 = vld [vmem:[%s1452 + $0x350] sm:$0xff]
    %v1560 = vld [vmem:[%s1452 + $0x358] sm:$0xff]
    %v1561 = vld [vmem:[%s1452 + $0x360] sm:$0xff]
    %v1562 = vld [vmem:[%s1452 + $0x368] sm:$0xff]
    %v1563 = vld [vmem:[%s1452 + $0x370] sm:$0xff]
    %v1564 = vld [vmem:[%s1452 + $0x378] sm:$0xff]
    %v1565 = vld [vmem:[%s1452 + $0x380] sm:$0xff]
    %v1566 = vld [vmem:[%s1452 + $0x388] sm:$0xff]
    %v1567 = vld [vmem:[%s1452 + $0x390] sm:$0xff]
    %v1568 = vld [vmem:[%s1452 + $0x398] sm:$0xff]
    %v1569 = vld [vmem:[%s1452 + $0x3a0] sm:$0xff]
    %v1570 = vld [vmem:[%s1452 + $0x3a8] sm:$0xff]
    %v1571 = vld [vmem:[%s1452 + $0x3b0] sm:$0xff]
    %v1572 = vld [vmem:[%s1452 + $0x3b8] sm:$0xff]
    %v1573 = vld [vmem:[%s1452 + $0x3c0] sm:$0xff]
    %v1574 = vld [vmem:[%s1452 + $0x3c8] sm:$0xff]
    %v1575 = vld [vmem:[%s1452 + $0x3d0] sm:$0xff]
    %v1576 = vld [vmem:[%s1452 + $0x3d8] sm:$0xff]
    %v1577 = vld [vmem:[%s1452 + $0x3e0] sm:$0xff]
    %v1578 = vld [vmem:[%s1452 + $0x3e8] sm:$0xff]
    %v1579 = vld [vmem:[%s1452 + $0x3f0] sm:$0xff]
    %v1580 = vld [vmem:[%s1452 + $0x3f8] sm:$0xff]
    %v1581 = vld [vmem:[%s1452 + $0x400] sm:$0xff]
    %v1582 = vld [vmem:[%s1452 + $0x408] sm:$0xff]
    %v1583 = vld [vmem:[%s1452 + $0x410] sm:$0xff]
    %v1584 = vld [vmem:[%s1452 + $0x418] sm:$0xff]
    %v1585 = vld [vmem:[%s1452 + $0x420] sm:$0xff]
    %v1586 = vld [vmem:[%s1452 + $0x428] sm:$0xff]
    %v1587 = vld [vmem:[%s1452 + $0x430] sm:$0xff]
    %v1588 = vld [vmem:[%s1452 + $0x438] sm:$0xff]
    %v1589 = vld [vmem:[%s1452 + $0x440] sm:$0xff]
    %v1590 = vld [vmem:[%s1452 + $0x448] sm:$0xff]
    %v1591 = vld [vmem:[%s1452 + $0x450] sm:$0xff]
    %v1592 = vld [vmem:[%s1452 + $0x458] sm:$0xff]
    %v1593 = vld [vmem:[%s1452 + $0x460] sm:$0xff]
    %v1594 = vld [vmem:[%s1452 + $0x468] sm:$0xff]
    %v1595 = vld [vmem:[%s1452 + $0x470] sm:$0xff]
    %v1596 = vld [vmem:[%s1452 + $0x478] sm:$0xff]
    %1597 = vmatprep.subr.mxu0 %v1454
    %1598 = vmatpush1.msra.mxu0 %v1453
    %1599 = vmatprep.subr.mxu0 %v1457
    %1600 = vmatpush1.msra.mxu0 %v1456
    %1601 = vmatprep.subr.mxu0 %v1460
    %1602 = vmatpush1.msra.mxu0 %v1459
    %1603 = vmatprep.subr.mxu0 %v1463
    %1604 = vmatpush1.msra.mxu0 %v1462
    %1605 = vmatprep.subr.mxu0 %v1466
    %1606 = vmatpush1.msra.mxu0 %v1465
    %1607 = vmatprep.subr.mxu0 %v1469
    %1608 = vmatpush1.msra.mxu0 %v1468
    %1609 = vmatprep.subr.mxu0 %v1472
    %1610 = vmatpush1.msra.mxu0 %v1471
    %1611 = vmatprep.subr.mxu0 %v1475
    %1612 = vmatpush1.msra.mxu0 %v1474
    %1613 = vmatprep.subr.mxu0 %v1478
    %1614 = vmatpush1.msra.mxu0 %v1477
    %1615 = vmatprep.subr.mxu0 %v1481
    %1616 = vmatpush1.msra.mxu0 %v1480
    %1617 = vmatprep.subr.mxu0 %v1484
    %1618 = vmatpush1.msra.mxu0 %v1483
    %1619 = vmatprep.subr.mxu0 %v1487
    %1620 = vmatpush1.msra.mxu0 %v1486
    %1621 = vmatprep.subr.mxu0 %v1490
    %1622 = vmatpush1.msra.mxu0 %v1489
    %1623 = vmatprep.subr.mxu0 %v1493
    %1624 = vmatpush1.msra.mxu0 %v1492
    %1625 = vmatprep.subr.mxu0 %v1496
    %1626 = vmatpush1.msra.mxu0 %v1495
    %1627 = vmatprep.subr.mxu0 %v1499
    %1628 = vmatpush1.msra.mxu0 %v1498
    %1629 = vmatprep.subr.mxu0 %v1502
    %1630 = vmatpush1.msra.mxu0 %v1501
    %1631 = vmatprep.subr.mxu0 %v1505
    %1632 = vmatpush1.msra.mxu0 %v1504
    %1633 = vmatprep.subr.mxu0 %v1508
    %1634 = vmatpush1.msra.mxu0 %v1507
    %1635 = vmatprep.subr.mxu0 %v1511
    %1636 = vmatpush1.msra.mxu0 %v1510
    %1637 = vmatprep.subr.mxu0 %v1514
    %1638 = vmatpush1.msra.mxu0 %v1513
    %1639 = vmatprep.subr.mxu0 %v1517
    %1640 = vmatpush1.msra.mxu0 %v1516
    %1641 = vmatprep.subr.mxu0 %v1520
    %1642 = vmatpush1.msra.mxu0 %v1519
    %1643 = vmatprep.subr.mxu0 %v1523
    %1644 = vmatpush1.msra.mxu0 %v1522
    %1645 = vmatprep.subr.mxu0 %v1526
    %1646 = vmatpush1.msra.mxu0 %v1525
    %1647 = vmatprep.subr.mxu0 %v1529
    %1648 = vmatpush1.msra.mxu0 %v1528
    %1649 = vmatprep.subr.mxu0 %v1532
    %1650 = vmatpush1.msra.mxu0 %v1531
    %1651 = vmatprep.subr.mxu0 %v1535
    %1652 = vmatpush1.msra.mxu0 %v1534
    %1653 = vmatprep.subr.mxu0 %v1538
    %1654 = vmatpush1.msra.mxu0 %v1537
    %1655 = vmatprep.subr.mxu0 %v1541
    %1656 = vmatpush1.msra.mxu0 %v1540
    %1657 = vmatprep.subr.mxu0 %v1544
    %1658 = vmatpush1.msra.mxu0 %v1543
    %1659 = vmatprep.subr.mxu0 %v1547
    %1660 = vmatpush1.msra.mxu0 %v1546
    %1661 = vmatprep.mubr.f32.mxu0 %v460
    %1662 = vmatmul.mubr.f32.gmra.mrb[0].mxu0 %v458
    %v1663 = vpop.f32.mrb[0].mxu0
    %v1664 = vadd.f32 0.0, %v1663
    %v1665 = vpop.f32.mrb[0].mxu0
    %v1666 = vadd.f32 0.0, %v1665
    %1667 = vmatprep.mubr.f32.mxu0 %v466
    %1668 = vmatmul.mubr.f32.gmra.mrb[0].mxu0 %v464
    %v1669 = vpop.f32.mrb[0].mxu0
    %v1670 = vadd.f32 0.0, %v1669
    %v1671 = vpop.f32.mrb[0].mxu0
    %v1672 = vadd.f32 0.0, %v1671
    %1673 = vdwg.mxu0
    %1674 = vmatprep.subr.mxu0 %v1550
    %1675 = vmatpush1.msra.mxu0 %v1549
    %1676 = vmatprep.subr.mxu0 %v1553
    %1677 = vmatpush1.msra.mxu0 %v1552
    %1678 = vmatprep.subr.mxu0 %v1556
    %1679 = vmatpush1.msra.mxu0 %v1555
    %1680 = vmatprep.subr.mxu0 %v1559
    %1681 = vmatpush1.msra.mxu0 %v1558
    %1682 = vmatprep.subr.mxu0 %v1562
    %1683 = vmatpush1.msra.mxu0 %v1561
    %1684 = vmatprep.subr.mxu0 %v1565
    %1685 = vmatpush1.msra.mxu0 %v1564
    %1686 = vmatprep.subr.mxu0 %v1568
    %1687 = vmatpush1.msra.mxu0 %v1567
    %1688 = vmatprep.subr.mxu0 %v1571
    %1689 = vmatpush1.msra.mxu0 %v1570
    %1690 = vmatprep.subr.mxu0 %v1574
    %1691 = vmatpush1.msra.mxu0 %v1573
    %1692 = vmatprep.subr.mxu0 %v1577
    %1693 = vmatpush1.msra.mxu0 %v1576
    %1694 = vmatprep.subr.mxu0 %v1580
    %1695 = vmatpush1.msra.mxu0 %v1579
    %1696 = vmatprep.subr.mxu0 %v1583
    %1697 = vmatpush1.msra.mxu0 %v1582
    %1698 = vmatprep.subr.mxu0 %v1586
    %1699 = vmatpush1.msra.mxu0 %v1585
    %1700 = vmatprep.subr.mxu0 %v1589
    %1701 = vmatpush1.msra.mxu0 %v1588
    %1702 = vmatprep.subr.mxu0 %v1592
    %1703 = vmatpush1.msra.mxu0 %v1591
    %1704 = vmatprep.subr.mxu0 %v1595
    %1705 = vmatpush1.msra.mxu0 %v1594
    %1706 = vmatprep.subr.mxu0 0.0
    %1707 = vmatpush1.msra.mxu0 0.0
    %1708 = vmatprep.subr.mxu0 0.0
    %1709 = vmatpush1.msra.mxu0 0.0
    %1710 = vmatprep.subr.mxu0 0.0
    %1711 = vmatpush1.msra.mxu0 0.0
    %1712 = vmatprep.subr.mxu0 0.0
    %1713 = vmatpush1.msra.mxu0 0.0
    %1714 = vmatprep.subr.mxu0 0.0
    %1715 = vmatpush1.msra.mxu0 0.0
    %1716 = vmatprep.subr.mxu0 0.0
    %1717 = vmatpush1.msra.mxu0 0.0
    %1718 = vmatprep.subr.mxu0 0.0
    %1719 = vmatpush1.msra.mxu0 0.0
    %1720 = vmatprep.subr.mxu0 0.0
    %1721 = vmatpush1.msra.mxu0 0.0
    %1722 = vmatprep.subr.mxu0 0.0
    %1723 = vmatpush1.msra.mxu0 0.0
    %1724 = vmatprep.subr.mxu0 0.0
    %1725 = vmatpush1.msra.mxu0 0.0
    %1726 = vmatprep.subr.mxu0 0.0
    %1727 = vmatpush1.msra.mxu0 0.0
    %1728 = vmatprep.subr.mxu0 0.0
    %1729 = vmatpush1.msra.mxu0 0.0
    %1730 = vmatprep.subr.mxu0 0.0
    %1731 = vmatpush1.msra.mxu0 0.0
    %1732 = vmatprep.subr.mxu0 0.0
    %1733 = vmatpush1.msra.mxu0 0.0
    %1734 = vmatprep.subr.mxu0 0.0
    %1735 = vmatpush1.msra.mxu0 0.0
    %1736 = vmatprep.subr.mxu0 0.0
    %1737 = vmatpush1.msra.mxu0 0.0
    %1738 = vmatprep.mubr.f32.mxu0 0.0
    %1739 = vmatmul.mubr.f32.gmra.mrb[0].mxu0 %v535
    %v1740 = vpop.f32.mrb[0].mxu0
    %v1741 = vadd.f32 %v1664, %v1740
    %v1742 = vpop.f32.mrb[0].mxu0
    %v1743 = vadd.f32 %v1666, %v1742
    %1744 = vmatprep.mubr.f32.mxu0 0.0
    %1745 = vmatmul.mubr.f32.gmra.mrb[0].mxu0 %v540
    %v1746 = vpop.f32.mrb[0].mxu0
    %v1747 = vadd.f32 %v1670, %v1746
    %v1748 = vpop.f32.mrb[0].mxu0
    %v1749 = vadd.f32 %v1672, %v1748
    %1750 = vdwg.mxu0
    %1751 = vmatprep.subr.mxu0 0.0
    %1752 = vmatpush1.msra.mxu0 %v1455
    %1753 = vmatprep.subr.mxu0 0.0
    %1754 = vmatpush1.msra.mxu0 %v1458
    %1755 = vmatprep.subr.mxu0 0.0
    %1756 = vmatpush1.msra.mxu0 %v1461
    %1757 = vmatprep.subr.mxu0 0.0
    %1758 = vmatpush1.msra.mxu0 %v1464
    %1759 = vmatprep.subr.mxu0 0.0
    %1760 = vmatpush1.msra.mxu0 %v1467
    %1761 = vmatprep.subr.mxu0 0.0
    %1762 = vmatpush1.msra.mxu0 %v1470
    %1763 = vmatprep.subr.mxu0 0.0
    %1764 = vmatpush1.msra.mxu0 %v1473
    %1765 = vmatprep.subr.mxu0 0.0
    %1766 = vmatpush1.msra.mxu0 %v1476
    %1767 = vmatprep.subr.mxu0 0.0
    %1768 = vmatpush1.msra.mxu0 %v1479
    %1769 = vmatprep.subr.mxu0 0.0
    %1770 = vmatpush1.msra.mxu0 %v1482
    %1771 = vmatprep.subr.mxu0 0.0
    %1772 = vmatpush1.msra.mxu0 %v1485
    %1773 = vmatprep.subr.mxu0 0.0
    %1774 = vmatpush1.msra.mxu0 %v1488
    %1775 = vmatprep.subr.mxu0 0.0
    %1776 = vmatpush1.msra.mxu0 %v1491
    %1777 = vmatprep.subr.mxu0 0.0
    %1778 = vmatpush1.msra.mxu0 %v1494
    %1779 = vmatprep.subr.mxu0 0.0
    %1780 = vmatpush1.msra.mxu0 %v1497
    %1781 = vmatprep.subr.mxu0 0.0
    %1782 = vmatpush1.msra.mxu0 %v1500
    %1783 = vmatprep.subr.mxu0 0.0
    %1784 = vmatpush1.msra.mxu0 %v1503
    %1785 = vmatprep.subr.mxu0 0.0
    %1786 = vmatpush1.msra.mxu0 %v1506
    %1787 = vmatprep.subr.mxu0 0.0
    %1788 = vmatpush1.msra.mxu0 %v1509
    %1789 = vmatprep.subr.mxu0 0.0
    %1790 = vmatpush1.msra.mxu0 %v1512
    %1791 = vmatprep.subr.mxu0 0.0
    %1792 = vmatpush1.msra.mxu0 %v1515
    %1793 = vmatprep.subr.mxu0 0.0
    %1794 = vmatpush1.msra.mxu0 %v1518
    %1795 = vmatprep.subr.mxu0 0.0
    %1796 = vmatpush1.msra.mxu0 %v1521
    %1797 = vmatprep.subr.mxu0 0.0
    %1798 = vmatpush1.msra.mxu0 %v1524
    %1799 = vmatprep.subr.mxu0 0.0
    %1800 = vmatpush1.msra.mxu0 %v1527
    %1801 = vmatprep.subr.mxu0 0.0
    %1802 = vmatpush1.msra.mxu0 %v1530
    %1803 = vmatprep.subr.mxu0 0.0
    %1804 = vmatpush1.msra.mxu0 %v1533
    %1805 = vmatprep.subr.mxu0 0.0
    %1806 = vmatpush1.msra.mxu0 %v1536
    %1807 = vmatprep.subr.mxu0 0.0
    %1808 = vmatpush1.msra.mxu0 %v1539
    %1809 = vmatprep.subr.mxu0 0.0
    %1810 = vmatpush1.msra.mxu0 %v1542
    %1811 = vmatprep.subr.mxu0 0.0
    %1812 = vmatpush1.msra.mxu0 %v1545
    %1813 = vmatprep.subr.mxu0 0.0
    %1814 = vmatpush1.msra.mxu0 %v1548
    %1815 = vmatprep.mubr.f32.mxu0 %v460
    %1816 = vmatmul.mubr.f32.gmra.mrb[0].mxu0 %v458
    %v1817 = vpop.f32.mrb[0].mxu0
    %v1818 = vadd.f32 0.0, %v1817
    %v1819 = vpop.f32.mrb[0].mxu0
    %1820 = vmatprep.mubr.f32.mxu0 %v466
    %1821 = vmatmul.mubr.f32.gmra.mrb[0].mxu0 %v464
    %v1822 = vpop.f32.mrb[0].mxu0
    %v1823 = vadd.f32 0.0, %v1822
    %v1824 = vpop.f32.mrb[0].mxu0
    %1825 = vdwg.mxu0
    %1826 = vmatprep.subr.mxu0 0.0
    %1827 = vmatpush1.msra.mxu0 %v1551
    %1828 = vmatprep.subr.mxu0 0.0
    %1829 = vmatpush1.msra.mxu0 %v1554
    %1830 = vmatprep.subr.mxu0 0.0
    %1831 = vmatpush1.msra.mxu0 %v1557
    %1832 = vmatprep.subr.mxu0 0.0
    %1833 = vmatpush1.msra.mxu0 %v1560
    %1834 = vmatprep.subr.mxu0 0.0
    %1835 = vmatpush1.msra.mxu0 %v1563
    %1836 = vmatprep.subr.mxu0 0.0
    %1837 = vmatpush1.msra.mxu0 %v1566
    %1838 = vmatprep.subr.mxu0 0.0
    %1839 = vmatpush1.msra.mxu0 %v1569
    %1840 = vmatprep.subr.mxu0 0.0
    %1841 = vmatpush1.msra.mxu0 %v1572
    %1842 = vmatprep.subr.mxu0 0.0
    %1843 = vmatpush1.msra.mxu0 %v1575
    %1844 = vmatprep.subr.mxu0 0.0
    %1845 = vmatpush1.msra.mxu0 %v1578
    %1846 = vmatprep.subr.mxu0 0.0
    %1847 = vmatpush1.msra.mxu0 %v1581
    %1848 = vmatprep.subr.mxu0 0.0
    %1849 = vmatpush1.msra.mxu0 %v1584
    %1850 = vmatprep.subr.mxu0 0.0
    %1851 = vmatpush1.msra.mxu0 %v1587
    %1852 = vmatprep.subr.mxu0 0.0
    %1853 = vmatpush1.msra.mxu0 %v1590
    %1854 = vmatprep.subr.mxu0 0.0
    %1855 = vmatpush1.msra.mxu0 %v1593
    %1856 = vmatprep.subr.mxu0 0.0
    %1857 = vmatpush1.msra.mxu0 %v1596
    %1858 = vmatprep.subr.mxu0 0.0
    %1859 = vmatpush1.msra.mxu0 0.0
    %1860 = vmatprep.subr.mxu0 0.0
    %1861 = vmatpush1.msra.mxu0 0.0
    %1862 = vmatprep.subr.mxu0 0.0
    %1863 = vmatpush1.msra.mxu0 0.0
    %1864 = vmatprep.subr.mxu0 0.0
    %1865 = vmatpush1.msra.mxu0 0.0
    %1866 = vmatprep.subr.mxu0 0.0
    %1867 = vmatpush1.msra.mxu0 0.0
    %1868 = vmatprep.subr.mxu0 0.0
    %1869 = vmatpush1.msra.mxu0 0.0
    %1870 = vmatprep.subr.mxu0 0.0
    %1871 = vmatpush1.msra.mxu0 0.0
    %1872 = vmatprep.subr.mxu0 0.0
    %1873 = vmatpush1.msra.mxu0 0.0
    %1874 = vmatprep.subr.mxu0 0.0
    %1875 = vmatpush1.msra.mxu0 0.0
    %1876 = vmatprep.subr.mxu0 0.0
    %1877 = vmatpush1.msra.mxu0 0.0
    %1878 = vmatprep.subr.mxu0 0.0
    %1879 = vmatpush1.msra.mxu0 0.0
    %1880 = vmatprep.subr.mxu0 0.0
    %1881 = vmatpush1.msra.mxu0 0.0
    %1882 = vmatprep.subr.mxu0 0.0
    %1883 = vmatpush1.msra.mxu0 0.0
    %1884 = vmatprep.subr.mxu0 0.0
    %1885 = vmatpush1.msra.mxu0 0.0
    %1886 = vmatprep.subr.mxu0 0.0
    %1887 = vmatpush1.msra.mxu0 0.0
    %1888 = vmatprep.subr.mxu0 0.0
    %1889 = vmatpush1.msra.mxu0 0.0
    %1890 = vmatprep.mubr.f32.mxu0 0.0
    %1891 = vmatmul.mubr.f32.gmra.mrb[0].mxu0 %v535
    %v1892 = vpop.f32.mrb[0].mxu0
    %v1893 = vadd.f32 %v1818, %v1892
    %v1894 = vpop.f32.mrb[0].mxu0
    %1895 = vmatprep.mubr.f32.mxu0 0.0
    %1896 = vmatmul.mubr.f32.gmra.mrb[0].mxu0 %v540
    %v1897 = vpop.f32.mrb[0].mxu0
    %v1898 = vadd.f32 %v1823, %v1897
    %v1899 = vpop.f32.mrb[0].mxu0
    %1900 = vdwg.mxu0
    %v1901 = vadd.f32 %v1292, %v1741
    %v1902 = vadd.f32 %v1294, %v1743
    %v1903 = vadd.f32 %v1444, %v1893
    %v1904 = vadd.f32 %v1298, %v1747
    %v1905 = vadd.f32 %v1300, %v1749
    %v1906 = vadd.f32 %v1449, %v1898
    %v1907 = vld [vmem:[%s5] sm:$0x7]
    %v1909 = vlaneseq
    %v1910 = vshrl.u32 %v1909, 7
    %v1911 = vsub.s32 0, %v1910
    %v1912 = vrot.slane %v1907, %v1911
    %v1913 = vlaneseq
    %v1914 = vshrl.u32 %v1913, 7
    %v1915 = vsub.s32 1, %v1914
    %v1916 = vrot.slane %v1907, %v1915
    %v1917 = vlaneseq
    %v1918 = vshrl.u32 %v1917, 7
    %v1919 = vsub.s32 2, %v1918
    %v1920 = vrot.slane %v1907, %v1919
    %v1924 = vadd.f32 %v1901, %v1912
    %v1925 = vadd.f32 %v1902, %v1916
    %v1926 = vadd.f32 %v1903, %v1920
    %v1927 = vadd.f32 %v1904, %v1912
    %v1928 = vadd.f32 %v1905, %v1916
    %v1929 = vadd.f32 %v1906, %v1920
    %v1930 = vmax.f32 %v1924, 0.0
    %v1931 = vmax.f32 %v1925, 0.0
    %v1932 = vmax.f32 %v1926, 0.0
    %v1933 = vmax.f32 %v1927, 0.0
    %v1934 = vmax.f32 %v1928, 0.0
    %v1935 = vmax.f32 %v1929, 0.0
    %v1936 = vld [vmem:[%s6] sm:$0xff]
    %v1937 = vld [vmem:[%s6 + $0x8] sm:$0xff]
    %v1938 = vld [vmem:[%s6 + $0x10] sm:$0xff]
    %v1939 = vld [vmem:[%s6 + $0x18] sm:$0xff]
    %v1940 = vld [vmem:[%s6 + $0x20] sm:$0xff]
    %v1941 = vld [vmem:[%s6 + $0x28] sm:$0xff]
    %v1942 = vld [vmem:[%s6 + $0x30] sm:$0xff]
    %v1943 = vld [vmem:[%s6 + $0x38] sm:$0xff]
    %v1944 = vld [vmem:[%s6 + $0x40] sm:$0xff]
    %v1945 = vld [vmem:[%s6 + $0x48] sm:$0xff]
    %v1946 = vld [vmem:[%s6 + $0x50] sm:$0xff]
    %v1947 = vld [vmem:[%s6 + $0x58] sm:$0xff]
    %v1948 = vld [vmem:[%s6 + $0x60] sm:$0xff]
    %v1949 = vld [vmem:[%s6 + $0x68] sm:$0xff]
    %v1950 = vld [vmem:[%s6 + $0x70] sm:$0xff]
    %v1951 = vld [vmem:[%s6 + $0x78] sm:$0xff]
    %v1952 = vld [vmem:[%s6 + $0x80] sm:$0xff]
    %v1953 = vld [vmem:[%s6 + $0x88] sm:$0xff]
    %v1954 = vld [vmem:[%s6 + $0x90] sm:$0xff]
    %v1955 = vld [vmem:[%s6 + $0x98] sm:$0xff]
    %v1956 = vld [vmem:[%s6 + $0xa0] sm:$0xff]
    %v1957 = vld [vmem:[%s6 + $0xa8] sm:$0xff]
    %v1958 = vld [vmem:[%s6 + $0xb0] sm:$0xff]
    %v1959 = vld [vmem:[%s6 + $0xb8] sm:$0xff]
    %v1960 = vld [vmem:[%s6 + $0xc0] sm:$0xff]
    %v1961 = vld [vmem:[%s6 + $0xc8] sm:$0xff]
    %v1962 = vld [vmem:[%s6 + $0xd0] sm:$0xff]
    %v1963 = vld [vmem:[%s6 + $0xd8] sm:$0xff]
    %v1964 = vld [vmem:[%s6 + $0xe0] sm:$0xff]
    %v1965 = vld [vmem:[%s6 + $0xe8] sm:$0xff]
    %v1966 = vld [vmem:[%s6 + $0xf0] sm:$0xff]
    %v1967 = vld [vmem:[%s6 + $0xf8] sm:$0xff]
    %v1968 = vld [vmem:[%s6 + $0x100] sm:$0xff]
    %v1969 = vld [vmem:[%s6 + $0x108] sm:$0xff]
    %v1970 = vld [vmem:[%s6 + $0x110] sm:$0xff]
    %v1971 = vld [vmem:[%s6 + $0x118] sm:$0xff]
    %v1972 = vld [vmem:[%s6 + $0x120] sm:$0xff]
    %v1973 = vld [vmem:[%s6 + $0x128] sm:$0xff]
    %v1974 = vld [vmem:[%s6 + $0x130] sm:$0xff]
    %v1975 = vld [vmem:[%s6 + $0x138] sm:$0xff]
    %v1976 = vld [vmem:[%s6 + $0x140] sm:$0xff]
    %v1977 = vld [vmem:[%s6 + $0x148] sm:$0xff]
    %v1978 = vld [vmem:[%s6 + $0x150] sm:$0xff]
    %v1979 = vld [vmem:[%s6 + $0x158] sm:$0xff]
    %v1980 = vld [vmem:[%s6 + $0x160] sm:$0xff]
    %v1981 = vld [vmem:[%s6 + $0x168] sm:$0xff]
    %v1982 = vld [vmem:[%s6 + $0x170] sm:$0xff]
    %v1983 = vld [vmem:[%s6 + $0x178] sm:$0xff]
    %v1984 = vld [vmem:[%s6 + $0x180] sm:$0xff]
    %v1985 = vld [vmem:[%s6 + $0x188] sm:$0xff]
    %v1986 = vld [vmem:[%s6 + $0x190] sm:$0xff]
    %v1987 = vld [vmem:[%s6 + $0x198] sm:$0xff]
    %v1988 = vld [vmem:[%s6 + $0x1a0] sm:$0xff]
    %v1989 = vld [vmem:[%s6 + $0x1a8] sm:$0xff]
    %v1990 = vld [vmem:[%s6 + $0x1b0] sm:$0xff]
    %v1991 = vld [vmem:[%s6 + $0x1b8] sm:$0xff]
    %v1992 = vld [vmem:[%s6 + $0x1c0] sm:$0xff]
    %v1993 = vld [vmem:[%s6 + $0x1c8] sm:$0xff]
    %v1994 = vld [vmem:[%s6 + $0x1d0] sm:$0xff]
    %v1995 = vld [vmem:[%s6 + $0x1d8] sm:$0xff]
    %v1996 = vld [vmem:[%s6 + $0x1e0] sm:$0xff]
    %v1997 = vld [vmem:[%s6 + $0x1e8] sm:$0xff]
    %v1998 = vld [vmem:[%s6 + $0x1f0] sm:$0xff]
    %v1999 = vld [vmem:[%s6 + $0x1f8] sm:$0xff]
    %v2000 = vld [vmem:[%s6 + $0x200] sm:$0xff]
    %v2001 = vld [vmem:[%s6 + $0x208] sm:$0xff]
    %v2002 = vld [vmem:[%s6 + $0x210] sm:$0xff]
    %v2003 = vld [vmem:[%s6 + $0x218] sm:$0xff]
    %v2004 = vld [vmem:[%s6 + $0x220] sm:$0xff]
    %v2005 = vld [vmem:[%s6 + $0x228] sm:$0xff]
    %v2006 = vld [vmem:[%s6 + $0x230] sm:$0xff]
    %v2007 = vld [vmem:[%s6 + $0x238] sm:$0xff]
    %v2008 = vld [vmem:[%s6 + $0x240] sm:$0xff]
    %v2009 = vld [vmem:[%s6 + $0x248] sm:$0xff]
    %v2010 = vld [vmem:[%s6 + $0x250] sm:$0xff]
    %v2011 = vld [vmem:[%s6 + $0x258] sm:$0xff]
    %v2012 = vld [vmem:[%s6 + $0x260] sm:$0xff]
    %v2013 = vld [vmem:[%s6 + $0x268] sm:$0xff]
    %v2014 = vld [vmem:[%s6 + $0x270] sm:$0xff]
    %v2015 = vld [vmem:[%s6 + $0x278] sm:$0xff]
    %v2016 = vld [vmem:[%s6 + $0x280] sm:$0xff]
    %v2017 = vld [vmem:[%s6 + $0x288] sm:$0xff]
    %v2018 = vld [vmem:[%s6 + $0x290] sm:$0xff]
    %v2019 = vld [vmem:[%s6 + $0x298] sm:$0xff]
    %v2020 = vld [vmem:[%s6 + $0x2a0] sm:$0xff]
    %v2021 = vld [vmem:[%s6 + $0x2a8] sm:$0xff]
    %v2022 = vld [vmem:[%s6 + $0x2b0] sm:$0xff]
    %v2023 = vld [vmem:[%s6 + $0x2b8] sm:$0xff]
    %v2024 = vld [vmem:[%s6 + $0x2c0] sm:$0xff]
    %v2025 = vld [vmem:[%s6 + $0x2c8] sm:$0xff]
    %v2026 = vld [vmem:[%s6 + $0x2d0] sm:$0xff]
    %v2027 = vld [vmem:[%s6 + $0x2d8] sm:$0xff]
    %v2028 = vld [vmem:[%s6 + $0x2e0] sm:$0xff]
    %v2029 = vld [vmem:[%s6 + $0x2e8] sm:$0xff]
    %v2030 = vld [vmem:[%s6 + $0x2f0] sm:$0xff]
    %v2031 = vld [vmem:[%s6 + $0x2f8] sm:$0xff]
    %v2032 = vld [vmem:[%s7] sm:$0x3]
    %v2034 = vlaneseq
    %v2035 = vshrl.u32 %v2034, 7
    %v2036 = vsub.s32 0, %v2035
    %v2037 = vrot.slane %v2032, %v2036
    %v2038 = vlaneseq
    %v2039 = vshrl.u32 %v2038, 7
    %v2040 = vsub.s32 1, %v2039
    %v2041 = vrot.slane %v2032, %v2040
    %2044 = vmatprep.subr.mxu0 %v1937
    %2045 = vmatpush1.msra.mxu0 %v1936
    %2046 = vmatprep.subr.mxu0 %v1939
    %2047 = vmatpush1.msra.mxu0 %v1938
    %2048 = vmatprep.subr.mxu0 %v1941
    %2049 = vmatpush1.msra.mxu0 %v1940
    %2050 = vmatprep.subr.mxu0 %v1943
    %2051 = vmatpush1.msra.mxu0 %v1942
    %2052 = vmatprep.subr.mxu0 %v1945
    %2053 = vmatpush1.msra.mxu0 %v1944
    %2054 = vmatprep.subr.mxu0 %v1947
    %2055 = vmatpush1.msra.mxu0 %v1946
    %2056 = vmatprep.subr.mxu0 %v1949
    %2057 = vmatpush1.msra.mxu0 %v1948
    %2058 = vmatprep.subr.mxu0 %v1951
    %2059 = vmatpush1.msra.mxu0 %v1950
    %2060 = vmatprep.subr.mxu0 %v1953
    %2061 = vmatpush1.msra.mxu0 %v1952
    %2062 = vmatprep.subr.mxu0 %v1955
    %2063 = vmatpush1.msra.mxu0 %v1954
    %2064 = vmatprep.subr.mxu0 %v1957
    %2065 = vmatpush1.msra.mxu0 %v1956
    %2066 = vmatprep.subr.mxu0 %v1959
    %2067 = vmatpush1.msra.mxu0 %v1958
    %2068 = vmatprep.subr.mxu0 %v1961
    %2069 = vmatpush1.msra.mxu0 %v1960
    %2070 = vmatprep.subr.mxu0 %v1963
    %2071 = vmatpush1.msra.mxu0 %v1962
    %2072 = vmatprep.subr.mxu0 %v1965
    %2073 = vmatpush1.msra.mxu0 %v1964
    %2074 = vmatprep.subr.mxu0 %v1967
    %2075 = vmatpush1.msra.mxu0 %v1966
    %2076 = vmatprep.subr.mxu0 %v1969
    %2077 = vmatpush1.msra.mxu0 %v1968
    %2078 = vmatprep.subr.mxu0 %v1971
    %2079 = vmatpush1.msra.mxu0 %v1970
    %2080 = vmatprep.subr.mxu0 %v1973
    %2081 = vmatpush1.msra.mxu0 %v1972
    %2082 = vmatprep.subr.mxu0 %v1975
    %2083 = vmatpush1.msra.mxu0 %v1974
    %2084 = vmatprep.subr.mxu0 %v1977
    %2085 = vmatpush1.msra.mxu0 %v1976
    %2086 = vmatprep.subr.mxu0 %v1979
    %2087 = vmatpush1.msra.mxu0 %v1978
    %2088 = vmatprep.subr.mxu0 %v1981
    %2089 = vmatpush1.msra.mxu0 %v1980
    %2090 = vmatprep.subr.mxu0 %v1983
    %2091 = vmatpush1.msra.mxu0 %v1982
    %2092 = vmatprep.subr.mxu0 %v1985
    %2093 = vmatpush1.msra.mxu0 %v1984
    %2094 = vmatprep.subr.mxu0 %v1987
    %2095 = vmatpush1.msra.mxu0 %v1986
    %2096 = vmatprep.subr.mxu0 %v1989
    %2097 = vmatpush1.msra.mxu0 %v1988
    %2098 = vmatprep.subr.mxu0 %v1991
    %2099 = vmatpush1.msra.mxu0 %v1990
    %2100 = vmatprep.subr.mxu0 %v1993
    %2101 = vmatpush1.msra.mxu0 %v1992
    %2102 = vmatprep.subr.mxu0 %v1995
    %2103 = vmatpush1.msra.mxu0 %v1994
    %2104 = vmatprep.subr.mxu0 %v1997
    %2105 = vmatpush1.msra.mxu0 %v1996
    %2106 = vmatprep.subr.mxu0 %v1999
    %2107 = vmatpush1.msra.mxu0 %v1998
    %2108 = vmatprep.mubr.f32.mxu0 %v43
    %2109 = vmatmul.mubr.f32.gmra.mrb[0].mxu0 %v42
    %v2110 = vpop.f32.mrb[0].mxu0
    %v2111 = vadd.f32 %v2037, %v2110
    %v2112 = vpop.f32.mrb[0].mxu0
    %v2113 = vadd.f32 %v2041, %v2112
    %2114 = vmatprep.mubr.f32.mxu0 %v46
    %2115 = vmatmul.mubr.f32.gmra.mrb[0].mxu0 %v45
    %v2116 = vpop.f32.mrb[0].mxu0
    %v2117 = vadd.f32 %v2037, %v2116
    %v2118 = vpop.f32.mrb[0].mxu0
    %v2119 = vadd.f32 %v2041, %v2118
    %2120 = vmatprep.mubr.f32.mxu0 %v49
    %2121 = vmatmul.mubr.f32.gmra.mrb[0].mxu0 %v48
    %v2122 = vpop.f32.mrb[0].mxu0
    %v2123 = vadd.f32 %v2037, %v2122
    %v2124 = vpop.f32.mrb[0].mxu0
    %v2125 = vadd.f32 %v2041, %v2124
    %2126 = vmatprep.mubr.f32.mxu0 %v52
    %2127 = vmatmul.mubr.f32.gmra.mrb[0].mxu0 %v51
    %v2128 = vpop.f32.mrb[0].mxu0
    %v2129 = vadd.f32 %v2037, %v2128
    %v2130 = vpop.f32.mrb[0].mxu0
    %v2131 = vadd.f32 %v2041, %v2130
    %2132 = vmatprep.mubr.f32.mxu0 %v55
    %2133 = vmatmul.mubr.f32.gmra.mrb[0].mxu0 %v54
    %v2134 = vpop.f32.mrb[0].mxu0
    %v2135 = vadd.f32 %v2037, %v2134
    %v2136 = vpop.f32.mrb[0].mxu0
    %v2137 = vadd.f32 %v2041, %v2136
    %2138 = vmatprep.mubr.f32.mxu0 %v58
    %2139 = vmatmul.mubr.f32.gmra.mrb[0].mxu0 %v57
    %v2140 = vpop.f32.mrb[0].mxu0
    %v2141 = vadd.f32 %v2037, %v2140
    %v2142 = vpop.f32.mrb[0].mxu0
    %v2143 = vadd.f32 %v2041, %v2142
    %2144 = vdwg.mxu0
    %2145 = vmatprep.subr.mxu0 %v2001
    %2146 = vmatpush1.msra.mxu0 %v2000
    %2147 = vmatprep.subr.mxu0 %v2003
    %2148 = vmatpush1.msra.mxu0 %v2002
    %2149 = vmatprep.subr.mxu0 %v2005
    %2150 = vmatpush1.msra.mxu0 %v2004
    %2151 = vmatprep.subr.mxu0 %v2007
    %2152 = vmatpush1.msra.mxu0 %v2006
    %2153 = vmatprep.subr.mxu0 %v2009
    %2154 = vmatpush1.msra.mxu0 %v2008
    %2155 = vmatprep.subr.mxu0 %v2011
    %2156 = vmatpush1.msra.mxu0 %v2010
    %2157 = vmatprep.subr.mxu0 %v2013
    %2158 = vmatpush1.msra.mxu0 %v2012
    %2159 = vmatprep.subr.mxu0 %v2015
    %2160 = vmatpush1.msra.mxu0 %v2014
    %2161 = vmatprep.subr.mxu0 %v2017
    %2162 = vmatpush1.msra.mxu0 %v2016
    %2163 = vmatprep.subr.mxu0 %v2019
    %2164 = vmatpush1.msra.mxu0 %v2018
    %2165 = vmatprep.subr.mxu0 %v2021
    %2166 = vmatpush1.msra.mxu0 %v2020
    %2167 = vmatprep.subr.mxu0 %v2023
    %2168 = vmatpush1.msra.mxu0 %v2022
    %2169 = vmatprep.subr.mxu0 %v2025
    %2170 = vmatpush1.msra.mxu0 %v2024
    %2171 = vmatprep.subr.mxu0 %v2027
    %2172 = vmatpush1.msra.mxu0 %v2026
    %2173 = vmatprep.subr.mxu0 %v2029
    %2174 = vmatpush1.msra.mxu0 %v2028
    %2175 = vmatprep.subr.mxu0 %v2031
    %2176 = vmatpush1.msra.mxu0 %v2030
    %2177 = vmatprep.subr.mxu0 0.0
    %2178 = vmatpush1.msra.mxu0 0.0
    %2179 = vmatprep.subr.mxu0 0.0
    %2180 = vmatpush1.msra.mxu0 0.0
    %2181 = vmatprep.subr.mxu0 0.0
    %2182 = vmatpush1.msra.mxu0 0.0
    %2183 = vmatprep.subr.mxu0 0.0
    %2184 = vmatpush1.msra.mxu0 0.0
    %2185 = vmatprep.subr.mxu0 0.0
    %2186 = vmatpush1.msra.mxu0 0.0
    %2187 = vmatprep.subr.mxu0 0.0
    %2188 = vmatpush1.msra.mxu0 0.0
    %2189 = vmatprep.subr.mxu0 0.0
    %2190 = vmatpush1.msra.mxu0 0.0
    %2191 = vmatprep.subr.mxu0 0.0
    %2192 = vmatpush1.msra.mxu0 0.0
    %2193 = vmatprep.subr.mxu0 0.0
    %2194 = vmatpush1.msra.mxu0 0.0
    %2195 = vmatprep.subr.mxu0 0.0
    %2196 = vmatpush1.msra.mxu0 0.0
    %2197 = vmatprep.subr.mxu0 0.0
    %2198 = vmatpush1.msra.mxu0 0.0
    %2199 = vmatprep.subr.mxu0 0.0
    %2200 = vmatpush1.msra.mxu0 0.0
    %2201 = vmatprep.subr.mxu0 0.0
    %2202 = vmatpush1.msra.mxu0 0.0
    %2203 = vmatprep.subr.mxu0 0.0
    %2204 = vmatpush1.msra.mxu0 0.0
    %2205 = vmatprep.subr.mxu0 0.0
    %2206 = vmatpush1.msra.mxu0 0.0
    %2207 = vmatprep.subr.mxu0 0.0
    %2208 = vmatpush1.msra.mxu0 0.0
    %2209 = vmatprep.mubr.f32.mxu0 0.0
    %2210 = vmatmul.mubr.f32.gmra.mrb[0].mxu0 %v44
    %v2211 = vpop.f32.mrb[0].mxu0
    %v2212 = vadd.f32 %v2111, %v2211
    %v2213 = vpop.f32.mrb[0].mxu0
    %v2214 = vadd.f32 %v2113, %v2213
    %2215 = vmatprep.mubr.f32.mxu0 0.0
    %2216 = vmatmul.mubr.f32.gmra.mrb[0].mxu0 %v47
    %v2217 = vpop.f32.mrb[0].mxu0
    %v2218 = vadd.f32 %v2117, %v2217
    %v2219 = vpop.f32.mrb[0].mxu0
    %v2220 = vadd.f32 %v2119, %v2219
    %2221 = vmatprep.mubr.f32.mxu0 0.0
    %2222 = vmatmul.mubr.f32.gmra.mrb[0].mxu0 %v50
    %v2223 = vpop.f32.mrb[0].mxu0
    %v2224 = vadd.f32 %v2123, %v2223
    %v2225 = vpop.f32.mrb[0].mxu0
    %v2226 = vadd.f32 %v2125, %v2225
    %2227 = vmatprep.mubr.f32.mxu0 0.0
    %2228 = vmatmul.mubr.f32.gmra.mrb[0].mxu0 %v53
    %v2229 = vpop.f32.mrb[0].mxu0
    %v2230 = vadd.f32 %v2129, %v2229
    %v2231 = vpop.f32.mrb[0].mxu0
    %v2232 = vadd.f32 %v2131, %v2231
    %2233 = vmatprep.mubr.f32.mxu0 0.0
    %2234 = vmatmul.mubr.f32.gmra.mrb[0].mxu0 %v56
    %v2235 = vpop.f32.mrb[0].mxu0
    %v2236 = vadd.f32 %v2135, %v2235
    %v2237 = vpop.f32.mrb[0].mxu0
    %v2238 = vadd.f32 %v2137, %v2237
    %2239 = vmatprep.mubr.f32.mxu0 0.0
    %2240 = vmatmul.mubr.f32.gmra.mrb[0].mxu0 %v59
    %v2241 = vpop.f32.mrb[0].mxu0
    %v2242 = vadd.f32 %v2141, %v2241
    %v2243 = vpop.f32.mrb[0].mxu0
    %v2244 = vadd.f32 %v2143, %v2243
    %2245 = vdwg.mxu0
    %v2246 = vmax.f32 %v2212, 0.0
    %v2247 = vmax.f32 %v2214, 0.0
    %v2248 = vmax.f32 %v2218, 0.0
    %v2249 = vmax.f32 %v2220, 0.0
    %v2250 = vmax.f32 %v2224, 0.0
    %v2251 = vmax.f32 %v2226, 0.0
    %v2252 = vmax.f32 %v2230, 0.0
    %v2253 = vmax.f32 %v2232, 0.0
    %v2254 = vmax.f32 %v2236, 0.0
    %v2255 = vmax.f32 %v2238, 0.0
    %v2256 = vmax.f32 %v2242, 0.0
    %v2257 = vmax.f32 %v2244, 0.0
    %v2258 = vld [vmem:[%s3] sm:$0xff]
    %v2259 = vld [vmem:[%s3 + $0x8] sm:$0xff]
    %v2260 = vld [vmem:[%s3 + $0x10] sm:$0xff]
    %v2261 = vld [vmem:[%s3 + $0x18] sm:$0xff]
    %v2262 = vld [vmem:[%s3 + $0x20] sm:$0xff]
    %v2263 = vld [vmem:[%s3 + $0x28] sm:$0xff]
    %2265 = vset.pattern.permute.xlu0 0
    %2266 = vperm.xlu0 %2265, %v2258
    %v2267 = vpop.permute.xlu0 %2266
    %2270 = vset.pattern.permute.xlu0 0
    %2271 = vperm.xlu0 %2270, %v2259
    %v2272 = vpop.permute.xlu0 %2271
    %2275 = vset.pattern.permute.xlu0 0
    %2276 = vperm.xlu0 %2275, %v2260
    %v2277 = vpop.permute.xlu0 %2276
    %2280 = vset.pattern.permute.xlu0 0
    %2281 = vperm.xlu0 %2280, %v2261
    %v2282 = vpop.permute.xlu0 %2281
    %2285 = vset.pattern.permute.xlu0 0
    %2286 = vperm.xlu0 %2285, %v2262
    %v2287 = vpop.permute.xlu0 %2286
    %2290 = vset.pattern.permute.xlu0 0
    %2291 = vperm.xlu0 %2290, %v2263
    %v2292 = vpop.permute.xlu0 %2291
    %v2294 = vmul.f32 %v2246, %v2267
    %v2295 = vmul.f32 %v2247, %v2267
    %v2296 = vmul.f32 %v2248, %v2272
    %v2297 = vmul.f32 %v2249, %v2272
    %v2298 = vmul.f32 %v2250, %v2277
    %v2299 = vmul.f32 %v2251, %v2277
    %v2300 = vmul.f32 %v2252, %v2282
    %v2301 = vmul.f32 %v2253, %v2282
    %v2302 = vmul.f32 %v2254, %v2287
    %v2303 = vmul.f32 %v2255, %v2287
    %v2304 = vmul.f32 %v2256, %v2292
    %v2305 = vmul.f32 %v2257, %v2292
    %v2306 = vld [vmem:[%s2] sm:$0xff]
    %v2307 = vld [vmem:[%s2 + $0x8] sm:$0xff]
    %v2308 = vld [vmem:[%s2 + $0x10] sm:$0xff]
    %v2309 = vld [vmem:[%s2 + $0x18] sm:$0xff]
    %v2310 = vld [vmem:[%s2 + $0x20] sm:$0xff]
    %v2311 = vld [vmem:[%s2 + $0x28] sm:$0xff]
    %v2313 = vsel %vm62, %v2306, 0
    %v2316 = vsel %vm62, %v2307, 0
    %v2319 = vsel %vm62, %v2308, 0
    %v2322 = vsel %vm62, %v2309, 0
    %v2325 = vsel %vm62, %v2310, 0
    %v2328 = vsel %vm62, %v2311, 0
    %2330 = vmatprep.subr.mxu0 %v2295
    %2331 = vmatpush1.msra.mxu0 %v2294
    %2332 = vmatprep.subr.mxu0 %v2297
    %2333 = vmatpush1.msra.mxu0 %v2296
    %2334 = vmatprep.subr.mxu0 %v2299
    %2335 = vmatpush1.msra.mxu0 %v2298
    %2336 = vmatprep.subr.mxu0 %v2301
    %2337 = vmatpush1.msra.mxu0 %v2300
    %2338 = vmatprep.subr.mxu0 %v2303
    %2339 = vmatpush1.msra.mxu0 %v2302
    %2340 = vmatprep.subr.mxu0 %v2305
    %2341 = vmatpush1.msra.mxu0 %v2304
    %2342 = vmatprep.subr.mxu0 0.0
    %2343 = vmatpush1.msra.mxu0 0.0
    %2344 = vmatprep.subr.mxu0 0.0
    %2345 = vmatpush1.msra.mxu0 0.0
    %2346 = vmatprep.subr.mxu0 0.0
    %2347 = vmatpush1.msra.mxu0 0.0
    %2348 = vmatprep.subr.mxu0 0.0
    %2349 = vmatpush1.msra.mxu0 0.0
    %2350 = vmatprep.subr.mxu0 0.0
    %2351 = vmatpush1.msra.mxu0 0.0
    %2352 = vmatprep.subr.mxu0 0.0
    %2353 = vmatpush1.msra.mxu0 0.0
    %2354 = vmatprep.subr.mxu0 0.0
    %2355 = vmatpush1.msra.mxu0 0.0
    %2356 = vmatprep.subr.mxu0 0.0
    %2357 = vmatpush1.msra.mxu0 0.0
    %2358 = vmatprep.subr.mxu0 0.0
    %2359 = vmatpush1.msra.mxu0 0.0
    %2360 = vmatprep.subr.mxu0 0.0
    %2361 = vmatpush1.msra.mxu0 0.0
    %2362 = vmatprep.subr.mxu0 0.0
    %2363 = vmatpush1.msra.mxu0 0.0
    %2364 = vmatprep.subr.mxu0 0.0
    %2365 = vmatpush1.msra.mxu0 0.0
    %2366 = vmatprep.subr.mxu0 0.0
    %2367 = vmatpush1.msra.mxu0 0.0
    %2368 = vmatprep.subr.mxu0 0.0
    %2369 = vmatpush1.msra.mxu0 0.0
    %2370 = vmatprep.subr.mxu0 0.0
    %2371 = vmatpush1.msra.mxu0 0.0
    %2372 = vmatprep.subr.mxu0 0.0
    %2373 = vmatpush1.msra.mxu0 0.0
    %2374 = vmatprep.subr.mxu0 0.0
    %2375 = vmatpush1.msra.mxu0 0.0
    %2376 = vmatprep.subr.mxu0 0.0
    %2377 = vmatpush1.msra.mxu0 0.0
    %2378 = vmatprep.subr.mxu0 0.0
    %2379 = vmatpush1.msra.mxu0 0.0
    %2380 = vmatprep.subr.mxu0 0.0
    %2381 = vmatpush1.msra.mxu0 0.0
    %2382 = vmatprep.subr.mxu0 0.0
    %2383 = vmatpush1.msra.mxu0 0.0
    %2384 = vmatprep.subr.mxu0 0.0
    %2385 = vmatpush1.msra.mxu0 0.0
    %2386 = vmatprep.subr.mxu0 0.0
    %2387 = vmatpush1.msra.mxu0 0.0
    %2388 = vmatprep.subr.mxu0 0.0
    %2389 = vmatpush1.msra.mxu0 0.0
    %2390 = vmatprep.subr.mxu0 0.0
    %2391 = vmatpush1.msra.mxu0 0.0
    %2392 = vmatprep.subr.mxu0 0.0
    %2393 = vmatpush1.msra.mxu0 0.0
    %2394 = vmatprep.mubr.f32.mxu0 0.0
    %2395 = vmatmul.mubr.f32.gmra.mrb[0].mxu0 %v2313
    %v2396 = vpop.f32.mrb[0].mxu0
    %v2397 = vadd.f32 0.0, %v2396
    %v2398 = vpop.f32.mrb[0].mxu0
    %v2399 = vadd.f32 0.0, %v2398
    %2400 = vmatprep.mubr.f32.mxu0 0.0
    %2401 = vmatmul.mubr.f32.gmra.mrb[0].mxu0 %v2316
    %v2402 = vpop.f32.mrb[0].mxu0
    %v2403 = vadd.f32 0.0, %v2402
    %v2404 = vpop.f32.mrb[0].mxu0
    %v2405 = vadd.f32 0.0, %v2404
    %2406 = vmatprep.mubr.f32.mxu0 0.0
    %2407 = vmatmul.mubr.f32.gmra.mrb[0].mxu0 %v2319
    %v2408 = vpop.f32.mrb[0].mxu0
    %v2409 = vadd.f32 0.0, %v2408
    %v2410 = vpop.f32.mrb[0].mxu0
    %v2411 = vadd.f32 0.0, %v2410
    %2412 = vmatprep.mubr.f32.mxu0 0.0
    %2413 = vmatmul.mubr.f32.gmra.mrb[0].mxu0 %v2322
    %v2414 = vpop.f32.mrb[0].mxu0
    %v2415 = vadd.f32 0.0, %v2414
    %v2416 = vpop.f32.mrb[0].mxu0
    %v2417 = vadd.f32 0.0, %v2416
    %2418 = vmatprep.mubr.f32.mxu0 0.0
    %2419 = vmatmul.mubr.f32.gmra.mrb[0].mxu0 %v2325
    %v2420 = vpop.f32.mrb[0].mxu0
    %v2421 = vadd.f32 0.0, %v2420
    %v2422 = vpop.f32.mrb[0].mxu0
    %v2423 = vadd.f32 0.0, %v2422
    %2424 = vmatprep.mubr.f32.mxu0 0.0
    %2425 = vmatmul.mubr.f32.gmra.mrb[0].mxu0 %v2328
    %v2426 = vpop.f32.mrb[0].mxu0
    %v2427 = vadd.f32 0.0, %v2426
    %v2428 = vpop.f32.mrb[0].mxu0
    %v2429 = vadd.f32 0.0, %v2428
    %2430 = vdwg.mxu0
    %s2431 = scalar_lea.vmem %s2, 48
    %v2432 = vld [vmem:[%s2431] sm:$0xff]
    %v2433 = vld [vmem:[%s2431 + $0x8] sm:$0xff]
    %v2434 = vld [vmem:[%s2431 + $0x10] sm:$0xff]
    %v2435 = vld [vmem:[%s2431 + $0x18] sm:$0xff]
    %v2436 = vld [vmem:[%s2431 + $0x20] sm:$0xff]
    %v2437 = vld [vmem:[%s2431 + $0x28] sm:$0xff]
    %v2439 = vsel %vm62, %v2432, 0
    %v2442 = vsel %vm62, %v2433, 0
    %v2445 = vsel %vm62, %v2434, 0
    %v2448 = vsel %vm62, %v2435, 0
    %v2451 = vsel %vm62, %v2436, 0
    %v2454 = vsel %vm62, %v2437, 0
    %2456 = vmatprep.subr.mxu0 %v2295
    %2457 = vmatpush1.msra.mxu0 %v2294
    %2458 = vmatprep.subr.mxu0 %v2297
    %2459 = vmatpush1.msra.mxu0 %v2296
    %2460 = vmatprep.subr.mxu0 %v2299
    %2461 = vmatpush1.msra.mxu0 %v2298
    %2462 = vmatprep.subr.mxu0 %v2301
    %2463 = vmatpush1.msra.mxu0 %v2300
    %2464 = vmatprep.subr.mxu0 %v2303
    %2465 = vmatpush1.msra.mxu0 %v2302
    %2466 = vmatprep.subr.mxu0 %v2305
    %2467 = vmatpush1.msra.mxu0 %v2304
    %2468 = vmatprep.subr.mxu0 0.0
    %2469 = vmatpush1.msra.mxu0 0.0
    %2470 = vmatprep.subr.mxu0 0.0
    %2471 = vmatpush1.msra.mxu0 0.0
    %2472 = vmatprep.subr.mxu0 0.0
    %2473 = vmatpush1.msra.mxu0 0.0
    %2474 = vmatprep.subr.mxu0 0.0
    %2475 = vmatpush1.msra.mxu0 0.0
    %2476 = vmatprep.subr.mxu0 0.0
    %2477 = vmatpush1.msra.mxu0 0.0
    %2478 = vmatprep.subr.mxu0 0.0
    %2479 = vmatpush1.msra.mxu0 0.0
    %2480 = vmatprep.subr.mxu0 0.0
    %2481 = vmatpush1.msra.mxu0 0.0
    %2482 = vmatprep.subr.mxu0 0.0
    %2483 = vmatpush1.msra.mxu0 0.0
    %2484 = vmatprep.subr.mxu0 0.0
    %2485 = vmatpush1.msra.mxu0 0.0
    %2486 = vmatprep.subr.mxu0 0.0
    %2487 = vmatpush1.msra.mxu0 0.0
    %2488 = vmatprep.subr.mxu0 0.0
    %2489 = vmatpush1.msra.mxu0 0.0
    %2490 = vmatprep.subr.mxu0 0.0
    %2491 = vmatpush1.msra.mxu0 0.0
    %2492 = vmatprep.subr.mxu0 0.0
    %2493 = vmatpush1.msra.mxu0 0.0
    %2494 = vmatprep.subr.mxu0 0.0
    %2495 = vmatpush1.msra.mxu0 0.0
    %2496 = vmatprep.subr.mxu0 0.0
    %2497 = vmatpush1.msra.mxu0 0.0
    %2498 = vmatprep.subr.mxu0 0.0
    %2499 = vmatpush1.msra.mxu0 0.0
    %2500 = vmatprep.subr.mxu0 0.0
    %2501 = vmatpush1.msra.mxu0 0.0
    %2502 = vmatprep.subr.mxu0 0.0
    %2503 = vmatpush1.msra.mxu0 0.0
    %2504 = vmatprep.subr.mxu0 0.0
    %2505 = vmatpush1.msra.mxu0 0.0
    %2506 = vmatprep.subr.mxu0 0.0
    %2507 = vmatpush1.msra.mxu0 0.0
    %2508 = vmatprep.subr.mxu0 0.0
    %2509 = vmatpush1.msra.mxu0 0.0
    %2510 = vmatprep.subr.mxu0 0.0
    %2511 = vmatpush1.msra.mxu0 0.0
    %2512 = vmatprep.subr.mxu0 0.0
    %2513 = vmatpush1.msra.mxu0 0.0
    %2514 = vmatprep.subr.mxu0 0.0
    %2515 = vmatpush1.msra.mxu0 0.0
    %2516 = vmatprep.subr.mxu0 0.0
    %2517 = vmatpush1.msra.mxu0 0.0
    %2518 = vmatprep.subr.mxu0 0.0
    %2519 = vmatpush1.msra.mxu0 0.0
    %2520 = vmatprep.mubr.f32.mxu0 0.0
    %2521 = vmatmul.mubr.f32.gmra.mrb[0].mxu0 %v2439
    %v2522 = vpop.f32.mrb[0].mxu0
    %v2523 = vadd.f32 0.0, %v2522
    %v2524 = vpop.f32.mrb[0].mxu0
    %v2525 = vadd.f32 0.0, %v2524
    %2526 = vmatprep.mubr.f32.mxu0 0.0
    %2527 = vmatmul.mubr.f32.gmra.mrb[0].mxu0 %v2442
    %v2528 = vpop.f32.mrb[0].mxu0
    %v2529 = vadd.f32 0.0, %v2528
    %v2530 = vpop.f32.mrb[0].mxu0
    %v2531 = vadd.f32 0.0, %v2530
    %2532 = vmatprep.mubr.f32.mxu0 0.0
    %2533 = vmatmul.mubr.f32.gmra.mrb[0].mxu0 %v2445
    %v2534 = vpop.f32.mrb[0].mxu0
    %v2535 = vadd.f32 0.0, %v2534
    %v2536 = vpop.f32.mrb[0].mxu0
    %v2537 = vadd.f32 0.0, %v2536
    %2538 = vmatprep.mubr.f32.mxu0 0.0
    %2539 = vmatmul.mubr.f32.gmra.mrb[0].mxu0 %v2448
    %v2540 = vpop.f32.mrb[0].mxu0
    %v2541 = vadd.f32 0.0, %v2540
    %v2542 = vpop.f32.mrb[0].mxu0
    %v2543 = vadd.f32 0.0, %v2542
    %2544 = vmatprep.mubr.f32.mxu0 0.0
    %2545 = vmatmul.mubr.f32.gmra.mrb[0].mxu0 %v2451
    %v2546 = vpop.f32.mrb[0].mxu0
    %v2547 = vadd.f32 0.0, %v2546
    %v2548 = vpop.f32.mrb[0].mxu0
    %v2549 = vadd.f32 0.0, %v2548
    %2550 = vmatprep.mubr.f32.mxu0 0.0
    %2551 = vmatmul.mubr.f32.gmra.mrb[0].mxu0 %v2454
    %v2552 = vpop.f32.mrb[0].mxu0
    %v2553 = vadd.f32 0.0, %v2552
    %v2554 = vpop.f32.mrb[0].mxu0
    %v2555 = vadd.f32 0.0, %v2554
    %2556 = vdwg.mxu0
    %v2557 = vld [vmem:[%s8] sm:$0xff]
    %v2558 = vld [vmem:[%s8 + $0x8] sm:$0xff]
    %v2559 = vld [vmem:[%s8 + $0x10] sm:$0xff]
    %v2560 = vld [vmem:[%s8 + $0x18] sm:$0xff]
    %v2561 = vld [vmem:[%s8 + $0x20] sm:$0xff]
    %v2562 = vld [vmem:[%s8 + $0x28] sm:$0xff]
    %v2563 = vld [vmem:[%s8 + $0x30] sm:$0xff]
    %v2564 = vld [vmem:[%s8 + $0x38] sm:$0xff]
    %v2565 = vld [vmem:[%s8 + $0x40] sm:$0xff]
    %v2566 = vld [vmem:[%s8 + $0x48] sm:$0xff]
    %v2567 = vld [vmem:[%s8 + $0x50] sm:$0xff]
    %v2568 = vld [vmem:[%s8 + $0x58] sm:$0xff]
    %v2569 = vld [vmem:[%s8 + $0x60] sm:$0xff]
    %v2570 = vld [vmem:[%s8 + $0x68] sm:$0xff]
    %v2571 = vld [vmem:[%s8 + $0x70] sm:$0xff]
    %v2572 = vld [vmem:[%s8 + $0x78] sm:$0xff]
    %v2573 = vld [vmem:[%s8 + $0x80] sm:$0xff]
    %v2574 = vld [vmem:[%s8 + $0x88] sm:$0xff]
    %v2575 = vld [vmem:[%s8 + $0x90] sm:$0xff]
    %v2576 = vld [vmem:[%s8 + $0x98] sm:$0xff]
    %v2577 = vld [vmem:[%s8 + $0xa0] sm:$0xff]
    %v2578 = vld [vmem:[%s8 + $0xa8] sm:$0xff]
    %v2579 = vld [vmem:[%s8 + $0xb0] sm:$0xff]
    %v2580 = vld [vmem:[%s8 + $0xb8] sm:$0xff]
    %v2581 = vld [vmem:[%s8 + $0xc0] sm:$0xff]
    %v2582 = vld [vmem:[%s8 + $0xc8] sm:$0xff]
    %v2583 = vld [vmem:[%s8 + $0xd0] sm:$0xff]
    %v2584 = vld [vmem:[%s8 + $0xd8] sm:$0xff]
    %v2585 = vld [vmem:[%s8 + $0xe0] sm:$0xff]
    %v2586 = vld [vmem:[%s8 + $0xe8] sm:$0xff]
    %v2587 = vld [vmem:[%s8 + $0xf0] sm:$0xff]
    %v2588 = vld [vmem:[%s8 + $0xf8] sm:$0xff]
    %v2589 = vld [vmem:[%s8 + $0x100] sm:$0xff]
    %v2590 = vld [vmem:[%s8 + $0x108] sm:$0xff]
    %v2591 = vld [vmem:[%s8 + $0x110] sm:$0xff]
    %v2592 = vld [vmem:[%s8 + $0x118] sm:$0xff]
    %v2593 = vld [vmem:[%s8 + $0x120] sm:$0xff]
    %v2594 = vld [vmem:[%s8 + $0x128] sm:$0xff]
    %v2595 = vld [vmem:[%s8 + $0x130] sm:$0xff]
    %v2596 = vld [vmem:[%s8 + $0x138] sm:$0xff]
    %v2597 = vld [vmem:[%s8 + $0x140] sm:$0xff]
    %v2598 = vld [vmem:[%s8 + $0x148] sm:$0xff]
    %v2599 = vld [vmem:[%s8 + $0x150] sm:$0xff]
    %v2600 = vld [vmem:[%s8 + $0x158] sm:$0xff]
    %v2601 = vld [vmem:[%s8 + $0x160] sm:$0xff]
    %v2602 = vld [vmem:[%s8 + $0x168] sm:$0xff]
    %v2603 = vld [vmem:[%s8 + $0x170] sm:$0xff]
    %v2604 = vld [vmem:[%s8 + $0x178] sm:$0xff]
    %s2605 = scalar_lea.vmem %s8, 384
    %v2606 = vld [vmem:[%s2605] sm:$0xff]
    %v2607 = vld [vmem:[%s2605 + $0x8] sm:$0xff]
    %v2608 = vld [vmem:[%s2605 + $0x10] sm:$0xff]
    %v2609 = vld [vmem:[%s2605 + $0x18] sm:$0xff]
    %v2610 = vld [vmem:[%s2605 + $0x20] sm:$0xff]
    %v2611 = vld [vmem:[%s2605 + $0x28] sm:$0xff]
    %v2612 = vld [vmem:[%s2605 + $0x30] sm:$0xff]
    %v2613 = vld [vmem:[%s2605 + $0x38] sm:$0xff]
    %v2614 = vld [vmem:[%s2605 + $0x40] sm:$0xff]
    %v2615 = vld [vmem:[%s2605 + $0x48] sm:$0xff]
    %v2616 = vld [vmem:[%s2605 + $0x50] sm:$0xff]
    %v2617 = vld [vmem:[%s2605 + $0x58] sm:$0xff]
    %v2618 = vld [vmem:[%s2605 + $0x60] sm:$0xff]
    %v2619 = vld [vmem:[%s2605 + $0x68] sm:$0xff]
    %v2620 = vld [vmem:[%s2605 + $0x70] sm:$0xff]
    %v2621 = vld [vmem:[%s2605 + $0x78] sm:$0xff]
    %v2622 = vld [vmem:[%s2605 + $0x80] sm:$0xff]
    %v2623 = vld [vmem:[%s2605 + $0x88] sm:$0xff]
    %v2624 = vld [vmem:[%s2605 + $0x90] sm:$0xff]
    %v2625 = vld [vmem:[%s2605 + $0x98] sm:$0xff]
    %v2626 = vld [vmem:[%s2605 + $0xa0] sm:$0xff]
    %v2627 = vld [vmem:[%s2605 + $0xa8] sm:$0xff]
    %v2628 = vld [vmem:[%s2605 + $0xb0] sm:$0xff]
    %v2629 = vld [vmem:[%s2605 + $0xb8] sm:$0xff]
    %v2630 = vld [vmem:[%s2605 + $0xc0] sm:$0xff]
    %v2631 = vld [vmem:[%s2605 + $0xc8] sm:$0xff]
    %v2632 = vld [vmem:[%s2605 + $0xd0] sm:$0xff]
    %v2633 = vld [vmem:[%s2605 + $0xd8] sm:$0xff]
    %v2634 = vld [vmem:[%s2605 + $0xe0] sm:$0xff]
    %v2635 = vld [vmem:[%s2605 + $0xe8] sm:$0xff]
    %v2636 = vld [vmem:[%s2605 + $0xf0] sm:$0xff]
    %v2637 = vld [vmem:[%s2605 + $0xf8] sm:$0xff]
    %v2638 = vld [vmem:[%s2605 + $0x100] sm:$0xff]
    %v2639 = vld [vmem:[%s2605 + $0x108] sm:$0xff]
    %v2640 = vld [vmem:[%s2605 + $0x110] sm:$0xff]
    %v2641 = vld [vmem:[%s2605 + $0x118] sm:$0xff]
    %v2642 = vld [vmem:[%s2605 + $0x120] sm:$0xff]
    %v2643 = vld [vmem:[%s2605 + $0x128] sm:$0xff]
    %v2644 = vld [vmem:[%s2605 + $0x130] sm:$0xff]
    %v2645 = vld [vmem:[%s2605 + $0x138] sm:$0xff]
    %v2646 = vld [vmem:[%s2605 + $0x140] sm:$0xff]
    %v2647 = vld [vmem:[%s2605 + $0x148] sm:$0xff]
    %v2648 = vld [vmem:[%s2605 + $0x150] sm:$0xff]
    %v2649 = vld [vmem:[%s2605 + $0x158] sm:$0xff]
    %v2650 = vld [vmem:[%s2605 + $0x160] sm:$0xff]
    %v2651 = vld [vmem:[%s2605 + $0x168] sm:$0xff]
    %v2652 = vld [vmem:[%s2605 + $0x170] sm:$0xff]
    %v2653 = vld [vmem:[%s2605 + $0x178] sm:$0xff]
    %vm2654 = vcmask 523264
    %v2656 = vsel %vm2654, %v2295, 0
    %v2659 = vsel %vm2654, %v2297, 0
    %v2662 = vsel %vm2654, %v2299, 0
    %v2665 = vsel %vm2654, %v2301, 0
    %v2668 = vsel %vm2654, %v2303, 0
    %v2671 = vsel %vm2654, %v2305, 0
    %2673 = vmatprep.subr.mxu0 %v2607
    %2674 = vmatpush1.msra.mxu0 %v2606
    %2675 = vmatprep.subr.mxu0 %v2609
    %2676 = vmatpush1.msra.mxu0 %v2608
    %2677 = vmatprep.subr.mxu0 %v2611
    %2678 = vmatpush1.msra.mxu0 %v2610
    %2679 = vmatprep.subr.mxu0 %v2613
    %2680 = vmatpush1.msra.mxu0 %v2612
    %2681 = vmatprep.subr.mxu0 %v2615
    %2682 = vmatpush1.msra.mxu0 %v2614
    %2683 = vmatprep.subr.mxu0 %v2617
    %2684 = vmatpush1.msra.mxu0 %v2616
    %2685 = vmatprep.subr.mxu0 %v2619
    %2686 = vmatpush1.msra.mxu0 %v2618
    %2687 = vmatprep.subr.mxu0 %v2621
    %2688 = vmatpush1.msra.mxu0 %v2620
    %2689 = vmatprep.subr.mxu0 %v2623
    %2690 = vmatpush1.msra.mxu0 %v2622
    %2691 = vmatprep.subr.mxu0 %v2625
    %2692 = vmatpush1.msra.mxu0 %v2624
    %2693 = vmatprep.subr.mxu0 %v2627
    %2694 = vmatpush1.msra.mxu0 %v2626
    %2695 = vmatprep.subr.mxu0 %v2629
    %2696 = vmatpush1.msra.mxu0 %v2628
    %2697 = vmatprep.subr.mxu0 %v2631
    %2698 = vmatpush1.msra.mxu0 %v2630
    %2699 = vmatprep.subr.mxu0 %v2633
    %2700 = vmatpush1.msra.mxu0 %v2632
    %2701 = vmatprep.subr.mxu0 %v2635
    %2702 = vmatpush1.msra.mxu0 %v2634
    %2703 = vmatprep.subr.mxu0 %v2637
    %2704 = vmatpush1.msra.mxu0 %v2636
    %2705 = vmatprep.subr.mxu0 %v2639
    %2706 = vmatpush1.msra.mxu0 %v2638
    %2707 = vmatprep.subr.mxu0 %v2641
    %2708 = vmatpush1.msra.mxu0 %v2640
    %2709 = vmatprep.subr.mxu0 %v2643
    %2710 = vmatpush1.msra.mxu0 %v2642
    %2711 = vmatprep.subr.mxu0 %v2645
    %2712 = vmatpush1.msra.mxu0 %v2644
    %2713 = vmatprep.subr.mxu0 %v2647
    %2714 = vmatpush1.msra.mxu0 %v2646
    %2715 = vmatprep.subr.mxu0 %v2649
    %2716 = vmatpush1.msra.mxu0 %v2648
    %2717 = vmatprep.subr.mxu0 %v2651
    %2718 = vmatpush1.msra.mxu0 %v2650
    %2719 = vmatprep.subr.mxu0 %v2653
    %2720 = vmatpush1.msra.mxu0 %v2652
    %2721 = vmatprep.subr.mxu0 0.0
    %2722 = vmatpush1.msra.mxu0 0.0
    %2723 = vmatprep.subr.mxu0 0.0
    %2724 = vmatpush1.msra.mxu0 0.0
    %2725 = vmatprep.subr.mxu0 0.0
    %2726 = vmatpush1.msra.mxu0 0.0
    %2727 = vmatprep.subr.mxu0 0.0
    %2728 = vmatpush1.msra.mxu0 0.0
    %2729 = vmatprep.subr.mxu0 0.0
    %2730 = vmatpush1.msra.mxu0 0.0
    %2731 = vmatprep.subr.mxu0 0.0
    %2732 = vmatpush1.msra.mxu0 0.0
    %2733 = vmatprep.subr.mxu0 0.0
    %2734 = vmatpush1.msra.mxu0 0.0
    %2735 = vmatprep.subr.mxu0 0.0
    %2736 = vmatpush1.msra.mxu0 0.0
    %2737 = vmatprep.mubr.f32.mxu0 %v2656
    %2738 = vmatmul.mubr.f32.gmra.mrb[0].mxu0 %v2294
    %v2739 = vpop.f32.mrb[0].mxu0
    %v2740 = vadd.f32 0.0, %v2739
    %v2741 = vpop.f32.mrb[0].mxu0
    %v2742 = vadd.f32 0.0, %v2741
    %2743 = vmatprep.mubr.f32.mxu0 %v2659
    %2744 = vmatmul.mubr.f32.gmra.mrb[0].mxu0 %v2296
    %v2745 = vpop.f32.mrb[0].mxu0
    %v2746 = vadd.f32 0.0, %v2745
    %v2747 = vpop.f32.mrb[0].mxu0
    %v2748 = vadd.f32 0.0, %v2747
    %2749 = vmatprep.mubr.f32.mxu0 %v2662
    %2750 = vmatmul.mubr.f32.gmra.mrb[0].mxu0 %v2298
    %v2751 = vpop.f32.mrb[0].mxu0
    %v2752 = vadd.f32 0.0, %v2751
    %v2753 = vpop.f32.mrb[0].mxu0
    %v2754 = vadd.f32 0.0, %v2753
    %2755 = vmatprep.mubr.f32.mxu0 %v2665
    %2756 = vmatmul.mubr.f32.gmra.mrb[0].mxu0 %v2300
    %v2757 = vpop.f32.mrb[0].mxu0
    %v2758 = vadd.f32 0.0, %v2757
    %v2759 = vpop.f32.mrb[0].mxu0
    %v2760 = vadd.f32 0.0, %v2759
    %2761 = vmatprep.mubr.f32.mxu0 %v2668
    %2762 = vmatmul.mubr.f32.gmra.mrb[0].mxu0 %v2302
    %v2763 = vpop.f32.mrb[0].mxu0
    %v2764 = vadd.f32 0.0, %v2763
    %v2765 = vpop.f32.mrb[0].mxu0
    %v2766 = vadd.f32 0.0, %v2765
    %2767 = vmatprep.mubr.f32.mxu0 %v2671
    %2768 = vmatmul.mubr.f32.gmra.mrb[0].mxu0 %v2304
    %v2769 = vpop.f32.mrb[0].mxu0
    %v2770 = vadd.f32 0.0, %v2769
    %v2771 = vpop.f32.mrb[0].mxu0
    %v2772 = vadd.f32 0.0, %v2771
    %2773 = vdwg.mxu0
    %v2775 = vsel %vm2654, %v2399, 0
    %v2778 = vsel %vm2654, %v2405, 0
    %v2781 = vsel %vm2654, %v2411, 0
    %v2784 = vsel %vm2654, %v2417, 0
    %v2787 = vsel %vm2654, %v2423, 0
    %v2790 = vsel %vm2654, %v2429, 0
    %2792 = vmatprep.subr.mxu0 %v2558
    %2793 = vmatpush1.msra.mxu0 %v2557
    %2794 = vmatprep.subr.mxu0 %v2560
    %2795 = vmatpush1.msra.mxu0 %v2559
    %2796 = vmatprep.subr.mxu0 %v2562
    %2797 = vmatpush1.msra.mxu0 %v2561
    %2798 = vmatprep.subr.mxu0 %v2564
    %2799 = vmatpush1.msra.mxu0 %v2563
    %2800 = vmatprep.subr.mxu0 %v2566
    %2801 = vmatpush1.msra.mxu0 %v2565
    %2802 = vmatprep.subr.mxu0 %v2568
    %2803 = vmatpush1.msra.mxu0 %v2567
    %2804 = vmatprep.subr.mxu0 %v2570
    %2805 = vmatpush1.msra.mxu0 %v2569
    %2806 = vmatprep.subr.mxu0 %v2572
    %2807 = vmatpush1.msra.mxu0 %v2571
    %2808 = vmatprep.subr.mxu0 %v2574
    %2809 = vmatpush1.msra.mxu0 %v2573
    %2810 = vmatprep.subr.mxu0 %v2576
    %2811 = vmatpush1.msra.mxu0 %v2575
    %2812 = vmatprep.subr.mxu0 %v2578
    %2813 = vmatpush1.msra.mxu0 %v2577
    %2814 = vmatprep.subr.mxu0 %v2580
    %2815 = vmatpush1.msra.mxu0 %v2579
    %2816 = vmatprep.subr.mxu0 %v2582
    %2817 = vmatpush1.msra.mxu0 %v2581
    %2818 = vmatprep.subr.mxu0 %v2584
    %2819 = vmatpush1.msra.mxu0 %v2583
    %2820 = vmatprep.subr.mxu0 %v2586
    %2821 = vmatpush1.msra.mxu0 %v2585
    %2822 = vmatprep.subr.mxu0 %v2588
    %2823 = vmatpush1.msra.mxu0 %v2587
    %2824 = vmatprep.subr.mxu0 %v2590
    %2825 = vmatpush1.msra.mxu0 %v2589
    %2826 = vmatprep.subr.mxu0 %v2592
    %2827 = vmatpush1.msra.mxu0 %v2591
    %2828 = vmatprep.subr.mxu0 %v2594
    %2829 = vmatpush1.msra.mxu0 %v2593
    %2830 = vmatprep.subr.mxu0 %v2596
    %2831 = vmatpush1.msra.mxu0 %v2595
    %2832 = vmatprep.subr.mxu0 %v2598
    %2833 = vmatpush1.msra.mxu0 %v2597
    %2834 = vmatprep.subr.mxu0 %v2600
    %2835 = vmatpush1.msra.mxu0 %v2599
    %2836 = vmatprep.subr.mxu0 %v2602
    %2837 = vmatpush1.msra.mxu0 %v2601
    %2838 = vmatprep.subr.mxu0 %v2604
    %2839 = vmatpush1.msra.mxu0 %v2603
    %2840 = vmatprep.subr.mxu0 0.0
    %2841 = vmatpush1.msra.mxu0 0.0
    %2842 = vmatprep.subr.mxu0 0.0
    %2843 = vmatpush1.msra.mxu0 0.0
    %2844 = vmatprep.subr.mxu0 0.0
    %2845 = vmatpush1.msra.mxu0 0.0
    %2846 = vmatprep.subr.mxu0 0.0
    %2847 = vmatpush1.msra.mxu0 0.0
    %2848 = vmatprep.subr.mxu0 0.0
    %2849 = vmatpush1.msra.mxu0 0.0
    %2850 = vmatprep.subr.mxu0 0.0
    %2851 = vmatpush1.msra.mxu0 0.0
    %2852 = vmatprep.subr.mxu0 0.0
    %2853 = vmatpush1.msra.mxu0 0.0
    %2854 = vmatprep.subr.mxu0 0.0
    %2855 = vmatpush1.msra.mxu0 0.0
    %2856 = vmatprep.mubr.f32.mxu0 %v2775
    %2857 = vmatmul.mubr.f32.gmra.mrb[0].mxu0 %v2397
    %v2858 = vpop.f32.mrb[0].mxu0
    %v2859 = vadd.f32 %v2740, %v2858
    %v2860 = vpop.f32.mrb[0].mxu0
    %v2861 = vadd.f32 %v2742, %v2860
    %2862 = vmatprep.mubr.f32.mxu0 %v2778
    %2863 = vmatmul.mubr.f32.gmra.mrb[0].mxu0 %v2403
    %v2864 = vpop.f32.mrb[0].mxu0
    %v2865 = vadd.f32 %v2746, %v2864
    %v2866 = vpop.f32.mrb[0].mxu0
    %v2867 = vadd.f32 %v2748, %v2866
    %2868 = vmatprep.mubr.f32.mxu0 %v2781
    %2869 = vmatmul.mubr.f32.gmra.mrb[0].mxu0 %v2409
    %v2870 = vpop.f32.mrb[0].mxu0
    %v2871 = vadd.f32 %v2752, %v2870
    %v2872 = vpop.f32.mrb[0].mxu0
    %v2873 = vadd.f32 %v2754, %v2872
    %2874 = vmatprep.mubr.f32.mxu0 %v2784
    %2875 = vmatmul.mubr.f32.gmra.mrb[0].mxu0 %v2415
    %v2876 = vpop.f32.mrb[0].mxu0
    %v2877 = vadd.f32 %v2758, %v2876
    %v2878 = vpop.f32.mrb[0].mxu0
    %v2879 = vadd.f32 %v2760, %v2878
    %2880 = vmatprep.mubr.f32.mxu0 %v2787
    %2881 = vmatmul.mubr.f32.gmra.mrb[0].mxu0 %v2421
    %v2882 = vpop.f32.mrb[0].mxu0
    %v2883 = vadd.f32 %v2764, %v2882
    %v2884 = vpop.f32.mrb[0].mxu0
    %v2885 = vadd.f32 %v2766, %v2884
    %2886 = vmatprep.mubr.f32.mxu0 %v2790
    %2887 = vmatmul.mubr.f32.gmra.mrb[0].mxu0 %v2427
    %v2888 = vpop.f32.mrb[0].mxu0
    %v2889 = vadd.f32 %v2770, %v2888
    %v2890 = vpop.f32.mrb[0].mxu0
    %v2891 = vadd.f32 %v2772, %v2890
    %2892 = vdwg.mxu0
    %s2893 = scalar_lea.vmem %s8, 768
    %v2894 = vld [vmem:[%s2893] sm:$0xff]
    %v2895 = vld [vmem:[%s2893 + $0x8] sm:$0xff]
    %v2896 = vld [vmem:[%s2893 + $0x10] sm:$0xff]
    %v2897 = vld [vmem:[%s2893 + $0x18] sm:$0xff]
    %v2898 = vld [vmem:[%s2893 + $0x20] sm:$0xff]
    %v2899 = vld [vmem:[%s2893 + $0x28] sm:$0xff]
    %v2900 = vld [vmem:[%s2893 + $0x30] sm:$0xff]
    %v2901 = vld [vmem:[%s2893 + $0x38] sm:$0xff]
    %v2902 = vld [vmem:[%s2893 + $0x40] sm:$0xff]
    %v2903 = vld [vmem:[%s2893 + $0x48] sm:$0xff]
    %v2904 = vld [vmem:[%s2893 + $0x50] sm:$0xff]
    %v2905 = vld [vmem:[%s2893 + $0x58] sm:$0xff]
    %v2906 = vld [vmem:[%s2893 + $0x60] sm:$0xff]
    %v2907 = vld [vmem:[%s2893 + $0x68] sm:$0xff]
    %v2908 = vld [vmem:[%s2893 + $0x70] sm:$0xff]
    %v2909 = vld [vmem:[%s2893 + $0x78] sm:$0xff]
    %v2910 = vld [vmem:[%s2893 + $0x80] sm:$0xff]
    %v2911 = vld [vmem:[%s2893 + $0x88] sm:$0xff]
    %v2912 = vld [vmem:[%s2893 + $0x90] sm:$0xff]
    %v2913 = vld [vmem:[%s2893 + $0x98] sm:$0xff]
    %v2914 = vld [vmem:[%s2893 + $0xa0] sm:$0xff]
    %v2915 = vld [vmem:[%s2893 + $0xa8] sm:$0xff]
    %v2916 = vld [vmem:[%s2893 + $0xb0] sm:$0xff]
    %v2917 = vld [vmem:[%s2893 + $0xb8] sm:$0xff]
    %v2918 = vld [vmem:[%s2893 + $0xc0] sm:$0xff]
    %v2919 = vld [vmem:[%s2893 + $0xc8] sm:$0xff]
    %v2920 = vld [vmem:[%s2893 + $0xd0] sm:$0xff]
    %v2921 = vld [vmem:[%s2893 + $0xd8] sm:$0xff]
    %v2922 = vld [vmem:[%s2893 + $0xe0] sm:$0xff]
    %v2923 = vld [vmem:[%s2893 + $0xe8] sm:$0xff]
    %v2924 = vld [vmem:[%s2893 + $0xf0] sm:$0xff]
    %v2925 = vld [vmem:[%s2893 + $0xf8] sm:$0xff]
    %v2926 = vld [vmem:[%s2893 + $0x100] sm:$0xff]
    %v2927 = vld [vmem:[%s2893 + $0x108] sm:$0xff]
    %v2928 = vld [vmem:[%s2893 + $0x110] sm:$0xff]
    %v2929 = vld [vmem:[%s2893 + $0x118] sm:$0xff]
    %v2930 = vld [vmem:[%s2893 + $0x120] sm:$0xff]
    %v2931 = vld [vmem:[%s2893 + $0x128] sm:$0xff]
    %v2932 = vld [vmem:[%s2893 + $0x130] sm:$0xff]
    %v2933 = vld [vmem:[%s2893 + $0x138] sm:$0xff]
    %v2934 = vld [vmem:[%s2893 + $0x140] sm:$0xff]
    %v2935 = vld [vmem:[%s2893 + $0x148] sm:$0xff]
    %v2936 = vld [vmem:[%s2893 + $0x150] sm:$0xff]
    %v2937 = vld [vmem:[%s2893 + $0x158] sm:$0xff]
    %v2938 = vld [vmem:[%s2893 + $0x160] sm:$0xff]
    %v2939 = vld [vmem:[%s2893 + $0x168] sm:$0xff]
    %v2940 = vld [vmem:[%s2893 + $0x170] sm:$0xff]
    %v2941 = vld [vmem:[%s2893 + $0x178] sm:$0xff]
    %v2943 = vsel %vm2654, %v2525, 0
    %v2946 = vsel %vm2654, %v2531, 0
    %v2949 = vsel %vm2654, %v2537, 0
    %v2952 = vsel %vm2654, %v2543, 0
    %v2955 = vsel %vm2654, %v2549, 0
    %v2958 = vsel %vm2654, %v2555, 0
    %2960 = vmatprep.subr.mxu0 %v2895
    %2961 = vmatpush1.msra.mxu0 %v2894
    %2962 = vmatprep.subr.mxu0 %v2897
    %2963 = vmatpush1.msra.mxu0 %v2896
    %2964 = vmatprep.subr.mxu0 %v2899
    %2965 = vmatpush1.msra.mxu0 %v2898
    %2966 = vmatprep.subr.mxu0 %v2901
    %2967 = vmatpush1.msra.mxu0 %v2900
    %2968 = vmatprep.subr.mxu0 %v2903
    %2969 = vmatpush1.msra.mxu0 %v2902
    %2970 = vmatprep.subr.mxu0 %v2905
    %2971 = vmatpush1.msra.mxu0 %v2904
    %2972 = vmatprep.subr.mxu0 %v2907
    %2973 = vmatpush1.msra.mxu0 %v2906
    %2974 = vmatprep.subr.mxu0 %v2909
    %2975 = vmatpush1.msra.mxu0 %v2908
    %2976 = vmatprep.subr.mxu0 %v2911
    %2977 = vmatpush1.msra.mxu0 %v2910
    %2978 = vmatprep.subr.mxu0 %v2913
    %2979 = vmatpush1.msra.mxu0 %v2912
    %2980 = vmatprep.subr.mxu0 %v2915
    %2981 = vmatpush1.msra.mxu0 %v2914
    %2982 = vmatprep.subr.mxu0 %v2917
    %2983 = vmatpush1.msra.mxu0 %v2916
    %2984 = vmatprep.subr.mxu0 %v2919
    %2985 = vmatpush1.msra.mxu0 %v2918
    %2986 = vmatprep.subr.mxu0 %v2921
    %2987 = vmatpush1.msra.mxu0 %v2920
    %2988 = vmatprep.subr.mxu0 %v2923
    %2989 = vmatpush1.msra.mxu0 %v2922
    %2990 = vmatprep.subr.mxu0 %v2925
    %2991 = vmatpush1.msra.mxu0 %v2924
    %2992 = vmatprep.subr.mxu0 %v2927
    %2993 = vmatpush1.msra.mxu0 %v2926
    %2994 = vmatprep.subr.mxu0 %v2929
    %2995 = vmatpush1.msra.mxu0 %v2928
    %2996 = vmatprep.subr.mxu0 %v2931
    %2997 = vmatpush1.msra.mxu0 %v2930
    %2998 = vmatprep.subr.mxu0 %v2933
    %2999 = vmatpush1.msra.mxu0 %v2932
    %3000 = vmatprep.subr.mxu0 %v2935
    %3001 = vmatpush1.msra.mxu0 %v2934
    %3002 = vmatprep.subr.mxu0 %v2937
    %3003 = vmatpush1.msra.mxu0 %v2936
    %3004 = vmatprep.subr.mxu0 %v2939
    %3005 = vmatpush1.msra.mxu0 %v2938
    %3006 = vmatprep.subr.mxu0 %v2941
    %3007 = vmatpush1.msra.mxu0 %v2940
    %3008 = vmatprep.subr.mxu0 0.0
    %3009 = vmatpush1.msra.mxu0 0.0
    %3010 = vmatprep.subr.mxu0 0.0
    %3011 = vmatpush1.msra.mxu0 0.0
    %3012 = vmatprep.subr.mxu0 0.0
    %3013 = vmatpush1.msra.mxu0 0.0
    %3014 = vmatprep.subr.mxu0 0.0
    %3015 = vmatpush1.msra.mxu0 0.0
    %3016 = vmatprep.subr.mxu0 0.0
    %3017 = vmatpush1.msra.mxu0 0.0
    %3018 = vmatprep.subr.mxu0 0.0
    %3019 = vmatpush1.msra.mxu0 0.0
    %3020 = vmatprep.subr.mxu0 0.0
    %3021 = vmatpush1.msra.mxu0 0.0
    %3022 = vmatprep.subr.mxu0 0.0
    %3023 = vmatpush1.msra.mxu0 0.0
    %3024 = vmatprep.mubr.f32.mxu0 %v2943
    %3025 = vmatmul.mubr.f32.gmra.mrb[0].mxu0 %v2523
    %v3026 = vpop.f32.mrb[0].mxu0
    %v3027 = vadd.f32 0.0, %v3026
    %v3028 = vpop.f32.mrb[0].mxu0
    %v3029 = vadd.f32 0.0, %v3028
    %3030 = vmatprep.mubr.f32.mxu0 %v2946
    %3031 = vmatmul.mubr.f32.gmra.mrb[0].mxu0 %v2529
    %v3032 = vpop.f32.mrb[0].mxu0
    %v3033 = vadd.f32 0.0, %v3032
    %v3034 = vpop.f32.mrb[0].mxu0
    %v3035 = vadd.f32 0.0, %v3034
    %3036 = vmatprep.mubr.f32.mxu0 %v2949
    %3037 = vmatmul.mubr.f32.gmra.mrb[0].mxu0 %v2535
    %v3038 = vpop.f32.mrb[0].mxu0
    %v3039 = vadd.f32 0.0, %v3038
    %v3040 = vpop.f32.mrb[0].mxu0
    %v3041 = vadd.f32 0.0, %v3040
    %3042 = vmatprep.mubr.f32.mxu0 %v2952
    %3043 = vmatmul.mubr.f32.gmra.mrb[0].mxu0 %v2541
    %v3044 = vpop.f32.mrb[0].mxu0
    %v3045 = vadd.f32 0.0, %v3044
    %v3046 = vpop.f32.mrb[0].mxu0
    %v3047 = vadd.f32 0.0, %v3046
    %3048 = vmatprep.mubr.f32.mxu0 %v2955
    %3049 = vmatmul.mubr.f32.gmra.mrb[0].mxu0 %v2547
    %v3050 = vpop.f32.mrb[0].mxu0
    %v3051 = vadd.f32 0.0, %v3050
    %v3052 = vpop.f32.mrb[0].mxu0
    %v3053 = vadd.f32 0.0, %v3052
    %3054 = vmatprep.mubr.f32.mxu0 %v2958
    %3055 = vmatmul.mubr.f32.gmra.mrb[0].mxu0 %v2553
    %v3056 = vpop.f32.mrb[0].mxu0
    %v3057 = vadd.f32 0.0, %v3056
    %v3058 = vpop.f32.mrb[0].mxu0
    %v3059 = vadd.f32 0.0, %v3058
    %3060 = vdwg.mxu0
    %v3061 = vadd.f32 %v2859, %v3027
    %v3062 = vadd.f32 %v2861, %v3029
    %v3063 = vadd.f32 %v2865, %v3033
    %v3064 = vadd.f32 %v2867, %v3035
    %v3065 = vadd.f32 %v2871, %v3039
    %v3066 = vadd.f32 %v2873, %v3041
    %v3067 = vadd.f32 %v2877, %v3045
    %v3068 = vadd.f32 %v2879, %v3047
    %v3069 = vadd.f32 %v2883, %v3051
    %v3070 = vadd.f32 %v2885, %v3053
    %v3071 = vadd.f32 %v2889, %v3057
    %v3072 = vadd.f32 %v2891, %v3059
    %v3073 = vld [vmem:[%s9] sm:$0x3]
    %v3075 = vlaneseq
    %v3076 = vshrl.u32 %v3075, 7
    %v3077 = vsub.s32 0, %v3076
    %v3078 = vrot.slane %v3073, %v3077
    %v3079 = vlaneseq
    %v3080 = vshrl.u32 %v3079, 7
    %v3081 = vsub.s32 1, %v3080
    %v3082 = vrot.slane %v3073, %v3081
    %v3085 = vadd.f32 %v3061, %v3078
    %v3086 = vadd.f32 %v3062, %v3082
    %v3087 = vadd.f32 %v3063, %v3078
    %v3088 = vadd.f32 %v3064, %v3082
    %v3089 = vadd.f32 %v3065, %v3078
    %v3090 = vadd.f32 %v3066, %v3082
    %v3091 = vadd.f32 %v3067, %v3078
    %v3092 = vadd.f32 %v3068, %v3082
    %v3093 = vadd.f32 %v3069, %v3078
    %v3094 = vadd.f32 %v3070, %v3082
    %v3095 = vadd.f32 %v3071, %v3078
    %v3096 = vadd.f32 %v3072, %v3082
    %v3097 = vmax.f32 %v3085, 0.0
    %v3098 = vmax.f32 %v3086, 0.0
    %v3099 = vmax.f32 %v3087, 0.0
    %v3100 = vmax.f32 %v3088, 0.0
    %v3101 = vmax.f32 %v3089, 0.0
    %v3102 = vmax.f32 %v3090, 0.0
    %v3103 = vmax.f32 %v3091, 0.0
    %v3104 = vmax.f32 %v3092, 0.0
    %v3105 = vmax.f32 %v3093, 0.0
    %v3106 = vmax.f32 %v3094, 0.0
    %v3107 = vmax.f32 %v3095, 0.0
    %v3108 = vmax.f32 %v3096, 0.0
    %3109 = vmatprep.subr.mxu0 %v3098
    %3110 = vmatpush1.msra.mxu0 %v3097
    %3111 = vmatprep.subr.mxu0 %v3100
    %3112 = vmatpush1.msra.mxu0 %v3099
    %3113 = vmatprep.subr.mxu0 %v3102
    %3114 = vmatpush1.msra.mxu0 %v3101
    %3115 = vmatprep.subr.mxu0 %v3104
    %3116 = vmatpush1.msra.mxu0 %v3103
    %3117 = vmatprep.subr.mxu0 %v3106
    %3118 = vmatpush1.msra.mxu0 %v3105
    %3119 = vmatprep.subr.mxu0 %v3108
    %3120 = vmatpush1.msra.mxu0 %v3107
    %3121 = vmatprep.subr.mxu0 0.0
    %3122 = vmatpush1.msra.mxu0 0.0
    %3123 = vmatprep.subr.mxu0 0.0
    %3124 = vmatpush1.msra.mxu0 0.0
    %3125 = vmatprep.subr.mxu0 0.0
    %3126 = vmatpush1.msra.mxu0 0.0
    %3127 = vmatprep.subr.mxu0 0.0
    %3128 = vmatpush1.msra.mxu0 0.0
    %3129 = vmatprep.subr.mxu0 0.0
    %3130 = vmatpush1.msra.mxu0 0.0
    %3131 = vmatprep.subr.mxu0 0.0
    %3132 = vmatpush1.msra.mxu0 0.0
    %3133 = vmatprep.subr.mxu0 0.0
    %3134 = vmatpush1.msra.mxu0 0.0
    %3135 = vmatprep.subr.mxu0 0.0
    %3136 = vmatpush1.msra.mxu0 0.0
    %3137 = vmatprep.subr.mxu0 0.0
    %3138 = vmatpush1.msra.mxu0 0.0
    %3139 = vmatprep.subr.mxu0 0.0
    %3140 = vmatpush1.msra.mxu0 0.0
    %3141 = vmatprep.subr.mxu0 0.0
    %3142 = vmatpush1.msra.mxu0 0.0
    %3143 = vmatprep.subr.mxu0 0.0
    %3144 = vmatpush1.msra.mxu0 0.0
    %3145 = vmatprep.subr.mxu0 0.0
    %3146 = vmatpush1.msra.mxu0 0.0
    %3147 = vmatprep.subr.mxu0 0.0
    %3148 = vmatpush1.msra.mxu0 0.0
    %3149 = vmatprep.subr.mxu0 0.0
    %3150 = vmatpush1.msra.mxu0 0.0
    %3151 = vmatprep.subr.mxu0 0.0
    %3152 = vmatpush1.msra.mxu0 0.0
    %3153 = vmatprep.subr.mxu0 0.0
    %3154 = vmatpush1.msra.mxu0 0.0
    %3155 = vmatprep.subr.mxu0 0.0
    %3156 = vmatpush1.msra.mxu0 0.0
    %3157 = vmatprep.subr.mxu0 0.0
    %3158 = vmatpush1.msra.mxu0 0.0
    %3159 = vmatprep.subr.mxu0 0.0
    %3160 = vmatpush1.msra.mxu0 0.0
    %3161 = vmatprep.subr.mxu0 0.0
    %3162 = vmatpush1.msra.mxu0 0.0
    %3163 = vmatprep.subr.mxu0 0.0
    %3164 = vmatpush1.msra.mxu0 0.0
    %3165 = vmatprep.subr.mxu0 0.0
    %3166 = vmatpush1.msra.mxu0 0.0
    %3167 = vmatprep.subr.mxu0 0.0
    %3168 = vmatpush1.msra.mxu0 0.0
    %3169 = vmatprep.subr.mxu0 0.0
    %3170 = vmatpush1.msra.mxu0 0.0
    %3171 = vmatprep.subr.mxu0 0.0
    %3172 = vmatpush1.msra.mxu0 0.0
    %3173 = vmatprep.mubr.f32.mxu0 0.0
    %3174 = vmatmul.mubr.f32.gmra.mrb[0].mxu0 %v64
    %v3175 = vpop.f32.mrb[0].mxu0
    %v3176 = vadd.f32 0.0, %v3175
    %v3177 = vpop.f32.mrb[0].mxu0
    %v3178 = vadd.f32 0.0, %v3177
    %3179 = vmatprep.mubr.f32.mxu0 0.0
    %3180 = vmatmul.mubr.f32.gmra.mrb[0].mxu0 %v67
    %v3181 = vpop.f32.mrb[0].mxu0
    %v3182 = vadd.f32 0.0, %v3181
    %v3183 = vpop.f32.mrb[0].mxu0
    %v3184 = vadd.f32 0.0, %v3183
    %3185 = vdwg.mxu0
    %3186 = vmatprep.subr.mxu0 %v3098
    %3187 = vmatpush1.msra.mxu0 %v3097
    %3188 = vmatprep.subr.mxu0 %v3100
    %3189 = vmatpush1.msra.mxu0 %v3099
    %3190 = vmatprep.subr.mxu0 %v3102
    %3191 = vmatpush1.msra.mxu0 %v3101
    %3192 = vmatprep.subr.mxu0 %v3104
    %3193 = vmatpush1.msra.mxu0 %v3103
    %3194 = vmatprep.subr.mxu0 %v3106
    %3195 = vmatpush1.msra.mxu0 %v3105
    %3196 = vmatprep.subr.mxu0 %v3108
    %3197 = vmatpush1.msra.mxu0 %v3107
    %3198 = vmatprep.subr.mxu0 0.0
    %3199 = vmatpush1.msra.mxu0 0.0
    %3200 = vmatprep.subr.mxu0 0.0
    %3201 = vmatpush1.msra.mxu0 0.0
    %3202 = vmatprep.subr.mxu0 0.0
    %3203 = vmatpush1.msra.mxu0 0.0
    %3204 = vmatprep.subr.mxu0 0.0
    %3205 = vmatpush1.msra.mxu0 0.0
    %3206 = vmatprep.subr.mxu0 0.0
    %3207 = vmatpush1.msra.mxu0 0.0
    %3208 = vmatprep.subr.mxu0 0.0
    %3209 = vmatpush1.msra.mxu0 0.0
    %3210 = vmatprep.subr.mxu0 0.0
    %3211 = vmatpush1.msra.mxu0 0.0
    %3212 = vmatprep.subr.mxu0 0.0
    %3213 = vmatpush1.msra.mxu0 0.0
    %3214 = vmatprep.subr.mxu0 0.0
    %3215 = vmatpush1.msra.mxu0 0.0
    %3216 = vmatprep.subr.mxu0 0.0
    %3217 = vmatpush1.msra.mxu0 0.0
    %3218 = vmatprep.subr.mxu0 0.0
    %3219 = vmatpush1.msra.mxu0 0.0
    %3220 = vmatprep.subr.mxu0 0.0
    %3221 = vmatpush1.msra.mxu0 0.0
    %3222 = vmatprep.subr.mxu0 0.0
    %3223 = vmatpush1.msra.mxu0 0.0
    %3224 = vmatprep.subr.mxu0 0.0
    %3225 = vmatpush1.msra.mxu0 0.0
    %3226 = vmatprep.subr.mxu0 0.0
    %3227 = vmatpush1.msra.mxu0 0.0
    %3228 = vmatprep.subr.mxu0 0.0
    %3229 = vmatpush1.msra.mxu0 0.0
    %3230 = vmatprep.subr.mxu0 0.0
    %3231 = vmatpush1.msra.mxu0 0.0
    %3232 = vmatprep.subr.mxu0 0.0
    %3233 = vmatpush1.msra.mxu0 0.0
    %3234 = vmatprep.subr.mxu0 0.0
    %3235 = vmatpush1.msra.mxu0 0.0
    %3236 = vmatprep.subr.mxu0 0.0
    %3237 = vmatpush1.msra.mxu0 0.0
    %3238 = vmatprep.subr.mxu0 0.0
    %3239 = vmatpush1.msra.mxu0 0.0
    %3240 = vmatprep.subr.mxu0 0.0
    %3241 = vmatpush1.msra.mxu0 0.0
    %3242 = vmatprep.subr.mxu0 0.0
    %3243 = vmatpush1.msra.mxu0 0.0
    %3244 = vmatprep.subr.mxu0 0.0
    %3245 = vmatpush1.msra.mxu0 0.0
    %3246 = vmatprep.subr.mxu0 0.0
    %3247 = vmatpush1.msra.mxu0 0.0
    %3248 = vmatprep.subr.mxu0 0.0
    %3249 = vmatpush1.msra.mxu0 0.0
    %3250 = vmatprep.mubr.f32.mxu0 0.0
    %3251 = vmatmul.mubr.f32.gmra.mrb[0].mxu0 %v225
    %v3252 = vpop.f32.mrb[0].mxu0
    %v3253 = vadd.f32 0.0, %v3252
    %v3254 = vpop.f32.mrb[0].mxu0
    %v3255 = vadd.f32 0.0, %v3254
    %3256 = vmatprep.mubr.f32.mxu0 0.0
    %3257 = vmatmul.mubr.f32.gmra.mrb[0].mxu0 %v228
    %v3258 = vpop.f32.mrb[0].mxu0
    %v3259 = vadd.f32 0.0, %v3258
    %v3260 = vpop.f32.mrb[0].mxu0
    %v3261 = vadd.f32 0.0, %v3260
    %3262 = vdwg.mxu0
    %3263 = vmatprep.subr.mxu0 %v3098
    %3264 = vmatpush1.msra.mxu0 %v3097
    %3265 = vmatprep.subr.mxu0 %v3100
    %3266 = vmatpush1.msra.mxu0 %v3099
    %3267 = vmatprep.subr.mxu0 %v3102
    %3268 = vmatpush1.msra.mxu0 %v3101
    %3269 = vmatprep.subr.mxu0 %v3104
    %3270 = vmatpush1.msra.mxu0 %v3103
    %3271 = vmatprep.subr.mxu0 %v3106
    %3272 = vmatpush1.msra.mxu0 %v3105
    %3273 = vmatprep.subr.mxu0 %v3108
    %3274 = vmatpush1.msra.mxu0 %v3107
    %3275 = vmatprep.subr.mxu0 0.0
    %3276 = vmatpush1.msra.mxu0 0.0
    %3277 = vmatprep.subr.mxu0 0.0
    %3278 = vmatpush1.msra.mxu0 0.0
    %3279 = vmatprep.subr.mxu0 0.0
    %3280 = vmatpush1.msra.mxu0 0.0
    %3281 = vmatprep.subr.mxu0 0.0
    %3282 = vmatpush1.msra.mxu0 0.0
    %3283 = vmatprep.subr.mxu0 0.0
    %3284 = vmatpush1.msra.mxu0 0.0
    %3285 = vmatprep.subr.mxu0 0.0
    %3286 = vmatpush1.msra.mxu0 0.0
    %3287 = vmatprep.subr.mxu0 0.0
    %3288 = vmatpush1.msra.mxu0 0.0
    %3289 = vmatprep.subr.mxu0 0.0
    %3290 = vmatpush1.msra.mxu0 0.0
    %3291 = vmatprep.subr.mxu0 0.0
    %3292 = vmatpush1.msra.mxu0 0.0
    %3293 = vmatprep.subr.mxu0 0.0
    %3294 = vmatpush1.msra.mxu0 0.0
    %3295 = vmatprep.subr.mxu0 0.0
    %3296 = vmatpush1.msra.mxu0 0.0
    %3297 = vmatprep.subr.mxu0 0.0
    %3298 = vmatpush1.msra.mxu0 0.0
    %3299 = vmatprep.subr.mxu0 0.0
    %3300 = vmatpush1.msra.mxu0 0.0
    %3301 = vmatprep.subr.mxu0 0.0
    %3302 = vmatpush1.msra.mxu0 0.0
    %3303 = vmatprep.subr.mxu0 0.0
    %3304 = vmatpush1.msra.mxu0 0.0
    %3305 = vmatprep.subr.mxu0 0.0
    %3306 = vmatpush1.msra.mxu0 0.0
    %3307 = vmatprep.subr.mxu0 0.0
    %3308 = vmatpush1.msra.mxu0 0.0
    %3309 = vmatprep.subr.mxu0 0.0
    %3310 = vmatpush1.msra.mxu0 0.0
    %3311 = vmatprep.subr.mxu0 0.0
    %3312 = vmatpush1.msra.mxu0 0.0
    %3313 = vmatprep.subr.mxu0 0.0
    %3314 = vmatpush1.msra.mxu0 0.0
    %3315 = vmatprep.subr.mxu0 0.0
    %3316 = vmatpush1.msra.mxu0 0.0
    %3317 = vmatprep.subr.mxu0 0.0
    %3318 = vmatpush1.msra.mxu0 0.0
    %3319 = vmatprep.subr.mxu0 0.0
    %3320 = vmatpush1.msra.mxu0 0.0
    %3321 = vmatprep.subr.mxu0 0.0
    %3322 = vmatpush1.msra.mxu0 0.0
    %3323 = vmatprep.subr.mxu0 0.0
    %3324 = vmatpush1.msra.mxu0 0.0
    %3325 = vmatprep.subr.mxu0 0.0
    %3326 = vmatpush1.msra.mxu0 0.0
    %3327 = vmatprep.mubr.f32.mxu0 0.0
    %3328 = vmatmul.mubr.f32.gmra.mrb[0].mxu0 %v386
    %v3329 = vpop.f32.mrb[0].mxu0
    %v3330 = vadd.f32 0.0, %v3329
    %v3331 = vpop.f32.mrb[0].mxu0
    %v3332 = vadd.f32 0.0, %v3331
    %3333 = vmatprep.mubr.f32.mxu0 0.0
    %3334 = vmatmul.mubr.f32.gmra.mrb[0].mxu0 %v389
    %v3335 = vpop.f32.mrb[0].mxu0
    %v3336 = vadd.f32 0.0, %v3335
    %v3337 = vpop.f32.mrb[0].mxu0
    %v3338 = vadd.f32 0.0, %v3337
    %3339 = vdwg.mxu0
    %v3340 = vld [vmem:[%s10] sm:$0xff]
    %v3341 = vld [vmem:[%s10 + $0x8] sm:$0xff]
    %v3342 = vld [vmem:[%s10 + $0x10] sm:$0xff]
    %v3343 = vld [vmem:[%s10 + $0x18] sm:$0xff]
    %v3344 = vld [vmem:[%s10 + $0x20] sm:$0xff]
    %v3345 = vld [vmem:[%s10 + $0x28] sm:$0xff]
    %v3346 = vld [vmem:[%s10 + $0x30] sm:$0xff]
    %v3347 = vld [vmem:[%s10 + $0x38] sm:$0xff]
    %v3348 = vld [vmem:[%s10 + $0x40] sm:$0xff]
    %v3349 = vld [vmem:[%s10 + $0x48] sm:$0xff]
    %v3350 = vld [vmem:[%s10 + $0x50] sm:$0xff]
    %v3351 = vld [vmem:[%s10 + $0x58] sm:$0xff]
    %v3352 = vld [vmem:[%s10 + $0x60] sm:$0xff]
    %v3353 = vld [vmem:[%s10 + $0x68] sm:$0xff]
    %v3354 = vld [vmem:[%s10 + $0x70] sm:$0xff]
    %v3355 = vld [vmem:[%s10 + $0x78] sm:$0xff]
    %v3356 = vld [vmem:[%s10 + $0x80] sm:$0xff]
    %v3357 = vld [vmem:[%s10 + $0x88] sm:$0xff]
    %v3358 = vld [vmem:[%s10 + $0x90] sm:$0xff]
    %v3359 = vld [vmem:[%s10 + $0x98] sm:$0xff]
    %v3360 = vld [vmem:[%s10 + $0xa0] sm:$0xff]
    %v3361 = vld [vmem:[%s10 + $0xa8] sm:$0xff]
    %v3362 = vld [vmem:[%s10 + $0xb0] sm:$0xff]
    %v3363 = vld [vmem:[%s10 + $0xb8] sm:$0xff]
    %v3364 = vld [vmem:[%s10 + $0xc0] sm:$0xff]
    %v3365 = vld [vmem:[%s10 + $0xc8] sm:$0xff]
    %v3366 = vld [vmem:[%s10 + $0xd0] sm:$0xff]
    %v3367 = vld [vmem:[%s10 + $0xd8] sm:$0xff]
    %v3368 = vld [vmem:[%s10 + $0xe0] sm:$0xff]
    %v3369 = vld [vmem:[%s10 + $0xe8] sm:$0xff]
    %v3370 = vld [vmem:[%s10 + $0xf0] sm:$0xff]
    %v3371 = vld [vmem:[%s10 + $0xf8] sm:$0xff]
    %v3372 = vld [vmem:[%s10 + $0x100] sm:$0xff]
    %v3373 = vld [vmem:[%s10 + $0x108] sm:$0xff]
    %v3374 = vld [vmem:[%s10 + $0x110] sm:$0xff]
    %v3375 = vld [vmem:[%s10 + $0x118] sm:$0xff]
    %v3376 = vld [vmem:[%s10 + $0x120] sm:$0xff]
    %v3377 = vld [vmem:[%s10 + $0x128] sm:$0xff]
    %v3378 = vld [vmem:[%s10 + $0x130] sm:$0xff]
    %v3379 = vld [vmem:[%s10 + $0x138] sm:$0xff]
    %v3380 = vld [vmem:[%s10 + $0x140] sm:$0xff]
    %v3381 = vld [vmem:[%s10 + $0x148] sm:$0xff]
    %v3382 = vld [vmem:[%s10 + $0x150] sm:$0xff]
    %v3383 = vld [vmem:[%s10 + $0x158] sm:$0xff]
    %v3384 = vld [vmem:[%s10 + $0x160] sm:$0xff]
    %v3385 = vld [vmem:[%s10 + $0x168] sm:$0xff]
    %v3386 = vld [vmem:[%s10 + $0x170] sm:$0xff]
    %v3387 = vld [vmem:[%s10 + $0x178] sm:$0xff]
    %v3388 = vld [vmem:[%s10 + $0x180] sm:$0xff]
    %v3389 = vld [vmem:[%s10 + $0x188] sm:$0xff]
    %v3390 = vld [vmem:[%s10 + $0x190] sm:$0xff]
    %v3391 = vld [vmem:[%s10 + $0x198] sm:$0xff]
    %v3392 = vld [vmem:[%s10 + $0x1a0] sm:$0xff]
    %v3393 = vld [vmem:[%s10 + $0x1a8] sm:$0xff]
    %v3394 = vld [vmem:[%s10 + $0x1b0] sm:$0xff]
    %v3395 = vld [vmem:[%s10 + $0x1b8] sm:$0xff]
    %s3396 = scalar_lea.vmem %s10, 448
    %v3397 = vld [vmem:[%s3396] sm:$0xff]
    %v3398 = vld [vmem:[%s3396 + $0x8] sm:$0xff]
    %v3399 = vld [vmem:[%s3396 + $0x10] sm:$0xff]
    %v3400 = vld [vmem:[%s3396 + $0x18] sm:$0xff]
    %v3401 = vld [vmem:[%s3396 + $0x20] sm:$0xff]
    %v3402 = vld [vmem:[%s3396 + $0x28] sm:$0xff]
    %v3403 = vld [vmem:[%s3396 + $0x30] sm:$0xff]
    %v3404 = vld [vmem:[%s3396 + $0x38] sm:$0xff]
    %v3405 = vld [vmem:[%s3396 + $0x40] sm:$0xff]
    %v3406 = vld [vmem:[%s3396 + $0x48] sm:$0xff]
    %v3407 = vld [vmem:[%s3396 + $0x50] sm:$0xff]
    %v3408 = vld [vmem:[%s3396 + $0x58] sm:$0xff]
    %v3409 = vld [vmem:[%s3396 + $0x60] sm:$0xff]
    %v3410 = vld [vmem:[%s3396 + $0x68] sm:$0xff]
    %v3411 = vld [vmem:[%s3396 + $0x70] sm:$0xff]
    %v3412 = vld [vmem:[%s3396 + $0x78] sm:$0xff]
    %v3413 = vld [vmem:[%s3396 + $0x80] sm:$0xff]
    %v3414 = vld [vmem:[%s3396 + $0x88] sm:$0xff]
    %v3415 = vld [vmem:[%s3396 + $0x90] sm:$0xff]
    %v3416 = vld [vmem:[%s3396 + $0x98] sm:$0xff]
    %v3417 = vld [vmem:[%s3396 + $0xa0] sm:$0xff]
    %v3418 = vld [vmem:[%s3396 + $0xa8] sm:$0xff]
    %v3419 = vld [vmem:[%s3396 + $0xb0] sm:$0xff]
    %v3420 = vld [vmem:[%s3396 + $0xb8] sm:$0xff]
    %v3421 = vld [vmem:[%s3396 + $0xc0] sm:$0xff]
    %v3422 = vld [vmem:[%s3396 + $0xc8] sm:$0xff]
    %v3423 = vld [vmem:[%s3396 + $0xd0] sm:$0xff]
    %v3424 = vld [vmem:[%s3396 + $0xd8] sm:$0xff]
    %v3425 = vld [vmem:[%s3396 + $0xe0] sm:$0xff]
    %v3426 = vld [vmem:[%s3396 + $0xe8] sm:$0xff]
    %v3427 = vld [vmem:[%s3396 + $0xf0] sm:$0xff]
    %v3428 = vld [vmem:[%s3396 + $0xf8] sm:$0xff]
    %v3429 = vld [vmem:[%s3396 + $0x100] sm:$0xff]
    %v3430 = vld [vmem:[%s3396 + $0x108] sm:$0xff]
    %v3431 = vld [vmem:[%s3396 + $0x110] sm:$0xff]
    %v3432 = vld [vmem:[%s3396 + $0x118] sm:$0xff]
    %v3433 = vld [vmem:[%s3396 + $0x120] sm:$0xff]
    %v3434 = vld [vmem:[%s3396 + $0x128] sm:$0xff]
    %v3435 = vld [vmem:[%s3396 + $0x130] sm:$0xff]
    %v3436 = vld [vmem:[%s3396 + $0x138] sm:$0xff]
    %v3437 = vld [vmem:[%s3396 + $0x140] sm:$0xff]
    %v3438 = vld [vmem:[%s3396 + $0x148] sm:$0xff]
    %v3439 = vld [vmem:[%s3396 + $0x150] sm:$0xff]
    %v3440 = vld [vmem:[%s3396 + $0x158] sm:$0xff]
    %v3441 = vld [vmem:[%s3396 + $0x160] sm:$0xff]
    %v3442 = vld [vmem:[%s3396 + $0x168] sm:$0xff]
    %v3443 = vld [vmem:[%s3396 + $0x170] sm:$0xff]
    %v3444 = vld [vmem:[%s3396 + $0x178] sm:$0xff]
    %v3445 = vld [vmem:[%s3396 + $0x180] sm:$0xff]
    %v3446 = vld [vmem:[%s3396 + $0x188] sm:$0xff]
    %v3447 = vld [vmem:[%s3396 + $0x190] sm:$0xff]
    %v3448 = vld [vmem:[%s3396 + $0x198] sm:$0xff]
    %v3449 = vld [vmem:[%s3396 + $0x1a0] sm:$0xff]
    %v3450 = vld [vmem:[%s3396 + $0x1a8] sm:$0xff]
    %v3451 = vld [vmem:[%s3396 + $0x1b0] sm:$0xff]
    %v3452 = vld [vmem:[%s3396 + $0x1b8] sm:$0xff]
    %vm3453 = vcmask 785408
    %v3455 = vsel %vm3453, %v3255, 0
    %v3458 = vsel %vm3453, %v3261, 0
    %3460 = vmatprep.subr.mxu0 %v3398
    %3461 = vmatpush1.msra.mxu0 %v3397
    %3462 = vmatprep.subr.mxu0 %v3400
    %3463 = vmatpush1.msra.mxu0 %v3399
    %3464 = vmatprep.subr.mxu0 %v3402
    %3465 = vmatpush1.msra.mxu0 %v3401
    %3466 = vmatprep.subr.mxu0 %v3404
    %3467 = vmatpush1.msra.mxu0 %v3403
    %3468 = vmatprep.subr.mxu0 %v3406
    %3469 = vmatpush1.msra.mxu0 %v3405
    %3470 = vmatprep.subr.mxu0 %v3408
    %3471 = vmatpush1.msra.mxu0 %v3407
    %3472 = vmatprep.subr.mxu0 %v3410
    %3473 = vmatpush1.msra.mxu0 %v3409
    %3474 = vmatprep.subr.mxu0 %v3412
    %3475 = vmatpush1.msra.mxu0 %v3411
    %3476 = vmatprep.subr.mxu0 %v3414
    %3477 = vmatpush1.msra.mxu0 %v3413
    %3478 = vmatprep.subr.mxu0 %v3416
    %3479 = vmatpush1.msra.mxu0 %v3415
    %3480 = vmatprep.subr.mxu0 %v3418
    %3481 = vmatpush1.msra.mxu0 %v3417
    %3482 = vmatprep.subr.mxu0 %v3420
    %3483 = vmatpush1.msra.mxu0 %v3419
    %3484 = vmatprep.subr.mxu0 %v3422
    %3485 = vmatpush1.msra.mxu0 %v3421
    %3486 = vmatprep.subr.mxu0 %v3424
    %3487 = vmatpush1.msra.mxu0 %v3423
    %3488 = vmatprep.subr.mxu0 %v3426
    %3489 = vmatpush1.msra.mxu0 %v3425
    %3490 = vmatprep.subr.mxu0 %v3428
    %3491 = vmatpush1.msra.mxu0 %v3427
    %3492 = vmatprep.subr.mxu0 %v3430
    %3493 = vmatpush1.msra.mxu0 %v3429
    %3494 = vmatprep.subr.mxu0 %v3432
    %3495 = vmatpush1.msra.mxu0 %v3431
    %3496 = vmatprep.subr.mxu0 %v3434
    %3497 = vmatpush1.msra.mxu0 %v3433
    %3498 = vmatprep.subr.mxu0 %v3436
    %3499 = vmatpush1.msra.mxu0 %v3435
    %3500 = vmatprep.subr.mxu0 %v3438
    %3501 = vmatpush1.msra.mxu0 %v3437
    %3502 = vmatprep.subr.mxu0 %v3440
    %3503 = vmatpush1.msra.mxu0 %v3439
    %3504 = vmatprep.subr.mxu0 %v3442
    %3505 = vmatpush1.msra.mxu0 %v3441
    %3506 = vmatprep.subr.mxu0 %v3444
    %3507 = vmatpush1.msra.mxu0 %v3443
    %3508 = vmatprep.subr.mxu0 %v3446
    %3509 = vmatpush1.msra.mxu0 %v3445
    %3510 = vmatprep.subr.mxu0 %v3448
    %3511 = vmatpush1.msra.mxu0 %v3447
    %3512 = vmatprep.subr.mxu0 %v3450
    %3513 = vmatpush1.msra.mxu0 %v3449
    %3514 = vmatprep.subr.mxu0 %v3452
    %3515 = vmatpush1.msra.mxu0 %v3451
    %3516 = vmatprep.subr.mxu0 0.0
    %3517 = vmatpush1.msra.mxu0 0.0
    %3518 = vmatprep.subr.mxu0 0.0
    %3519 = vmatpush1.msra.mxu0 0.0
    %3520 = vmatprep.subr.mxu0 0.0
    %3521 = vmatpush1.msra.mxu0 0.0
    %3522 = vmatprep.subr.mxu0 0.0
    %3523 = vmatpush1.msra.mxu0 0.0
    %3524 = vmatprep.mubr.f32.mxu0 %v3455
    %3525 = vmatmul.mubr.f32.gmra.mrb[0].mxu0 %v3253
    %v3526 = vpop.f32.mrb[0].mxu0
    %v3527 = vadd.f32 0.0, %v3526
    %v3528 = vpop.f32.mrb[0].mxu0
    %v3529 = vadd.f32 0.0, %v3528
    %3530 = vmatprep.mubr.f32.mxu0 %v3458
    %3531 = vmatmul.mubr.f32.gmra.mrb[0].mxu0 %v3259
    %v3532 = vpop.f32.mrb[0].mxu0
    %v3533 = vadd.f32 0.0, %v3532
    %v3534 = vpop.f32.mrb[0].mxu0
    %v3535 = vadd.f32 0.0, %v3534
    %3536 = vdwg.mxu0
    %v3538 = vsel %vm3453, %v3178, 0
    %v3541 = vsel %vm3453, %v3184, 0
    %3543 = vmatprep.subr.mxu0 %v3341
    %3544 = vmatpush1.msra.mxu0 %v3340
    %3545 = vmatprep.subr.mxu0 %v3343
    %3546 = vmatpush1.msra.mxu0 %v3342
    %3547 = vmatprep.subr.mxu0 %v3345
    %3548 = vmatpush1.msra.mxu0 %v3344
    %3549 = vmatprep.subr.mxu0 %v3347
    %3550 = vmatpush1.msra.mxu0 %v3346
    %3551 = vmatprep.subr.mxu0 %v3349
    %3552 = vmatpush1.msra.mxu0 %v3348
    %3553 = vmatprep.subr.mxu0 %v3351
    %3554 = vmatpush1.msra.mxu0 %v3350
    %3555 = vmatprep.subr.mxu0 %v3353
    %3556 = vmatpush1.msra.mxu0 %v3352
    %3557 = vmatprep.subr.mxu0 %v3355
    %3558 = vmatpush1.msra.mxu0 %v3354
    %3559 = vmatprep.subr.mxu0 %v3357
    %3560 = vmatpush1.msra.mxu0 %v3356
    %3561 = vmatprep.subr.mxu0 %v3359
    %3562 = vmatpush1.msra.mxu0 %v3358
    %3563 = vmatprep.subr.mxu0 %v3361
    %3564 = vmatpush1.msra.mxu0 %v3360
    %3565 = vmatprep.subr.mxu0 %v3363
    %3566 = vmatpush1.msra.mxu0 %v3362
    %3567 = vmatprep.subr.mxu0 %v3365
    %3568 = vmatpush1.msra.mxu0 %v3364
    %3569 = vmatprep.subr.mxu0 %v3367
    %3570 = vmatpush1.msra.mxu0 %v3366
    %3571 = vmatprep.subr.mxu0 %v3369
    %3572 = vmatpush1.msra.mxu0 %v3368
    %3573 = vmatprep.subr.mxu0 %v3371
    %3574 = vmatpush1.msra.mxu0 %v3370
    %3575 = vmatprep.subr.mxu0 %v3373
    %3576 = vmatpush1.msra.mxu0 %v3372
    %3577 = vmatprep.subr.mxu0 %v3375
    %3578 = vmatpush1.msra.mxu0 %v3374
    %3579 = vmatprep.subr.mxu0 %v3377
    %3580 = vmatpush1.msra.mxu0 %v3376
    %3581 = vmatprep.subr.mxu0 %v3379
    %3582 = vmatpush1.msra.mxu0 %v3378
    %3583 = vmatprep.subr.mxu0 %v3381
    %3584 = vmatpush1.msra.mxu0 %v3380
    %3585 = vmatprep.subr.mxu0 %v3383
    %3586 = vmatpush1.msra.mxu0 %v3382
    %3587 = vmatprep.subr.mxu0 %v3385
    %3588 = vmatpush1.msra.mxu0 %v3384
    %3589 = vmatprep.subr.mxu0 %v3387
    %3590 = vmatpush1.msra.mxu0 %v3386
    %3591 = vmatprep.subr.mxu0 %v3389
    %3592 = vmatpush1.msra.mxu0 %v3388
    %3593 = vmatprep.subr.mxu0 %v3391
    %3594 = vmatpush1.msra.mxu0 %v3390
    %3595 = vmatprep.subr.mxu0 %v3393
    %3596 = vmatpush1.msra.mxu0 %v3392
    %3597 = vmatprep.subr.mxu0 %v3395
    %3598 = vmatpush1.msra.mxu0 %v3394
    %3599 = vmatprep.subr.mxu0 0.0
    %3600 = vmatpush1.msra.mxu0 0.0
    %3601 = vmatprep.subr.mxu0 0.0
    %3602 = vmatpush1.msra.mxu0 0.0
    %3603 = vmatprep.subr.mxu0 0.0
    %3604 = vmatpush1.msra.mxu0 0.0
    %3605 = vmatprep.subr.mxu0 0.0
    %3606 = vmatpush1.msra.mxu0 0.0
    %3607 = vmatprep.mubr.f32.mxu0 %v3538
    %3608 = vmatmul.mubr.f32.gmra.mrb[0].mxu0 %v3176
    %v3609 = vpop.f32.mrb[0].mxu0
    %v3610 = vadd.f32 %v3527, %v3609
    %v3611 = vpop.f32.mrb[0].mxu0
    %v3612 = vadd.f32 %v3529, %v3611
    %3613 = vmatprep.mubr.f32.mxu0 %v3541
    %3614 = vmatmul.mubr.f32.gmra.mrb[0].mxu0 %v3182
    %v3615 = vpop.f32.mrb[0].mxu0
    %v3616 = vadd.f32 %v3533, %v3615
    %v3617 = vpop.f32.mrb[0].mxu0
    %v3618 = vadd.f32 %v3535, %v3617
    %3619 = vdwg.mxu0
    %s3620 = scalar_lea.vmem %s10, 896
    %v3621 = vld [vmem:[%s3620] sm:$0xff]
    %v3622 = vld [vmem:[%s3620 + $0x8] sm:$0xff]
    %v3623 = vld [vmem:[%s3620 + $0x10] sm:$0xff]
    %v3624 = vld [vmem:[%s3620 + $0x18] sm:$0xff]
    %v3625 = vld [vmem:[%s3620 + $0x20] sm:$0xff]
    %v3626 = vld [vmem:[%s3620 + $0x28] sm:$0xff]
    %v3627 = vld [vmem:[%s3620 + $0x30] sm:$0xff]
    %v3628 = vld [vmem:[%s3620 + $0x38] sm:$0xff]
    %v3629 = vld [vmem:[%s3620 + $0x40] sm:$0xff]
    %v3630 = vld [vmem:[%s3620 + $0x48] sm:$0xff]
    %v3631 = vld [vmem:[%s3620 + $0x50] sm:$0xff]
    %v3632 = vld [vmem:[%s3620 + $0x58] sm:$0xff]
    %v3633 = vld [vmem:[%s3620 + $0x60] sm:$0xff]
    %v3634 = vld [vmem:[%s3620 + $0x68] sm:$0xff]
    %v3635 = vld [vmem:[%s3620 + $0x70] sm:$0xff]
    %v3636 = vld [vmem:[%s3620 + $0x78] sm:$0xff]
    %v3637 = vld [vmem:[%s3620 + $0x80] sm:$0xff]
    %v3638 = vld [vmem:[%s3620 + $0x88] sm:$0xff]
    %v3639 = vld [vmem:[%s3620 + $0x90] sm:$0xff]
    %v3640 = vld [vmem:[%s3620 + $0x98] sm:$0xff]
    %v3641 = vld [vmem:[%s3620 + $0xa0] sm:$0xff]
    %v3642 = vld [vmem:[%s3620 + $0xa8] sm:$0xff]
    %v3643 = vld [vmem:[%s3620 + $0xb0] sm:$0xff]
    %v3644 = vld [vmem:[%s3620 + $0xb8] sm:$0xff]
    %v3645 = vld [vmem:[%s3620 + $0xc0] sm:$0xff]
    %v3646 = vld [vmem:[%s3620 + $0xc8] sm:$0xff]
    %v3647 = vld [vmem:[%s3620 + $0xd0] sm:$0xff]
    %v3648 = vld [vmem:[%s3620 + $0xd8] sm:$0xff]
    %v3649 = vld [vmem:[%s3620 + $0xe0] sm:$0xff]
    %v3650 = vld [vmem:[%s3620 + $0xe8] sm:$0xff]
    %v3651 = vld [vmem:[%s3620 + $0xf0] sm:$0xff]
    %v3652 = vld [vmem:[%s3620 + $0xf8] sm:$0xff]
    %v3653 = vld [vmem:[%s3620 + $0x100] sm:$0xff]
    %v3654 = vld [vmem:[%s3620 + $0x108] sm:$0xff]
    %v3655 = vld [vmem:[%s3620 + $0x110] sm:$0xff]
    %v3656 = vld [vmem:[%s3620 + $0x118] sm:$0xff]
    %v3657 = vld [vmem:[%s3620 + $0x120] sm:$0xff]
    %v3658 = vld [vmem:[%s3620 + $0x128] sm:$0xff]
    %v3659 = vld [vmem:[%s3620 + $0x130] sm:$0xff]
    %v3660 = vld [vmem:[%s3620 + $0x138] sm:$0xff]
    %v3661 = vld [vmem:[%s3620 + $0x140] sm:$0xff]
    %v3662 = vld [vmem:[%s3620 + $0x148] sm:$0xff]
    %v3663 = vld [vmem:[%s3620 + $0x150] sm:$0xff]
    %v3664 = vld [vmem:[%s3620 + $0x158] sm:$0xff]
    %v3665 = vld [vmem:[%s3620 + $0x160] sm:$0xff]
    %v3666 = vld [vmem:[%s3620 + $0x168] sm:$0xff]
    %v3667 = vld [vmem:[%s3620 + $0x170] sm:$0xff]
    %v3668 = vld [vmem:[%s3620 + $0x178] sm:$0xff]
    %v3669 = vld [vmem:[%s3620 + $0x180] sm:$0xff]
    %v3670 = vld [vmem:[%s3620 + $0x188] sm:$0xff]
    %v3671 = vld [vmem:[%s3620 + $0x190] sm:$0xff]
    %v3672 = vld [vmem:[%s3620 + $0x198] sm:$0xff]
    %v3673 = vld [vmem:[%s3620 + $0x1a0] sm:$0xff]
    %v3674 = vld [vmem:[%s3620 + $0x1a8] sm:$0xff]
    %v3675 = vld [vmem:[%s3620 + $0x1b0] sm:$0xff]
    %v3676 = vld [vmem:[%s3620 + $0x1b8] sm:$0xff]
    %v3678 = vsel %vm3453, %v3332, 0
    %v3681 = vsel %vm3453, %v3338, 0
    %3683 = vmatprep.subr.mxu0 %v3622
    %3684 = vmatpush1.msra.mxu0 %v3621
    %3685 = vmatprep.subr.mxu0 %v3624
    %3686 = vmatpush1.msra.mxu0 %v3623
    %3687 = vmatprep.subr.mxu0 %v3626
    %3688 = vmatpush1.msra.mxu0 %v3625
    %3689 = vmatprep.subr.mxu0 %v3628
    %3690 = vmatpush1.msra.mxu0 %v3627
    %3691 = vmatprep.subr.mxu0 %v3630
    %3692 = vmatpush1.msra.mxu0 %v3629
    %3693 = vmatprep.subr.mxu0 %v3632
    %3694 = vmatpush1.msra.mxu0 %v3631
    %3695 = vmatprep.subr.mxu0 %v3634
    %3696 = vmatpush1.msra.mxu0 %v3633
    %3697 = vmatprep.subr.mxu0 %v3636
    %3698 = vmatpush1.msra.mxu0 %v3635
    %3699 = vmatprep.subr.mxu0 %v3638
    %3700 = vmatpush1.msra.mxu0 %v3637
    %3701 = vmatprep.subr.mxu0 %v3640
    %3702 = vmatpush1.msra.mxu0 %v3639
    %3703 = vmatprep.subr.mxu0 %v3642
    %3704 = vmatpush1.msra.mxu0 %v3641
    %3705 = vmatprep.subr.mxu0 %v3644
    %3706 = vmatpush1.msra.mxu0 %v3643
    %3707 = vmatprep.subr.mxu0 %v3646
    %3708 = vmatpush1.msra.mxu0 %v3645
    %3709 = vmatprep.subr.mxu0 %v3648
    %3710 = vmatpush1.msra.mxu0 %v3647
    %3711 = vmatprep.subr.mxu0 %v3650
    %3712 = vmatpush1.msra.mxu0 %v3649
    %3713 = vmatprep.subr.mxu0 %v3652
    %3714 = vmatpush1.msra.mxu0 %v3651
    %3715 = vmatprep.subr.mxu0 %v3654
    %3716 = vmatpush1.msra.mxu0 %v3653
    %3717 = vmatprep.subr.mxu0 %v3656
    %3718 = vmatpush1.msra.mxu0 %v3655
    %3719 = vmatprep.subr.mxu0 %v3658
    %3720 = vmatpush1.msra.mxu0 %v3657
    %3721 = vmatprep.subr.mxu0 %v3660
    %3722 = vmatpush1.msra.mxu0 %v3659
    %3723 = vmatprep.subr.mxu0 %v3662
    %3724 = vmatpush1.msra.mxu0 %v3661
    %3725 = vmatprep.subr.mxu0 %v3664
    %3726 = vmatpush1.msra.mxu0 %v3663
    %3727 = vmatprep.subr.mxu0 %v3666
    %3728 = vmatpush1.msra.mxu0 %v3665
    %3729 = vmatprep.subr.mxu0 %v3668
    %3730 = vmatpush1.msra.mxu0 %v3667
    %3731 = vmatprep.subr.mxu0 %v3670
    %3732 = vmatpush1.msra.mxu0 %v3669
    %3733 = vmatprep.subr.mxu0 %v3672
    %3734 = vmatpush1.msra.mxu0 %v3671
    %3735 = vmatprep.subr.mxu0 %v3674
    %3736 = vmatpush1.msra.mxu0 %v3673
    %3737 = vmatprep.subr.mxu0 %v3676
    %3738 = vmatpush1.msra.mxu0 %v3675
    %3739 = vmatprep.subr.mxu0 0.0
    %3740 = vmatpush1.msra.mxu0 0.0
    %3741 = vmatprep.subr.mxu0 0.0
    %3742 = vmatpush1.msra.mxu0 0.0
    %3743 = vmatprep.subr.mxu0 0.0
    %3744 = vmatpush1.msra.mxu0 0.0
    %3745 = vmatprep.subr.mxu0 0.0
    %3746 = vmatpush1.msra.mxu0 0.0
    %3747 = vmatprep.mubr.f32.mxu0 %v3678
    %3748 = vmatmul.mubr.f32.gmra.mrb[0].mxu0 %v3330
    %v3749 = vpop.f32.mrb[0].mxu0
    %v3750 = vadd.f32 0.0, %v3749
    %v3751 = vpop.f32.mrb[0].mxu0
    %v3752 = vadd.f32 0.0, %v3751
    %3753 = vmatprep.mubr.f32.mxu0 %v3681
    %3754 = vmatmul.mubr.f32.gmra.mrb[0].mxu0 %v3336
    %v3755 = vpop.f32.mrb[0].mxu0
    %v3756 = vadd.f32 0.0, %v3755
    %v3757 = vpop.f32.mrb[0].mxu0
    %v3758 = vadd.f32 0.0, %v3757
    %3759 = vdwg.mxu0
    %v3760 = vadd.f32 %v3610, %v3750
    %v3761 = vadd.f32 %v3612, %v3752
    %v3762 = vadd.f32 %v3616, %v3756
    %v3763 = vadd.f32 %v3618, %v3758
    %v3764 = vld [vmem:[%s11] sm:$0x3]
    %v3766 = vlaneseq
    %v3767 = vshrl.u32 %v3766, 7
    %v3768 = vsub.s32 0, %v3767
    %v3769 = vrot.slane %v3764, %v3768
    %v3770 = vlaneseq
    %v3771 = vshrl.u32 %v3770, 7
    %v3772 = vsub.s32 1, %v3771
    %v3773 = vrot.slane %v3764, %v3772
    %v3776 = vadd.f32 %v3760, %v3769
    %v3777 = vadd.f32 %v3761, %v3773
    %v3778 = vadd.f32 %v3762, %v3769
    %v3779 = vadd.f32 %v3763, %v3773
    %v3780 = vmax.f32 %v3776, 0.0
    %v3781 = vmax.f32 %v3777, 0.0
    %v3782 = vmax.f32 %v3778, 0.0
    %v3783 = vmax.f32 %v3779, 0.0
    %3784 = vst [vmem:[#allocation2] sm:$0xff] %v1930
    %3785 = vst [vmem:[#allocation2 + $0x8] sm:$0xff] %v1931
    %3786 = vst [vmem:[#allocation2 + $0x10] sm:$0xff] %v1932
    %3787 = vst [vmem:[#allocation2 + $0x40] sm:$0xff] %v1933
    %3788 = vst [vmem:[#allocation2 + $0x48] sm:$0xff] %v1934
    %3789 = vst [vmem:[#allocation2 + $0x50] sm:$0xff] %v1935
    %3790 = vst [vmem:[#allocation2 + $0x18] sm:$0xff] %v3780
    %3791 = vst [vmem:[#allocation2 + $0x20] sm:$0xff] %v3781
    %3792 = vst [vmem:[#allocation2 + $0x58] sm:$0xff] %v3782
    %3793 = vst [vmem:[#allocation2 + $0x60] sm:$0xff] %v3783
    %3794 = vst [vmem:[#allocation2 + $0x28] sm:$0xff] %v549
    %3795 = vst [vmem:[#allocation2 + $0x30] sm:$0xff] %v550
    %3796 = vst [vmem:[#allocation2 + $0x38] sm:$0xff] %v551
    %3797 = vst [vmem:[#allocation2 + $0x68] sm:$0xff] %v552
    %3798 = vst [vmem:[#allocation2 + $0x70] sm:$0xff] %v553
    %3799 = vst [vmem:[#allocation2 + $0x78] sm:$0xff] %v554
    // Predicated region
    $region50: #{reduction_a_forward.1} parent=1 // pred_check
      _
    $region51: #{reduction_a_forward.1} parent=1 // pred_check_branch
      %3801 = sbr.rel (0) target = $region53
    $region52: #{reduction_a_forward.1} parent=1 // pred_region
      %s3803 = ssub.s32 2048, 2048
      %3804 = vsyncadd [#allocation3], %s3803
      %s3805 = sshll.u32 [#allocation2], 4
      %s3806 = int_to_ptr.vmem [resolvable:$true] %s3805
      %3811 = dma.vmem_to_hbm [thread:$0]  %s3806, 2048, %s12, [#allocation3], 1024, 1024, 64
    $region53: #{reduction_a_forward.1} parent=1 // pred_fallthru
      _
    // Predicated region
    $region54: #{reduction_a_forward.1} parent=1 // pred_check
      _
    $region55: #{reduction_a_forward.1} parent=1 // pred_check_branch
      %3813 = sbr.rel (0) target = $region57
    $region56: #{reduction_a_forward.1} parent=1 // pred_region
      %3814 = dma.done [#allocation3], 2048
    $region57: #{reduction_a_forward.1} parent=1 // pred_fallthru
      _
    %3815 = vsyncpa [#allocation3], 1

</llo_original>
